<compile_context>
chip_gen: v6e
topology: v6e:2x2x1
jax: 0.10.0
libtpu: 0.0.40
codegen_flags: <defaults>
</compile_context>

<pallas_src>
import jax
import jax.numpy as jnp
from jax.experimental import pallas as pl
from jax.experimental.pallas import tpu as pltpu

LOG2 = 0.6931471805599453   # log(2.0): the "shift" in shifted_softplus
_SCATTER_CHUNK = 256        # K-chunk width for the dst-onehot scatter matmul


def _ssp(x):
    # numerically-stable softplus(x) - log(2), computed in f32
    return jnp.maximum(x, 0.0) + jnp.log1p(jnp.exp(-jnp.abs(x))) - LOG2


def _round_up(x, m):
    return ((x + m - 1) // m) * m


def _pad2(x, rows, cols, fill=0):
    return jnp.pad(
        x, ((0, rows - x.shape[0]), (0, cols - x.shape[1])), constant_values=fill
    )


# ---------------------------------------------------------------------------
# Kernel 1: per-edge filter MLP + message construction (runs once per edge).
# ---------------------------------------------------------------------------
def edge_msg_kernel(e_ref, hsrc_ref, w_e1_ref, b_e1_ref, w_e2_ref, b_e2_ref,
                    msgs_ref):
    e1 = _ssp(jnp.dot(e_ref[...], w_e1_ref[...],
                      preferred_element_type=jnp.float32) + b_e1_ref[...])
    e2 = _ssp(jnp.dot(e1.astype(jnp.bfloat16), w_e2_ref[...],
                      preferred_element_type=jnp.float32) + b_e2_ref[...])
    # TODO(synk): on v6e/v7x the _ssp activations could run in bf16 (bf16
    # VPU/EUP); kept in f32 so the single code path is exact on v5e as well.
    msgs_ref[...] = (hsrc_ref[...] * e2).astype(jnp.bfloat16)


# ---------------------------------------------------------------------------
# Kernel 2: scatter-sum of messages into node tiles + output MLP (fc_1/fc_2).
# ---------------------------------------------------------------------------
def scatter_finalize_kernel(msgs_ref, dst_ref, w_f1_ref, b_f1_ref,
                            w_f2_ref, b_f2_ref, out_ref, acc_ref):
    i = pl.program_id(0)          # node tile index   (parallel)
    j = pl.program_id(1)          # edge tile index   (reduction / arbitrary)
    tn = acc_ref.shape[0]
    te = msgs_ref.shape[0]

    @pl.when(j == 0)
    def _():
        acc_ref[...] = jnp.zeros_like(acc_ref)

    # scatter: onehot(dst) @ msgs in static 256-wide K-chunks so the
    # [tn, chunk] one-hot never blows up vreg live ranges for large te.
    row_ids = i * tn + jax.lax.broadcasted_iota(
        jnp.int32, (tn, _SCATTER_CHUNK), 0)
    for off in range(0, te, _SCATTER_CHUNK):                      # static offsets
        d_chunk = dst_ref[:, pl.ds(off, _SCATTER_CHUNK)]          # [1, C] int32
        m_chunk = msgs_ref[pl.ds(off, _SCATTER_CHUNK), :]         # [C, Hp] bf16
        dst_oh = (d_chunk == row_ids).astype(jnp.bfloat16)        # [tn, C]
        acc_ref[...] += jnp.dot(dst_oh, m_chunk,
                                preferred_element_type=jnp.float32)

    @pl.when(j == pl.num_programs(1) - 1)
    def _():
        agg = acc_ref[...]
        h1 = _ssp(jnp.dot(agg.astype(jnp.bfloat16), w_f1_ref[...],
                          preferred_element_type=jnp.float32) + b_f1_ref[...])
        out_ref[...] = jnp.dot(h1.astype(jnp.bfloat16), w_f2_ref[...],
                               preferred_element_type=jnp.float32) + b_f2_ref[...]


def schnet_layer(h, e, src, dst, params, *, tn=128, te=512):
    """SCHNETLayer forward (batch_norm=False, residual=False, dropout=0.0).

    h: [N, H] f32 node features, e: [E, F] f32 edge features,
    src/dst: [E] int32 edge endpoints (messages flow src -> dst).
    """
    assert tn % 128 == 0 and te % _SCATTER_CHUNK == 0
    N, H = h.shape
    E, F = e.shape
    Hp = _round_up(H, 128)
    Fp = _round_up(F, 128)
    Np = _round_up(N, tn)
    Ep = _round_up(E, te)
    bf16 = jnp.bfloat16

    # ---- node_func + source gather, once over N rows, in XLA --------------
    # (tiny GEMM; doing it here removes the N-scaling resident h slab and the
    #  O(TE*Np) in-kernel one-hot gather of the previous revision)
    h_node = jnp.dot(h.astype(bf16), params["w_node"].astype(bf16),
                     preferred_element_type=jnp.float32) + params["b_node"]
    h_src = jnp.take(h_node, src.astype(jnp.int32), axis=0)       # [E, H] f32
    h_src_p = _pad2(h_src, Ep, Hp)        # zero rows -> padded edges give 0 msgs

    e_p = _pad2(e, Ep, Fp).astype(bf16)
    # lane-dense dst indices; padded edges get dst = -1 (never matches a row id)
    dst_p = jnp.pad(dst.astype(jnp.int32).reshape(1, E),
                    ((0, 0), (0, Ep - E)), constant_values=-1)

    def wpad(w, din_p, dout_p):
        return _pad2(w, din_p, dout_p).astype(bf16)

    def bpad(b, dout_p):
        return _pad2(b, 1, dout_p).astype(jnp.float32)

    w_e1, b_e1 = wpad(params["w_e1"], Fp, Hp), bpad(params["b_e1"], Hp)
    w_e2, b_e2 = wpad(params["w_e2"], Hp, Hp), bpad(params["b_e2"], Hp)
    w_f1, b_f1 = wpad(params["w_f1"], Hp, Hp), bpad(params["b_f1"], Hp)
    w_f2, b_f2 = wpad(params["w_f2"], Hp, Hp), bpad(params["b_f2"], Hp)

    # Actual VMEM footprint of each kernel is ~2-3 MiB (double-buffered tiles +
    # resident 128x128 weights + f32 intermediates); 16 MiB leaves generous
    # headroom and fits every chip's scoped-VMEM budget (v5e default 16 MiB).
    vmem_limit = 16 * 1024 * 1024

    # ---- kernel 1: edge-message kernel -------------------------------------
    ej = Ep // te
    e_flops = 2 * Ep * Hp * (Fp + Hp) + 3 * Ep * Hp
    e_trans = 4 * Ep * Hp
    e_bytes = (Ep * Fp * 2 + Ep * Hp * 4 + Ep * Hp * 2
               + (Fp * Hp + Hp * Hp) * 2 + 2 * Hp * 4)
    msgs = pl.pallas_call(
        edge_msg_kernel,
        out_shape=jax.ShapeDtypeStruct((Ep, Hp), bf16),
        grid_spec=pltpu.PrefetchScalarGridSpec(
            num_scalar_prefetch=0,
            grid=(ej,),
            in_specs=[
                pl.BlockSpec((te, Fp), lambda j: (j, 0)),   # e tile
                pl.BlockSpec((te, Hp), lambda j: (j, 0)),   # h_node[src] tile
                pl.BlockSpec((Fp, Hp), lambda j: (0, 0)),   # w_e1 (resident)
                pl.BlockSpec((1, Hp), lambda j: (0, 0)),    # b_e1
                pl.BlockSpec((Hp, Hp), lambda j: (0, 0)),   # w_e2
                pl.BlockSpec((1, Hp), lambda j: (0, 0)),    # b_e2
            ],
            out_specs=pl.BlockSpec((te, Hp), lambda j: (j, 0)),
        ),
        compiler_params=pltpu.CompilerParams(
            dimension_semantics=("parallel",),
            vmem_limit_bytes=vmem_limit,
        ),
        cost_estimate=pl.CostEstimate(flops=int(e_flops),
                                      transcendentals=int(e_trans),
                                      bytes_accessed=int(e_bytes)),
    )(e_p, h_src_p, w_e1, b_e1, w_e2, b_e2)

    # ---- kernel 2: scatter-sum + fc_1 -> ssp -> fc_2 -----------------------
    gi, gj = Np // tn, Ep // te
    s_flops = gi * gj * 2 * tn * te * Hp + gi * (4 * tn * Hp * Hp + 3 * tn * Hp)
    s_trans = gi * 2 * tn * Hp
    s_bytes = (gi * (Ep * Hp * 2 + Ep * 4)
               + 2 * Hp * Hp * 2 + 2 * Hp * 4 + Np * Hp * 4)
    out = pl.pallas_call(
        scatter_finalize_kernel,
        out_shape=jax.ShapeDtypeStruct((Np, Hp), jnp.float32),
        grid_spec=pltpu.PrefetchScalarGridSpec(
            num_scalar_prefetch=0,
            grid=(gi, gj),
            in_specs=[
                pl.BlockSpec((te, Hp), lambda i, j: (j, 0)),   # msgs tile
                pl.BlockSpec((1, te), lambda i, j: (0, j)),    # dst (lane-dense)
                pl.BlockSpec((Hp, Hp), lambda i, j: (0, 0)),   # w_f1 (resident)
                pl.BlockSpec((1, Hp), lambda i, j: (0, 0)),    # b_f1
                pl.BlockSpec((Hp, Hp), lambda i, j: (0, 0)),   # w_f2
                pl.BlockSpec((1, Hp), lambda i, j: (0, 0)),    # b_f2
            ],
            out_specs=pl.BlockSpec((tn, Hp), lambda i, j: (i, 0)),
            scratch_shapes=[pltpu.VMEM((tn, Hp), jnp.float32)],
        ),
        compiler_params=pltpu.CompilerParams(
            dimension_semantics=("parallel", "arbitrary"),
            vmem_limit_bytes=vmem_limit,
        ),
        cost_estimate=pl.CostEstimate(flops=int(s_flops),
                                      transcendentals=int(s_trans),
                                      bytes_accessed=int(s_bytes)),
    )(msgs, dst_p, w_f1, b_f1, w_f2, b_f2)

    return out[:N, :H]


def init_params(key, hidden_dim, edge_feat_dim):
    """Deterministic synthetic weights. Linear weights stored as [in, out]
    (transposed PyTorch nn.Linear weight) so y = x @ W + b."""
    ks = jax.random.split(key, 10)
    scale = 0.1

    def lin(kw, kb, din, dout):
        w = scale * jax.random.normal(kw, (din, dout), jnp.float32)
        b = scale * jax.random.normal(kb, (1, dout), jnp.float32)
        return w, b

    w_node, b_node = lin(ks[0], ks[1], hidden_dim, hidden_dim)
    w_e1, b_e1 = lin(ks[2], ks[3], edge_feat_dim, hidden_dim)
    w_e2, b_e2 = lin(ks[4], ks[5], hidden_dim, hidden_dim)
    w_f1, b_f1 = lin(ks[6], ks[7], hidden_dim, hidden_dim)
    w_f2, b_f2 = lin(ks[8], ks[9], hidden_dim, hidden_dim)
    return dict(
        w_node=w_node, b_node=b_node,
        w_e1=w_e1, b_e1=b_e1,
        w_e2=w_e2, b_e2=b_e2,
        w_f1=w_f1, b_f1=b_f1,
        w_f2=w_f2, b_f2=b_f2,
    )


def schnet_reference(h, e, src, dst, params, *, use_bf16=True):
    """Pure-JAX reference mirroring the PyTorch/DGL forward (default flags) with
    the same bf16-operand / f32-accumulation precision as the kernels."""
    cast = (lambda x: x.astype(jnp.bfloat16)) if use_bf16 else (lambda x: x)

    def lin(x, w, b):
        return jnp.dot(cast(x), cast(w), preferred_element_type=jnp.float32) + b

    hn = lin(h, params["w_node"], params["b_node"])
    e1 = _ssp(lin(e, params["w_e1"], params["b_e1"]))
    e2 = _ssp(lin(e1, params["w_e2"], params["b_e2"]))
    msgs = cast(hn[src] * e2).astype(jnp.float32)
    agg = jnp.zeros_like(hn).at[dst].add(msgs)
    h1 = _ssp(lin(agg, params["w_f1"], params["b_f1"]))
    return lin(h1, params["w_f2"], params["b_f2"])


if __name__ == "__main__":
    hidden_dim = 32
    edge_feat_dim = 16
    num_nodes = 200     # -> 2 node tiles of 128 (even: balances v7x's 2 TCs)
    num_edges = 600     # -> 2 edge tiles of 512

    key = jax.random.PRNGKey(0)
    k_h, k_e, k_src, k_dst, k_p = jax.random.split(key, 5)

    h = jax.random.normal(k_h, (num_nodes, hidden_dim), jnp.float32)
    e = jax.random.normal(k_e, (num_edges, edge_feat_dim), jnp.float32)
    src = jax.random.randint(k_src, (num_edges,), 0, num_nodes, dtype=jnp.int32)
    dst = jax.random.randint(k_dst, (num_edges,), 0, num_nodes, dtype=jnp.int32)

    params = init_params(k_p, hidden_dim, edge_feat_dim)

    out = schnet_layer(h, e, src, dst, params, tn=128, te=512)
    out = jax.block_until_ready(out)

    ref = schnet_reference(h, e, src, dst, params, use_bf16=True)
    assert out.shape == (num_nodes, hidden_dim)
    max_err = float(jnp.max(jnp.abs(out - ref)))
    assert jnp.allclose(out, ref, atol=1e-2, rtol=1e-2), (
        f"mismatch vs pure-JAX reference, max abs err={max_err}"
    )

    print("KERNEL_OK")
</pallas_src>

<mosaic_0001>
module attributes {stable_mosaic.version = 11 : i64} {
  func.func @edge_msg_kernel(%arg0: i32, %arg1: memref<512x128xbf16, #tpu.memory_space<vmem>>, %arg2: memref<512x128xf32, #tpu.memory_space<vmem>>, %arg3: memref<128x128xbf16, #tpu.memory_space<vmem>>, %arg4: memref<1x128xf32, #tpu.memory_space<vmem>>, %arg5: memref<128x128xbf16, #tpu.memory_space<vmem>>, %arg6: memref<1x128xf32, #tpu.memory_space<vmem>>, %arg7: memref<512x128xbf16, #tpu.memory_space<vmem>>) attributes {dimension_semantics = [#tpu.dimension_semantics<parallel>], iteration_bounds = array<i64: 2>, scalar_prefetch = 0 : i64, scratch_operands = 0 : i64, tpu.core_type = #tpu.core_type<tc>, window_params = [{transform_indices = @transform_0, window_bounds = array<i64: 512, 128>}, {transform_indices = @transform_1, window_bounds = array<i64: 512, 128>}, {pipeline_mode = #tpu.pipeline_mode<synchronous>, transform_indices = @transform_2, window_bounds = array<i64: 128, 128>}, {pipeline_mode = #tpu.pipeline_mode<synchronous>, transform_indices = @transform_3, window_bounds = array<i64: 1, 128>}, {pipeline_mode = #tpu.pipeline_mode<synchronous>, transform_indices = @transform_4, window_bounds = array<i64: 128, 128>}, {pipeline_mode = #tpu.pipeline_mode<synchronous>, transform_indices = @transform_5, window_bounds = array<i64: 1, 128>}, {transform_indices = @transform_6, window_bounds = array<i64: 512, 128>}]} {
    %c0 = arith.constant 0 : index
    %c0_0 = arith.constant 0 : index
    %0 = vector.load %arg1[%c0, %c0_0] : memref<512x128xbf16, #tpu.memory_space<vmem>>, vector<512x128xbf16>
    %c0_1 = arith.constant 0 : index
    %c0_2 = arith.constant 0 : index
    %1 = vector.load %arg3[%c0_1, %c0_2] : memref<128x128xbf16, #tpu.memory_space<vmem>>, vector<128x128xbf16>
    %cst = arith.constant dense<0.000000e+00> : vector<512x128xf32>
    %2 = tpu.matmul %0, %1, %cst {dimension_numbers = #tpu.dot_dimension_numbers<[1], [0], [0], [1], [0, 0, 1, 1], [], []>} : vector<512x128xbf16>, vector<128x128xbf16>, vector<512x128xf32> -> vector<512x128xf32>
    %c0_3 = arith.constant 0 : index
    %c0_4 = arith.constant 0 : index
    %3 = vector.load %arg4[%c0_3, %c0_4] : memref<1x128xf32, #tpu.memory_space<vmem>>, vector<1x128xf32>
    %4 = vector.broadcast %3 : vector<1x128xf32> to vector<512x128xf32>
    %5 = arith.addf %2, %4 : vector<512x128xf32>
    %cst_5 = arith.constant 0.000000e+00 : f32
    %6 = vector.broadcast %cst_5 : f32 to vector<512x128xf32>
    %7 = arith.maximumf %5, %6 : vector<512x128xf32>
    %8 = math.absf %5 : vector<512x128xf32>
    %cst_6 = arith.constant 0.000000e+00 : f32
    %9 = vector.broadcast %cst_6 : f32 to vector<512x128xf32>
    %10 = arith.subf %9, %8 : vector<512x128xf32>
    %11 = math.exp %10 : vector<512x128xf32>
    %12 = math.log1p %11 : vector<512x128xf32>
    %13 = arith.addf %7, %12 : vector<512x128xf32>
    %cst_7 = arith.constant 0.693147182 : f32
    %14 = vector.broadcast %cst_7 : f32 to vector<512x128xf32>
    %15 = arith.subf %13, %14 : vector<512x128xf32>
    %16 = arith.truncf %15 : vector<512x128xf32> to vector<512x128xbf16>
    %c0_8 = arith.constant 0 : index
    %c0_9 = arith.constant 0 : index
    %17 = vector.load %arg5[%c0_8, %c0_9] : memref<128x128xbf16, #tpu.memory_space<vmem>>, vector<128x128xbf16>
    %cst_10 = arith.constant dense<0.000000e+00> : vector<512x128xf32>
    %18 = tpu.matmul %16, %17, %cst_10 {dimension_numbers = #tpu.dot_dimension_numbers<[1], [0], [0], [1], [0, 0, 1, 1], [], []>} : vector<512x128xbf16>, vector<128x128xbf16>, vector<512x128xf32> -> vector<512x128xf32>
    %c0_11 = arith.constant 0 : index
    %c0_12 = arith.constant 0 : index
    %19 = vector.load %arg6[%c0_11, %c0_12] : memref<1x128xf32, #tpu.memory_space<vmem>>, vector<1x128xf32>
    %20 = vector.broadcast %19 : vector<1x128xf32> to vector<512x128xf32>
    %21 = arith.addf %18, %20 : vector<512x128xf32>
    %cst_13 = arith.constant 0.000000e+00 : f32
    %22 = vector.broadcast %cst_13 : f32 to vector<512x128xf32>
    %23 = arith.maximumf %21, %22 : vector<512x128xf32>
    %24 = math.absf %21 : vector<512x128xf32>
    %cst_14 = arith.constant 0.000000e+00 : f32
    %25 = vector.broadcast %cst_14 : f32 to vector<512x128xf32>
    %26 = arith.subf %25, %24 : vector<512x128xf32>
    %27 = math.exp %26 : vector<512x128xf32>
    %28 = math.log1p %27 : vector<512x128xf32>
    %29 = arith.addf %23, %28 : vector<512x128xf32>
    %cst_15 = arith.constant 0.693147182 : f32
    %30 = vector.broadcast %cst_15 : f32 to vector<512x128xf32>
    %31 = arith.subf %29, %30 : vector<512x128xf32>
    %c0_16 = arith.constant 0 : index
    %c0_17 = arith.constant 0 : index
    %32 = vector.load %arg2[%c0_16, %c0_17] : memref<512x128xf32, #tpu.memory_space<vmem>>, vector<512x128xf32>
    %33 = arith.mulf %32, %31 : vector<512x128xf32>
    %34 = arith.truncf %33 : vector<512x128xf32> to vector<512x128xbf16>
    %c0_18 = arith.constant 0 : index
    %c0_19 = arith.constant 0 : index
    %35 = vector.load %arg7[%c0_18, %c0_19] : memref<512x128xbf16, #tpu.memory_space<vmem>>, vector<512x128xbf16>
    tpu.vector_store %arg7[%c0_18, %c0_19], %34 {strides = array<i32>} : memref<512x128xbf16, #tpu.memory_space<vmem>>, vector<512x128xbf16>,
    return
  }
  func.func @transform_0(%arg0: i32) -> (i32, i32) {
    %c0_i32 = arith.constant 0 : i32
    %c0_i32_0 = arith.constant 0 : i32
    return %arg0, %c0_i32 : i32, i32
  }
  func.func @transform_1(%arg0: i32) -> (i32, i32) {
    %c0_i32 = arith.constant 0 : i32
    %c0_i32_0 = arith.constant 0 : i32
    return %arg0, %c0_i32 : i32, i32
  }
  func.func @transform_2(%arg0: i32) -> (i32, i32) {
    %c0_i32 = arith.constant 0 : i32
    %c0_i32_0 = arith.constant 0 : i32
    %c0_i32_1 = arith.constant 0 : i32
    return %c0_i32, %c0_i32_0 : i32, i32
  }
  func.func @transform_3(%arg0: i32) -> (i32, i32) {
    %c0_i32 = arith.constant 0 : i32
    %c0_i32_0 = arith.constant 0 : i32
    %c0_i32_1 = arith.constant 0 : i32
    return %c0_i32, %c0_i32_0 : i32, i32
  }
  func.func @transform_4(%arg0: i32) -> (i32, i32) {
    %c0_i32 = arith.constant 0 : i32
    %c0_i32_0 = arith.constant 0 : i32
    %c0_i32_1 = arith.constant 0 : i32
    return %c0_i32, %c0_i32_0 : i32, i32
  }
  func.func @transform_5(%arg0: i32) -> (i32, i32) {
    %c0_i32 = arith.constant 0 : i32
    %c0_i32_0 = arith.constant 0 : i32
    %c0_i32_1 = arith.constant 0 : i32
    return %c0_i32, %c0_i32_0 : i32, i32
  }
  func.func @transform_6(%arg0: i32) -> (i32, i32) {
    %c0_i32 = arith.constant 0 : i32
    %c0_i32_0 = arith.constant 0 : i32
    return %arg0, %c0_i32 : i32, i32
  }
}

</mosaic_0001>

<llo_original>
// kernel: tpu_custom_call.1
$region0: #{tpu_custom_call.1}
  #allocation0 [shape = 'u32[]', space=smem, size = 0x4, offset = 0x4, fixed_abs, tag = 'smem constant byte address 0x4 - core index']
  #allocation1 [shape = 'u32[144,128]{1,0:T(1,128)}', space=vmem, size = 0x12000, scoped, tag = 'internal scratch']
  %s0 = inlined_call_operand.hbm [shape: bf16[1024,128], index: 0, kind: input, shape index: {}]
  %s1 = inlined_call_operand.hbm [shape: f32[1024,128], index: 1, kind: input, shape index: {}]
  %s2 = inlined_call_operand.hbm [shape: bf16[128,128], index: 2, kind: input, shape index: {}]
  %s3 = inlined_call_operand.vmem [shape: f32[1,128], index: 3, kind: input, shape index: {}]
  %s4 = inlined_call_operand.hbm [shape: bf16[128,128], index: 4, kind: input, shape index: {}]
  %s5 = inlined_call_operand.vmem [shape: f32[1,128], index: 5, kind: input, shape index: {}]
  %s6 = inlined_call_operand.hbm [shape: bf16[1024,128], index: 6, kind: output, shape index: {}]
  %s7 = sld [smem:[#allocation0]]
  $region73: #{tpu_custom_call.1} parent=0
    _
  %s9 = ssub.s32 1, %s7
  %s10 = scalar_select 0, %s9, %s7
  $region1: #{tpu_custom_call.1} parent=0
    #allocation2 [shape = 'u8[262144]{0}', space=vmem, size = 0x40000, scoped, tag = 'input window, operand 0']
    #allocation3 [shape = 's32[2]{0}', space=sflag, size = 0x8, scoped, tag = 'scoped memory for tpu_custom_call.1']
    #allocation4 [shape = 's32[2]{0}', space=sflag, size = 0x8, scoped, tag = 'scoped memory for tpu_custom_call.1']
    #allocation5 [shape = 'u8[524288]{0}', space=vmem, size = 0x80000, scoped, tag = 'input window, operand 1']
    #allocation6 [shape = 's32[2]{0}', space=sflag, size = 0x8, scoped, tag = 'scoped memory for tpu_custom_call.1']
    #allocation7 [shape = 'u8[32768]{0}', space=vmem, size = 0x8000, scoped, tag = 'input window, operand 2, single buffered']
    #allocation8 [shape = 'u8[32768]{0}', space=vmem, size = 0x8000, scoped, tag = 'input window, operand 4, single buffered']
    #allocation9 [shape = 's32[1]{0}', space=sflag, size = 0x4, scoped, tag = 'scoped memory for tpu_custom_call.1']
    #allocation10 [shape = 'u8[262144]{0}', space=vmem, size = 0x40000, scoped, tag = 'output window, operand 0']
    %11 = vsyncpa [#allocation3], 0
    %s12 = scalar_lea.sflag [#allocation3], 1
    %13 = vsyncpa %s12, 0
    %14 = vsyncpa [#allocation6], 0
    %s15 = scalar_lea.sflag [#allocation6], 1
    %16 = vsyncpa %s15, 0
    %17 = vsyncpa [#allocation9], 0
    %18 = vsyncpa [#allocation4], 0
    %s19 = scalar_lea.sflag [#allocation4], 1
    %20 = vsyncpa %s19, 0
    loop: start=0, step=1, limit=4
    $region2: #{tpu_custom_call.1} parent=1 // loop_pre_header
      _
    $region3: #{tpu_custom_call.1} parent=1 // loop_header
      %s22 = sphi 0, %s26
      %p23 = scmp.ge.s32.totalorder %s22, 4
      %s32 = sphi 0, %s34
      %s35 = sphi 0, %s32
      %s36 = sphi 0, %s35
      %s52 = sphi 0, %s36
      %s58 = sphi 0, %s60
      %s61 = sphi 0, %s58
      %s62 = sphi 0, %s61
      %s78 = sphi 0, %s62
      %s82 = sphi 0, %s82
      %s84 = sphi 0, %s82
      %s85 = sphi 0, %s84
      %s99 = sphi 0, %s85
      %s103 = sphi 0, %s103
      %s105 = sphi 0, %s103
      %s106 = sphi 0, %s105
      %s120 = sphi 0, %s106
      %s124 = sphi 0, %s124
      %s126 = sphi 0, %s124
      %s127 = sphi 0, %s126
      %s141 = sphi 0, %s127
      %s145 = sphi 0, %s145
      %s147 = sphi 0, %s145
      %s148 = sphi 0, %s147
      %s162 = sphi 0, %s148
      %s168 = sphi 0, %s170
      %s171 = sphi 0, %s168
      %s172 = sphi 0, %s171
      %s188 = sphi 0, %s172
    $region4: #{tpu_custom_call.1} parent=1 // loop_header_branch
      %25 = sbr.rel (%p23) target = $region8
    $region5: #{tpu_custom_call.1} parent=1 // loop_body
      %s27 = ssub.s32 %s22, 1
      %s28 = ssub.s32 %s22, 2
      %s29 = sadd.s32 %s22, 1
      %s30 = ssub.s32 %s22, %s29
      %p31 = scmp.eq.s32.totalorder %s30, 0
      %s33 = sadd.s32 %s32, 1
      %s34 = scalar_select %p31, %s32, %s33
      %p37 = pneg %p31
      %p38 = scmp.eq.s32.totalorder %s22, 1
      %p39 = por %p37, %p38
      %p40 = scmp.ne.s32.totalorder %s32, %s35
      %p41 = scmp.eq.s32.totalorder %s22, 0
      %p42 = por %p40, %p41
      %p43 = scmp.ne.s32.totalorder %s32, %s35
      %p44 = scmp.eq.s32.totalorder %s27, 1
      %p45 = por %p43, %p44
      %p46 = scmp.ne.s32.totalorder %s35, %s36
      %p47 = scmp.eq.s32.totalorder %s27, 0
      %p48 = por %p46, %p47
      %p49 = scmp.ne.s32.totalorder %s35, %s36
      %p50 = scmp.eq.s32.totalorder %s28, 1
      %p51 = por %p49, %p50
      %p53 = scmp.ne.s32.totalorder %s36, %s52
      %p54 = scmp.eq.s32.totalorder %s28, 0
      %p55 = por %p53, %p54
      %s56 = ssub.s32 %s22, %s29
      %p57 = scmp.eq.s32.totalorder %s56, 0
      %s59 = sadd.s32 %s58, 1
      %s60 = scalar_select %p57, %s58, %s59
      %p63 = pneg %p57
      %p64 = scmp.eq.s32.totalorder %s22, 1
      %p65 = por %p63, %p64
      %p66 = scmp.ne.s32.totalorder %s58, %s61
      %p67 = scmp.eq.s32.totalorder %s22, 0
      %p68 = por %p66, %p67
      %p69 = scmp.ne.s32.totalorder %s58, %s61
      %p70 = scmp.eq.s32.totalorder %s27, 1
      %p71 = por %p69, %p70
      %p72 = scmp.ne.s32.totalorder %s61, %s62
      %p73 = scmp.eq.s32.totalorder %s27, 0
      %p74 = por %p72, %p73
      %p75 = scmp.ne.s32.totalorder %s61, %s62
      %p76 = scmp.eq.s32.totalorder %s28, 1
      %p77 = por %p75, %p76
      %p79 = scmp.ne.s32.totalorder %s62, %s78
      %p80 = scmp.eq.s32.totalorder %s28, 0
      %p81 = por %p79, %p80
      %s83 = sadd.s32 %s82, 1
      %p86 = scmp.eq.s32.totalorder %s22, 1
      %p87 = scmp.ne.s32.totalorder %s82, %s84
      %p88 = scmp.eq.s32.totalorder %s22, 0
      %p89 = por %p87, %p88
      %p90 = scmp.ne.s32.totalorder %s82, %s84
      %p91 = scmp.eq.s32.totalorder %s27, 1
      %p92 = por %p90, %p91
      %p93 = scmp.ne.s32.totalorder %s84, %s85
      %p94 = scmp.eq.s32.totalorder %s27, 0
      %p95 = por %p93, %p94
      %p96 = scmp.ne.s32.totalorder %s84, %s85
      %p97 = scmp.eq.s32.totalorder %s28, 1
      %p98 = por %p96, %p97
      %p100 = scmp.ne.s32.totalorder %s85, %s99
      %p101 = scmp.eq.s32.totalorder %s28, 0
      %p102 = por %p100, %p101
      %s104 = sadd.s32 %s103, 1
      %p107 = scmp.eq.s32.totalorder %s22, 1
      %p108 = scmp.ne.s32.totalorder %s103, %s105
      %p109 = scmp.eq.s32.totalorder %s22, 0
      %p110 = por %p108, %p109
      %p111 = scmp.ne.s32.totalorder %s103, %s105
      %p112 = scmp.eq.s32.totalorder %s27, 1
      %p113 = por %p111, %p112
      %p114 = scmp.ne.s32.totalorder %s105, %s106
      %p115 = scmp.eq.s32.totalorder %s27, 0
      %p116 = por %p114, %p115
      %p117 = scmp.ne.s32.totalorder %s105, %s106
      %p118 = scmp.eq.s32.totalorder %s28, 1
      %p119 = por %p117, %p118
      %p121 = scmp.ne.s32.totalorder %s106, %s120
      %p122 = scmp.eq.s32.totalorder %s28, 0
      %p123 = por %p121, %p122
      %s125 = sadd.s32 %s124, 1
      %p128 = scmp.eq.s32.totalorder %s22, 1
      %p129 = scmp.ne.s32.totalorder %s124, %s126
      %p130 = scmp.eq.s32.totalorder %s22, 0
      %p131 = por %p129, %p130
      %p132 = scmp.ne.s32.totalorder %s124, %s126
      %p133 = scmp.eq.s32.totalorder %s27, 1
      %p134 = por %p132, %p133
      %p135 = scmp.ne.s32.totalorder %s126, %s127
      %p136 = scmp.eq.s32.totalorder %s27, 0
      %p137 = por %p135, %p136
      %p138 = scmp.ne.s32.totalorder %s126, %s127
      %p139 = scmp.eq.s32.totalorder %s28, 1
      %p140 = por %p138, %p139
      %p142 = scmp.ne.s32.totalorder %s127, %s141
      %p143 = scmp.eq.s32.totalorder %s28, 0
      %p144 = por %p142, %p143
      %s146 = sadd.s32 %s145, 1
      %p149 = scmp.eq.s32.totalorder %s22, 1
      %p150 = scmp.ne.s32.totalorder %s145, %s147
      %p151 = scmp.eq.s32.totalorder %s22, 0
      %p152 = por %p150, %p151
      %p153 = scmp.ne.s32.totalorder %s145, %s147
      %p154 = scmp.eq.s32.totalorder %s27, 1
      %p155 = por %p153, %p154
      %p156 = scmp.ne.s32.totalorder %s147, %s148
      %p157 = scmp.eq.s32.totalorder %s27, 0
      %p158 = por %p156, %p157
      %p159 = scmp.ne.s32.totalorder %s147, %s148
      %p160 = scmp.eq.s32.totalorder %s28, 1
      %p161 = por %p159, %p160
      %p163 = scmp.ne.s32.totalorder %s148, %s162
      %p164 = scmp.eq.s32.totalorder %s28, 0
      %p165 = por %p163, %p164
      %s166 = ssub.s32 %s22, %s29
      %p167 = scmp.eq.s32.totalorder %s166, 0
      %s169 = sadd.s32 %s168, 1
      %s170 = scalar_select %p167, %s168, %s169
      %p173 = pneg %p167
      %p174 = scmp.eq.s32.totalorder %s22, 1
      %p175 = por %p173, %p174
      %p176 = scmp.ne.s32.totalorder %s168, %s171
      %p177 = scmp.eq.s32.totalorder %s22, 0
      %p178 = por %p176, %p177
      %p179 = scmp.ne.s32.totalorder %s168, %s171
      %p180 = scmp.eq.s32.totalorder %s27, 1
      %p181 = por %p179, %p180
      %p182 = scmp.ne.s32.totalorder %s171, %s172
      %p183 = scmp.eq.s32.totalorder %s27, 0
      %p184 = por %p182, %p183
      %p185 = scmp.ne.s32.totalorder %s171, %s172
      %p186 = scmp.eq.s32.totalorder %s28, 1
      %p187 = por %p185, %p186
      %p189 = scmp.ne.s32.totalorder %s172, %s188
      %p190 = scmp.eq.s32.totalorder %s28, 0
      %p191 = por %p189, %p190
      %p192 = scmp.le.s32.totalorder 1, %s22
      %p193 = scmp.lt.s32.totalorder %s22, 3
      %p194 = pnand %p192, %p193
      %p195 = pneg %p194
      // Predicated region
      $region9: #{tpu_custom_call.1} parent=5 // pred_check
        _
      $region10: #{tpu_custom_call.1} parent=5 // pred_check_branch
        %197 = sbr.rel (%p194) target = $region12
      $region11: #{tpu_custom_call.1} parent=5 // pred_region
        %s198 = ssub.s32 %s22, 1
        // Predicated region
        $region13: #{tpu_custom_call.1} parent=11 // pred_check
          %p199 = pneg %p95
        $region14: #{tpu_custom_call.1} parent=11 // pred_check_branch
          %201 = sbr.rel (%p199) target = $region16
        $region15: #{tpu_custom_call.1} parent=11 // pred_region
          %s203 = ssub.s32 1024, 1024
          %204 = vsyncadd [#allocation6], %s203
          %s205 = sshll.u32 [#allocation7], 4
          %s206 = int_to_ptr.vmem [resolvable:$true] %s205
          %211 = dma.hbm_to_vmem [thread:$0]  %s2, 1024, %s206, [#allocation6], 64, 64, 4
        $region16: #{tpu_custom_call.1} parent=11 // pred_fallthru
          _
        // Predicated region
        $region17: #{tpu_custom_call.1} parent=11 // pred_check
          %p212 = pneg %p116
        $region18: #{tpu_custom_call.1} parent=11 // pred_check_branch
          %214 = sbr.rel (%p212) target = $region20
        $region19: #{tpu_custom_call.1} parent=11 // pred_region
          _
        $region20: #{tpu_custom_call.1} parent=11 // pred_fallthru
          _
        // Predicated region
        $region21: #{tpu_custom_call.1} parent=11 // pred_check
          %p215 = pneg %p137
        $region22: #{tpu_custom_call.1} parent=11 // pred_check_branch
          %217 = sbr.rel (%p215) target = $region24
        $region23: #{tpu_custom_call.1} parent=11 // pred_region
          %s219 = ssub.s32 1024, 1024
          %220 = vsyncadd [#allocation9], %s219
          %s221 = sshll.u32 [#allocation8], 4
          %s222 = int_to_ptr.vmem [resolvable:$true] %s221
          %227 = dma.hbm_to_vmem [thread:$0]  %s4, 1024, %s222, [#allocation9], 64, 64, 4
        $region24: #{tpu_custom_call.1} parent=11 // pred_fallthru
          _
        // Predicated region
        $region25: #{tpu_custom_call.1} parent=11 // pred_check
          %p228 = pneg %p158
        $region26: #{tpu_custom_call.1} parent=11 // pred_check_branch
          %230 = sbr.rel (%p228) target = $region28
        $region27: #{tpu_custom_call.1} parent=11 // pred_region
          _
        $region28: #{tpu_custom_call.1} parent=11 // pred_fallthru
          _
      $region12: #{tpu_custom_call.1} parent=5 // pred_fallthru
        _
      %p231 = scmp.lt.s32.totalorder %s22, 2
      // Predicated region
      $region29: #{tpu_custom_call.1} parent=5 // pred_check
        %p232 = pneg %p231
      $region30: #{tpu_custom_call.1} parent=5 // pred_check_branch
        %234 = sbr.rel (%p232) target = $region32
      $region31: #{tpu_custom_call.1} parent=5 // pred_region
        // Predicated region
        $region33: #{tpu_custom_call.1} parent=31 // pred_check
          %p235 = pneg %p42
        $region34: #{tpu_custom_call.1} parent=31 // pred_check_branch
          %237 = sbr.rel (%p235) target = $region36
        $region35: #{tpu_custom_call.1} parent=31 // pred_region
          %s238 = sand.u32 %s32, 1
          %s239 = scalar_lea.sflag [#allocation3], %s238
          %s240 = sand.u32 %s32, 1
          %s241 = smul.addr %s240, 256
          %s242 = scalar_lea.vmem [#allocation2], %s241
          %s243 = smul.u32 64, %s22
          %s245 = ssub.s32 4096, 4096
          %246 = vsyncadd %s239, %s245
          %s247 = smul.addr %s243, 64
          %s248 = scalar_lea.hbm %s0, %s247
          %s249 = sshll.u32 %s242, 4
          %s250 = int_to_ptr.vmem [resolvable:$true] %s249
          %255 = dma.hbm_to_vmem [thread:$0]  %s248, 4096, %s250, %s239, 64, 64, 4
        $region36: #{tpu_custom_call.1} parent=31 // pred_fallthru
          _
        // Predicated region
        $region37: #{tpu_custom_call.1} parent=31 // pred_check
          %p256 = pneg %p68
        $region38: #{tpu_custom_call.1} parent=31 // pred_check_branch
          %258 = sbr.rel (%p256) target = $region40
        $region39: #{tpu_custom_call.1} parent=31 // pred_region
          %s259 = sand.u32 %s22, 1
          %s260 = scalar_lea.sflag [#allocation6], %s259
          %s261 = sand.u32 %s58, 1
          %s262 = smul.addr %s261, 512
          %s263 = scalar_lea.vmem [#allocation5], %s262
          %s264 = smul.u32 64, %s22
          %s266 = ssub.s32 8192, 8192
          %267 = vsyncadd %s260, %s266
          %s268 = smul.addr %s264, 128
          %s269 = scalar_lea.hbm %s1, %s268
          %s270 = sshll.u32 %s263, 4
          %s271 = int_to_ptr.vmem [resolvable:$true] %s270
          %276 = dma.hbm_to_vmem [thread:$0]  %s269, 8192, %s271, %s260, 128, 128, 8
        $region40: #{tpu_custom_call.1} parent=31 // pred_fallthru
          _
      $region32: #{tpu_custom_call.1} parent=5 // pred_fallthru
        _
      %p277 = scmp.le.s32.totalorder 1, %s22
      %p278 = scmp.lt.s32.totalorder %s22, 3
      %p279 = pnand %p277, %p278
      %p280 = pneg %p279
      // Predicated region
      $region41: #{tpu_custom_call.1} parent=5 // pred_check
        _
      $region42: #{tpu_custom_call.1} parent=5 // pred_check_branch
        %282 = sbr.rel (%p279) target = $region44
      $region43: #{tpu_custom_call.1} parent=5 // pred_region
        %s283 = ssub.s32 %s22, 1
        %s284 = sand.u32 %s35, 1
        %s285 = scalar_lea.sflag [#allocation3], %s284
        %s286 = sand.u32 %s35, 1
        %s287 = smul.addr %s286, 256
        %s288 = scalar_lea.vmem [#allocation2], %s287
        // Predicated region
        $region45: #{tpu_custom_call.1} parent=43 // pred_check
          %p289 = pneg %p48
        $region46: #{tpu_custom_call.1} parent=43 // pred_check_branch
          %291 = sbr.rel (%p289) target = $region48
        $region47: #{tpu_custom_call.1} parent=43 // pred_region
          %292 = dma.done %s285, 4096
        $region48: #{tpu_custom_call.1} parent=43 // pred_fallthru
          _
        %s293 = sand.u32 %s27, 1
        %s294 = scalar_lea.sflag [#allocation6], %s293
        %s295 = sand.u32 %s61, 1
        %s296 = smul.addr %s295, 512
        %s297 = scalar_lea.vmem [#allocation5], %s296
        // Predicated region
        $region49: #{tpu_custom_call.1} parent=43 // pred_check
          %p298 = pneg %p74
        $region50: #{tpu_custom_call.1} parent=43 // pred_check_branch
          %300 = sbr.rel (%p298) target = $region52
        $region51: #{tpu_custom_call.1} parent=43 // pred_region
          %301 = dma.done %s294, 8192
        $region52: #{tpu_custom_call.1} parent=43 // pred_fallthru
          _
        // Predicated region
        $region53: #{tpu_custom_call.1} parent=43 // pred_check
          %p302 = pneg %p95
        $region54: #{tpu_custom_call.1} parent=43 // pred_check_branch
          %304 = sbr.rel (%p302) target = $region56
        $region55: #{tpu_custom_call.1} parent=43 // pred_region
          %305 = dma.done [#allocation6], 1024
        $region56: #{tpu_custom_call.1} parent=43 // pred_fallthru
          _
        // Predicated region
        $region57: #{tpu_custom_call.1} parent=43 // pred_check
          %p306 = pneg %p137
        $region58: #{tpu_custom_call.1} parent=43 // pred_check_branch
          %308 = sbr.rel (%p306) target = $region60
        $region59: #{tpu_custom_call.1} parent=43 // pred_region
          %309 = dma.done [#allocation9], 1024
        $region60: #{tpu_custom_call.1} parent=43 // pred_fallthru
          _
        %s310 = sand.u32 %s35, 1
        %s311 = scalar_lea.sflag [#allocation3], %s310
        %s312 = sand.u32 %s35, 1
        %s313 = smul.addr %s312, 256
        %s314 = scalar_lea.vmem [#allocation2], %s313
        %p315 = pneg %p48
        %p316 = pneg %p45
        %s317 = sand.u32 %s27, 1
        %s318 = scalar_lea.sflag [#allocation6], %s317
        %s319 = sand.u32 %s61, 1
        %s320 = smul.addr %s319, 512
        %s321 = scalar_lea.vmem [#allocation5], %s320
        %p322 = pneg %p74
        %p323 = pneg %p71
        %p324 = pneg %p95
        %p325 = pneg %p92
        %p326 = pneg %p116
        %p327 = pneg %p113
        %p328 = pneg %p137
        %p329 = pneg %p134
        %p330 = pneg %p158
        %p331 = pneg %p155
        %p332 = pneg %p184
        %p333 = pneg %p181
        %s334 = sand.u32 %s171, 1
        %s335 = scalar_lea.sflag [#allocation4], %s334
        %s336 = sand.u32 %s171, 1
        %s337 = smul.addr %s336, 256
        %s338 = scalar_lea.vmem [#allocation10], %s337
        %s339 = smul.u32 64, %s27
        %s340 = smul.u32 64, %s27
        %s341 = smul.u32 64, %s27
        %v343 = vld [vmem:[%s288] sm:$0xf]
        %v344 = vld [vmem:[%s288 + $0x4] sm:$0xf]
        %v345 = vld [vmem:[%s288 + $0x8] sm:$0xf]
        %v346 = vld [vmem:[%s288 + $0xc] sm:$0xf]
        %v347 = vld [vmem:[%s288 + $0x10] sm:$0xf]
        %v348 = vld [vmem:[%s288 + $0x14] sm:$0xf]
        %v349 = vld [vmem:[%s288 + $0x18] sm:$0xf]
        %v350 = vld [vmem:[%s288 + $0x1c] sm:$0xf]
        %v351 = vld [vmem:[%s288 + $0x20] sm:$0xf]
        %v352 = vld [vmem:[%s288 + $0x24] sm:$0xf]
        %v353 = vld [vmem:[%s288 + $0x28] sm:$0xf]
        %v354 = vld [vmem:[%s288 + $0x2c] sm:$0xf]
        %v355 = vld [vmem:[%s288 + $0x30] sm:$0xf]
        %v356 = vld [vmem:[%s288 + $0x34] sm:$0xf]
        %v357 = vld [vmem:[%s288 + $0x38] sm:$0xf]
        %v358 = vld [vmem:[%s288 + $0x3c] sm:$0xf]
        %v359 = vld [vmem:[%s288 + $0x40] sm:$0xf]
        %v360 = vld [vmem:[%s288 + $0x44] sm:$0xf]
        %v361 = vld [vmem:[%s288 + $0x48] sm:$0xf]
        %v362 = vld [vmem:[%s288 + $0x4c] sm:$0xf]
        %v363 = vld [vmem:[%s288 + $0x50] sm:$0xf]
        %v364 = vld [vmem:[%s288 + $0x54] sm:$0xf]
        %v365 = vld [vmem:[%s288 + $0x58] sm:$0xf]
        %v366 = vld [vmem:[%s288 + $0x5c] sm:$0xf]
        %v367 = vld [vmem:[%s288 + $0x60] sm:$0xf]
        %v368 = vld [vmem:[%s288 + $0x64] sm:$0xf]
        %v369 = vld [vmem:[%s288 + $0x68] sm:$0xf]
        %v370 = vld [vmem:[%s288 + $0x6c] sm:$0xf]
        %v371 = vld [vmem:[%s288 + $0x70] sm:$0xf]
        %v372 = vld [vmem:[%s288 + $0x74] sm:$0xf]
        %v373 = vld [vmem:[%s288 + $0x78] sm:$0xf]
        %v374 = vld [vmem:[%s288 + $0x7c] sm:$0xf]
        %v375 = vld [vmem:[%s288 + $0x80] sm:$0xf]
        %v376 = vld [vmem:[%s288 + $0x84] sm:$0xf]
        %v377 = vld [vmem:[%s288 + $0x88] sm:$0xf]
        %v378 = vld [vmem:[%s288 + $0x8c] sm:$0xf]
        %v379 = vld [vmem:[%s288 + $0x90] sm:$0xf]
        %v380 = vld [vmem:[%s288 + $0x94] sm:$0xf]
        %v381 = vld [vmem:[%s288 + $0x98] sm:$0xf]
        %v382 = vld [vmem:[%s288 + $0x9c] sm:$0xf]
        %v383 = vld [vmem:[%s288 + $0xa0] sm:$0xf]
        %v384 = vld [vmem:[%s288 + $0xa4] sm:$0xf]
        %v385 = vld [vmem:[%s288 + $0xa8] sm:$0xf]
        %v386 = vld [vmem:[%s288 + $0xac] sm:$0xf]
        %v387 = vld [vmem:[%s288 + $0xb0] sm:$0xf]
        %v388 = vld [vmem:[%s288 + $0xb4] sm:$0xf]
        %v389 = vld [vmem:[%s288 + $0xb8] sm:$0xf]
        %v390 = vld [vmem:[%s288 + $0xbc] sm:$0xf]
        %v391 = vld [vmem:[%s288 + $0xc0] sm:$0xf]
        %v392 = vld [vmem:[%s288 + $0xc4] sm:$0xf]
        %v393 = vld [vmem:[%s288 + $0xc8] sm:$0xf]
        %v394 = vld [vmem:[%s288 + $0xcc] sm:$0xf]
        %v395 = vld [vmem:[%s288 + $0xd0] sm:$0xf]
        %v396 = vld [vmem:[%s288 + $0xd4] sm:$0xf]
        %v397 = vld [vmem:[%s288 + $0xd8] sm:$0xf]
        %v398 = vld [vmem:[%s288 + $0xdc] sm:$0xf]
        %v399 = vld [vmem:[%s288 + $0xe0] sm:$0xf]
        %v400 = vld [vmem:[%s288 + $0xe4] sm:$0xf]
        %v401 = vld [vmem:[%s288 + $0xe8] sm:$0xf]
        %v402 = vld [vmem:[%s288 + $0xec] sm:$0xf]
        %v403 = vld [vmem:[%s288 + $0xf0] sm:$0xf]
        %v404 = vld [vmem:[%s288 + $0xf4] sm:$0xf]
        %v405 = vld [vmem:[%s288 + $0xf8] sm:$0xf]
        %v406 = vld [vmem:[%s288 + $0xfc] sm:$0xf]
        %v407 = vld [vmem:[#allocation7] sm:$0xf]
        %v408 = vld [vmem:[#allocation7 + $0x4] sm:$0xf]
        %v409 = vld [vmem:[#allocation7 + $0x8] sm:$0xf]
        %v410 = vld [vmem:[#allocation7 + $0xc] sm:$0xf]
        %v411 = vld [vmem:[#allocation7 + $0x10] sm:$0xf]
        %v412 = vld [vmem:[#allocation7 + $0x14] sm:$0xf]
        %v413 = vld [vmem:[#allocation7 + $0x18] sm:$0xf]
        %v414 = vld [vmem:[#allocation7 + $0x1c] sm:$0xf]
        %v415 = vld [vmem:[#allocation7 + $0x20] sm:$0xf]
        %v416 = vld [vmem:[#allocation7 + $0x24] sm:$0xf]
        %v417 = vld [vmem:[#allocation7 + $0x28] sm:$0xf]
        %v418 = vld [vmem:[#allocation7 + $0x2c] sm:$0xf]
        %v419 = vld [vmem:[#allocation7 + $0x30] sm:$0xf]
        %v420 = vld [vmem:[#allocation7 + $0x34] sm:$0xf]
        %v421 = vld [vmem:[#allocation7 + $0x38] sm:$0xf]
        %v422 = vld [vmem:[#allocation7 + $0x3c] sm:$0xf]
        %v423 = vld [vmem:[%s3] sm:$0x1]
        %v425 = vlaneseq
        %v426 = vshrl.u32 %v425, 7
        %v427 = vsub.s32 0, %v426
        %v428 = vrot.slane %v423, %v427
        %v494 = vunpack.c.l.b16 %v343
        %v495 = vunpack.c.l.b16 %v344
        %v496 = vunpack.c.l.b16 %v345
        %v497 = vunpack.c.l.b16 %v346
        %v498 = vunpack.c.l.b16 %v347
        %v499 = vunpack.c.l.b16 %v348
        %v500 = vunpack.c.l.b16 %v349
        %v501 = vunpack.c.l.b16 %v350
        %v502 = vunpack.c.l.b16 %v351
        %v503 = vunpack.c.l.b16 %v352
        %v504 = vunpack.c.l.b16 %v353
        %v505 = vunpack.c.l.b16 %v354
        %v506 = vunpack.c.l.b16 %v355
        %v507 = vunpack.c.l.b16 %v356
        %v508 = vunpack.c.l.b16 %v357
        %v509 = vunpack.c.l.b16 %v358
        %v510 = vunpack.c.l.b16 %v359
        %v511 = vunpack.c.l.b16 %v360
        %v512 = vunpack.c.l.b16 %v361
        %v513 = vunpack.c.l.b16 %v362
        %v514 = vunpack.c.l.b16 %v363
        %v515 = vunpack.c.l.b16 %v364
        %v516 = vunpack.c.l.b16 %v365
        %v517 = vunpack.c.l.b16 %v366
        %v518 = vunpack.c.l.b16 %v367
        %v519 = vunpack.c.l.b16 %v368
        %v520 = vunpack.c.l.b16 %v369
        %v521 = vunpack.c.l.b16 %v370
        %v522 = vunpack.c.l.b16 %v371
        %v523 = vunpack.c.l.b16 %v372
        %v524 = vunpack.c.l.b16 %v373
        %v525 = vunpack.c.l.b16 %v374
        %v526 = vunpack.c.l.b16 %v375
        %v527 = vunpack.c.l.b16 %v376
        %v528 = vunpack.c.l.b16 %v377
        %v529 = vunpack.c.l.b16 %v378
        %v530 = vunpack.c.l.b16 %v379
        %v531 = vunpack.c.l.b16 %v380
        %v532 = vunpack.c.l.b16 %v381
        %v533 = vunpack.c.l.b16 %v382
        %v534 = vunpack.c.l.b16 %v383
        %v535 = vunpack.c.l.b16 %v384
        %v536 = vunpack.c.l.b16 %v385
        %v537 = vunpack.c.l.b16 %v386
        %v538 = vunpack.c.l.b16 %v387
        %v539 = vunpack.c.l.b16 %v388
        %v540 = vunpack.c.l.b16 %v389
        %v541 = vunpack.c.l.b16 %v390
        %v542 = vunpack.c.l.b16 %v391
        %v543 = vunpack.c.l.b16 %v392
        %v544 = vunpack.c.l.b16 %v393
        %v545 = vunpack.c.l.b16 %v394
        %v546 = vunpack.c.l.b16 %v395
        %v547 = vunpack.c.l.b16 %v396
        %v548 = vunpack.c.l.b16 %v397
        %v549 = vunpack.c.l.b16 %v398
        %v550 = vunpack.c.l.b16 %v399
        %v551 = vunpack.c.l.b16 %v400
        %v552 = vunpack.c.l.b16 %v401
        %v553 = vunpack.c.l.b16 %v402
        %v554 = vunpack.c.l.b16 %v403
        %v555 = vunpack.c.l.b16 %v404
        %v556 = vunpack.c.l.b16 %v405
        %v557 = vunpack.c.l.b16 %v406
        %v558 = vpack.c.b16 %v495, %v494
        %v559 = vpack.c.b16 %v497, %v496
        %v560 = vpack.c.b16 %v499, %v498
        %v561 = vpack.c.b16 %v501, %v500
        %v562 = vpack.c.b16 %v503, %v502
        %v563 = vpack.c.b16 %v505, %v504
        %v564 = vpack.c.b16 %v507, %v506
        %v565 = vpack.c.b16 %v509, %v508
        %v566 = vpack.c.b16 %v511, %v510
        %v567 = vpack.c.b16 %v513, %v512
        %v568 = vpack.c.b16 %v515, %v514
        %v569 = vpack.c.b16 %v517, %v516
        %v570 = vpack.c.b16 %v519, %v518
        %v571 = vpack.c.b16 %v521, %v520
        %v572 = vpack.c.b16 %v523, %v522
        %v573 = vpack.c.b16 %v525, %v524
        %v574 = vpack.c.b16 %v527, %v526
        %v575 = vpack.c.b16 %v529, %v528
        %v576 = vpack.c.b16 %v531, %v530
        %v577 = vpack.c.b16 %v533, %v532
        %v578 = vpack.c.b16 %v535, %v534
        %v579 = vpack.c.b16 %v537, %v536
        %v580 = vpack.c.b16 %v539, %v538
        %v581 = vpack.c.b16 %v541, %v540
        %v582 = vpack.c.b16 %v543, %v542
        %v583 = vpack.c.b16 %v545, %v544
        %v584 = vpack.c.b16 %v547, %v546
        %v585 = vpack.c.b16 %v549, %v548
        %v586 = vpack.c.b16 %v551, %v550
        %v587 = vpack.c.b16 %v553, %v552
        %v588 = vpack.c.b16 %v555, %v554
        %v589 = vpack.c.b16 %v557, %v556
        %v638 = vunpack.c.l.b16 %v407
        %v639 = vunpack.c.l.b16 %v408
        %v640 = vunpack.c.l.b16 %v409
        %v641 = vunpack.c.l.b16 %v410
        %v642 = vunpack.c.l.b16 %v411
        %v643 = vunpack.c.l.b16 %v412
        %v644 = vunpack.c.l.b16 %v413
        %v645 = vunpack.c.l.b16 %v414
        %v646 = vunpack.c.l.b16 %v415
        %v647 = vunpack.c.l.b16 %v416
        %v648 = vunpack.c.l.b16 %v417
        %v649 = vunpack.c.l.b16 %v418
        %v650 = vunpack.c.l.b16 %v419
        %v651 = vunpack.c.l.b16 %v420
        %v652 = vunpack.c.l.b16 %v421
        %v653 = vunpack.c.l.b16 %v422
        %v654 = vpack.c.b16 %v639, %v638
        %v655 = vpack.c.b16 %v641, %v640
        %v656 = vpack.c.b16 %v643, %v642
        %v657 = vpack.c.b16 %v645, %v644
        %v658 = vpack.c.b16 %v647, %v646
        %v659 = vpack.c.b16 %v649, %v648
        %v660 = vpack.c.b16 %v651, %v650
        %v661 = vpack.c.b16 %v653, %v652
        %670 = vmatprep.subr.bf16.mxu0 0
        %671 = vmatpush1.bf16.msra.mxu0 %v661
        %672 = vmatprep.subr.bf16.mxu0 0
        %673 = vmatpush1.bf16.msra.mxu0 %v660
        %674 = vmatprep.subr.bf16.mxu0 0
        %675 = vmatpush1.bf16.msra.mxu0 %v659
        %676 = vmatprep.subr.bf16.mxu0 0
        %677 = vmatpush1.bf16.msra.mxu0 %v658
        %678 = vmatprep.subr.bf16.mxu0 0
        %679 = vmatpush1.bf16.msra.mxu0 %v657
        %680 = vmatprep.subr.bf16.mxu0 0
        %681 = vmatpush1.bf16.msra.mxu0 %v656
        %682 = vmatprep.subr.bf16.mxu0 0
        %683 = vmatpush1.bf16.msra.mxu0 %v655
        %684 = vmatprep.subr.bf16.mxu0 0
        %685 = vmatpush1.bf16.msra.mxu0 %v654
        %686 = vmatprep.subr.bf16.mxu0 0
        %687 = vmatpush2.bf16.msra.mxu0 0
        %688 = vmatprep.subr.bf16.mxu0 0
        %689 = vmatpush2.bf16.msra.mxu0 0
        %690 = vmatprep.subr.bf16.mxu0 0
        %691 = vmatpush2.bf16.msra.mxu0 0
        %692 = vmatprep.subr.bf16.mxu0 0
        %693 = vmatpush2.bf16.msra.mxu0 0
        %694 = vmatprep.subr.bf16.mxu0 0
        %695 = vmatpush2.bf16.msra.mxu0 0
        %696 = vmatprep.subr.bf16.mxu0 0
        %697 = vmatpush2.bf16.msra.mxu0 0
        %698 = vmatprep.subr.bf16.mxu0 0
        %699 = vmatpush2.bf16.msra.mxu0 0
        %700 = vmatprep.subr.bf16.mxu0 0
        %701 = vmatpush2.bf16.msra.mxu0 0
        %702 = vmatprep.mubr.bf16.mxu0 0
        %703 = vmatmul.mubr.bf16.gmra.mxu0 %v558
        %v704 = vpop.f32.mrf.mxu0
        %v705 = vadd.f32 %v428, %v704
        %v706 = vpop.f32.mrf.mxu0
        %v707 = vpop.f32.mrf.mxu0
        %v708 = vadd.f32 %v428, %v707
        %v709 = vpop.f32.mrf.mxu0
        %710 = vmatprep.mubr.bf16.mxu0 0
        %711 = vmatmul.mubr.bf16.gmra.mxu0 %v559
        %v712 = vpop.f32.mrf.mxu0
        %v713 = vadd.f32 %v428, %v712
        %v714 = vpop.f32.mrf.mxu0
        %v715 = vpop.f32.mrf.mxu0
        %v716 = vadd.f32 %v428, %v715
        %v717 = vpop.f32.mrf.mxu0
        %718 = vmatprep.mubr.bf16.mxu0 0
        %719 = vmatmul.mubr.bf16.gmra.mxu0 %v560
        %v720 = vpop.f32.mrf.mxu0
        %v721 = vadd.f32 %v428, %v720
        %v722 = vpop.f32.mrf.mxu0
        %v723 = vpop.f32.mrf.mxu0
        %v724 = vadd.f32 %v428, %v723
        %v725 = vpop.f32.mrf.mxu0
        %726 = vmatprep.mubr.bf16.mxu0 0
        %727 = vmatmul.mubr.bf16.gmra.mxu0 %v561
        %v728 = vpop.f32.mrf.mxu0
        %v729 = vadd.f32 %v428, %v728
        %v730 = vpop.f32.mrf.mxu0
        %v731 = vpop.f32.mrf.mxu0
        %v732 = vadd.f32 %v428, %v731
        %v733 = vpop.f32.mrf.mxu0
        %734 = vmatprep.mubr.bf16.mxu0 0
        %735 = vmatmul.mubr.bf16.gmra.mxu0 %v562
        %v736 = vpop.f32.mrf.mxu0
        %v737 = vadd.f32 %v428, %v736
        %v738 = vpop.f32.mrf.mxu0
        %v739 = vpop.f32.mrf.mxu0
        %v740 = vadd.f32 %v428, %v739
        %v741 = vpop.f32.mrf.mxu0
        %742 = vmatprep.mubr.bf16.mxu0 0
        %743 = vmatmul.mubr.bf16.gmra.mxu0 %v563
        %v744 = vpop.f32.mrf.mxu0
        %v745 = vadd.f32 %v428, %v744
        %v746 = vpop.f32.mrf.mxu0
        %v747 = vpop.f32.mrf.mxu0
        %v748 = vadd.f32 %v428, %v747
        %v749 = vpop.f32.mrf.mxu0
        %750 = vmatprep.mubr.bf16.mxu0 0
        %751 = vmatmul.mubr.bf16.gmra.mxu0 %v564
        %v752 = vpop.f32.mrf.mxu0
        %v753 = vadd.f32 %v428, %v752
        %v754 = vpop.f32.mrf.mxu0
        %v755 = vpop.f32.mrf.mxu0
        %v756 = vadd.f32 %v428, %v755
        %v757 = vpop.f32.mrf.mxu0
        %758 = vmatprep.mubr.bf16.mxu0 0
        %759 = vmatmul.mubr.bf16.gmra.mxu0 %v565
        %v760 = vpop.f32.mrf.mxu0
        %v761 = vadd.f32 %v428, %v760
        %v762 = vpop.f32.mrf.mxu0
        %v763 = vpop.f32.mrf.mxu0
        %v764 = vadd.f32 %v428, %v763
        %v765 = vpop.f32.mrf.mxu0
        %766 = vmatprep.mubr.bf16.mxu0 0
        %767 = vmatmul.mubr.bf16.gmra.mxu0 %v566
        %v768 = vpop.f32.mrf.mxu0
        %v769 = vadd.f32 %v428, %v768
        %v770 = vpop.f32.mrf.mxu0
        %v771 = vpop.f32.mrf.mxu0
        %v772 = vadd.f32 %v428, %v771
        %v773 = vpop.f32.mrf.mxu0
        %774 = vmatprep.mubr.bf16.mxu0 0
        %775 = vmatmul.mubr.bf16.gmra.mxu0 %v567
        %v776 = vpop.f32.mrf.mxu0
        %v777 = vadd.f32 %v428, %v776
        %v778 = vpop.f32.mrf.mxu0
        %v779 = vpop.f32.mrf.mxu0
        %v780 = vadd.f32 %v428, %v779
        %v781 = vpop.f32.mrf.mxu0
        %782 = vmatprep.mubr.bf16.mxu0 0
        %783 = vmatmul.mubr.bf16.gmra.mxu0 %v568
        %v784 = vpop.f32.mrf.mxu0
        %v785 = vadd.f32 %v428, %v784
        %v786 = vpop.f32.mrf.mxu0
        %v787 = vpop.f32.mrf.mxu0
        %v788 = vadd.f32 %v428, %v787
        %v789 = vpop.f32.mrf.mxu0
        %790 = vmatprep.mubr.bf16.mxu0 0
        %791 = vmatmul.mubr.bf16.gmra.mxu0 %v569
        %v792 = vpop.f32.mrf.mxu0
        %v793 = vadd.f32 %v428, %v792
        %v794 = vpop.f32.mrf.mxu0
        %v795 = vpop.f32.mrf.mxu0
        %v796 = vadd.f32 %v428, %v795
        %v797 = vpop.f32.mrf.mxu0
        %798 = vmatprep.mubr.bf16.mxu0 0
        %799 = vmatmul.mubr.bf16.gmra.mxu0 %v570
        %v800 = vpop.f32.mrf.mxu0
        %v801 = vadd.f32 %v428, %v800
        %v802 = vpop.f32.mrf.mxu0
        %v803 = vpop.f32.mrf.mxu0
        %v804 = vadd.f32 %v428, %v803
        %v805 = vpop.f32.mrf.mxu0
        %806 = vmatprep.mubr.bf16.mxu0 0
        %807 = vmatmul.mubr.bf16.gmra.mxu0 %v571
        %v808 = vpop.f32.mrf.mxu0
        %v809 = vadd.f32 %v428, %v808
        %v810 = vpop.f32.mrf.mxu0
        %v811 = vpop.f32.mrf.mxu0
        %v812 = vadd.f32 %v428, %v811
        %v813 = vpop.f32.mrf.mxu0
        %814 = vmatprep.mubr.bf16.mxu0 0
        %815 = vmatmul.mubr.bf16.gmra.mxu0 %v572
        %v816 = vpop.f32.mrf.mxu0
        %v817 = vadd.f32 %v428, %v816
        %v818 = vpop.f32.mrf.mxu0
        %v819 = vpop.f32.mrf.mxu0
        %v820 = vadd.f32 %v428, %v819
        %v821 = vpop.f32.mrf.mxu0
        %822 = vmatprep.mubr.bf16.mxu0 0
        %823 = vmatmul.mubr.bf16.gmra.mxu0 %v573
        %v824 = vpop.f32.mrf.mxu0
        %v825 = vadd.f32 %v428, %v824
        %v826 = vpop.f32.mrf.mxu0
        %v827 = vpop.f32.mrf.mxu0
        %v828 = vadd.f32 %v428, %v827
        %v829 = vpop.f32.mrf.mxu0
        %830 = vmatprep.mubr.bf16.mxu0 0
        %831 = vmatmul.mubr.bf16.gmra.mxu0 %v574
        %v832 = vpop.f32.mrf.mxu0
        %v833 = vadd.f32 %v428, %v832
        %v834 = vpop.f32.mrf.mxu0
        %v835 = vpop.f32.mrf.mxu0
        %v836 = vadd.f32 %v428, %v835
        %v837 = vpop.f32.mrf.mxu0
        %838 = vmatprep.mubr.bf16.mxu0 0
        %839 = vmatmul.mubr.bf16.gmra.mxu0 %v575
        %v840 = vpop.f32.mrf.mxu0
        %v841 = vadd.f32 %v428, %v840
        %v842 = vpop.f32.mrf.mxu0
        %v843 = vpop.f32.mrf.mxu0
        %v844 = vadd.f32 %v428, %v843
        %v845 = vpop.f32.mrf.mxu0
        %846 = vmatprep.mubr.bf16.mxu0 0
        %847 = vmatmul.mubr.bf16.gmra.mxu0 %v576
        %v848 = vpop.f32.mrf.mxu0
        %v849 = vadd.f32 %v428, %v848
        %v850 = vpop.f32.mrf.mxu0
        %v851 = vpop.f32.mrf.mxu0
        %v852 = vadd.f32 %v428, %v851
        %v853 = vpop.f32.mrf.mxu0
        %854 = vmatprep.mubr.bf16.mxu0 0
        %855 = vmatmul.mubr.bf16.gmra.mxu0 %v577
        %v856 = vpop.f32.mrf.mxu0
        %v857 = vadd.f32 %v428, %v856
        %v858 = vpop.f32.mrf.mxu0
        %v859 = vpop.f32.mrf.mxu0
        %v860 = vadd.f32 %v428, %v859
        %v861 = vpop.f32.mrf.mxu0
        %862 = vmatprep.mubr.bf16.mxu0 0
        %863 = vmatmul.mubr.bf16.gmra.mxu0 %v578
        %v864 = vpop.f32.mrf.mxu0
        %v865 = vadd.f32 %v428, %v864
        %v866 = vpop.f32.mrf.mxu0
        %v867 = vpop.f32.mrf.mxu0
        %v868 = vadd.f32 %v428, %v867
        %v869 = vpop.f32.mrf.mxu0
        %870 = vmatprep.mubr.bf16.mxu0 0
        %871 = vmatmul.mubr.bf16.gmra.mxu0 %v579
        %v872 = vpop.f32.mrf.mxu0
        %v873 = vadd.f32 %v428, %v872
        %v874 = vpop.f32.mrf.mxu0
        %v875 = vpop.f32.mrf.mxu0
        %v876 = vadd.f32 %v428, %v875
        %v877 = vpop.f32.mrf.mxu0
        %878 = vmatprep.mubr.bf16.mxu0 0
        %879 = vmatmul.mubr.bf16.gmra.mxu0 %v580
        %v880 = vpop.f32.mrf.mxu0
        %v881 = vadd.f32 %v428, %v880
        %v882 = vpop.f32.mrf.mxu0
        %v883 = vpop.f32.mrf.mxu0
        %v884 = vadd.f32 %v428, %v883
        %v885 = vpop.f32.mrf.mxu0
        %886 = vmatprep.mubr.bf16.mxu0 0
        %887 = vmatmul.mubr.bf16.gmra.mxu0 %v581
        %v888 = vpop.f32.mrf.mxu0
        %v889 = vadd.f32 %v428, %v888
        %v890 = vpop.f32.mrf.mxu0
        %v891 = vpop.f32.mrf.mxu0
        %v892 = vadd.f32 %v428, %v891
        %v893 = vpop.f32.mrf.mxu0
        %894 = vmatprep.mubr.bf16.mxu0 0
        %895 = vmatmul.mubr.bf16.gmra.mxu0 %v582
        %v896 = vpop.f32.mrf.mxu0
        %v897 = vadd.f32 %v428, %v896
        %v898 = vpop.f32.mrf.mxu0
        %v899 = vpop.f32.mrf.mxu0
        %v900 = vadd.f32 %v428, %v899
        %v901 = vpop.f32.mrf.mxu0
        %902 = vmatprep.mubr.bf16.mxu0 0
        %903 = vmatmul.mubr.bf16.gmra.mxu0 %v583
        %v904 = vpop.f32.mrf.mxu0
        %v905 = vadd.f32 %v428, %v904
        %v906 = vpop.f32.mrf.mxu0
        %v907 = vpop.f32.mrf.mxu0
        %v908 = vadd.f32 %v428, %v907
        %v909 = vpop.f32.mrf.mxu0
        %910 = vmatprep.mubr.bf16.mxu0 0
        %911 = vmatmul.mubr.bf16.gmra.mxu0 %v584
        %v912 = vpop.f32.mrf.mxu0
        %v913 = vadd.f32 %v428, %v912
        %v914 = vpop.f32.mrf.mxu0
        %v915 = vpop.f32.mrf.mxu0
        %v916 = vadd.f32 %v428, %v915
        %v917 = vpop.f32.mrf.mxu0
        %918 = vmatprep.mubr.bf16.mxu0 0
        %919 = vmatmul.mubr.bf16.gmra.mxu0 %v585
        %v920 = vpop.f32.mrf.mxu0
        %v921 = vadd.f32 %v428, %v920
        %v922 = vpop.f32.mrf.mxu0
        %v923 = vpop.f32.mrf.mxu0
        %v924 = vadd.f32 %v428, %v923
        %v925 = vpop.f32.mrf.mxu0
        %926 = vmatprep.mubr.bf16.mxu0 0
        %927 = vmatmul.mubr.bf16.gmra.mxu0 %v586
        %v928 = vpop.f32.mrf.mxu0
        %v929 = vadd.f32 %v428, %v928
        %v930 = vpop.f32.mrf.mxu0
        %v931 = vpop.f32.mrf.mxu0
        %v932 = vadd.f32 %v428, %v931
        %v933 = vpop.f32.mrf.mxu0
        %934 = vmatprep.mubr.bf16.mxu0 0
        %935 = vmatmul.mubr.bf16.gmra.mxu0 %v587
        %v936 = vpop.f32.mrf.mxu0
        %v937 = vadd.f32 %v428, %v936
        %v938 = vpop.f32.mrf.mxu0
        %v939 = vpop.f32.mrf.mxu0
        %v940 = vadd.f32 %v428, %v939
        %v941 = vpop.f32.mrf.mxu0
        %942 = vmatprep.mubr.bf16.mxu0 0
        %943 = vmatmul.mubr.bf16.gmra.mxu0 %v588
        %v944 = vpop.f32.mrf.mxu0
        %v945 = vadd.f32 %v428, %v944
        %v946 = vpop.f32.mrf.mxu0
        %v947 = vpop.f32.mrf.mxu0
        %v948 = vadd.f32 %v428, %v947
        %v949 = vpop.f32.mrf.mxu0
        %950 = vmatprep.mubr.bf16.mxu0 0
        %951 = vmatmul.mubr.bf16.gmra.mxu0 %v589
        %v952 = vpop.f32.mrf.mxu0
        %v953 = vadd.f32 %v428, %v952
        %v954 = vpop.f32.mrf.mxu0
        %v955 = vpop.f32.mrf.mxu0
        %v956 = vadd.f32 %v428, %v955
        %v957 = vpop.f32.mrf.mxu0
        %958 = vdwg.mxu0
        %v959 = vmax.f32 %v705, 0.0
        %v960 = vmax.f32 %v708, 0.0
        %v961 = vmax.f32 %v713, 0.0
        %v962 = vmax.f32 %v716, 0.0
        %v963 = vmax.f32 %v721, 0.0
        %v964 = vmax.f32 %v724, 0.0
        %v965 = vmax.f32 %v729, 0.0
        %v966 = vmax.f32 %v732, 0.0
        %v967 = vmax.f32 %v737, 0.0
        %v968 = vmax.f32 %v740, 0.0
        %v969 = vmax.f32 %v745, 0.0
        %v970 = vmax.f32 %v748, 0.0
        %v971 = vmax.f32 %v753, 0.0
        %v972 = vmax.f32 %v756, 0.0
        %v973 = vmax.f32 %v761, 0.0
        %v974 = vmax.f32 %v764, 0.0
        %v975 = vmax.f32 %v769, 0.0
        %v976 = vmax.f32 %v772, 0.0
        %v977 = vmax.f32 %v777, 0.0
        %v978 = vmax.f32 %v780, 0.0
        %v979 = vmax.f32 %v785, 0.0
        %v980 = vmax.f32 %v788, 0.0
        %v981 = vmax.f32 %v793, 0.0
        %v982 = vmax.f32 %v796, 0.0
        %v983 = vmax.f32 %v801, 0.0
        %v984 = vmax.f32 %v804, 0.0
        %v985 = vmax.f32 %v809, 0.0
        %v986 = vmax.f32 %v812, 0.0
        %v987 = vmax.f32 %v817, 0.0
        %v988 = vmax.f32 %v820, 0.0
        %v989 = vmax.f32 %v825, 0.0
        %v990 = vmax.f32 %v828, 0.0
        %v991 = vmax.f32 %v833, 0.0
        %v992 = vmax.f32 %v836, 0.0
        %v993 = vmax.f32 %v841, 0.0
        %v994 = vmax.f32 %v844, 0.0
        %v995 = vmax.f32 %v849, 0.0
        %v996 = vmax.f32 %v852, 0.0
        %v997 = vmax.f32 %v857, 0.0
        %v998 = vmax.f32 %v860, 0.0
        %v999 = vmax.f32 %v865, 0.0
        %v1000 = vmax.f32 %v868, 0.0
        %v1001 = vmax.f32 %v873, 0.0
        %v1002 = vmax.f32 %v876, 0.0
        %v1003 = vmax.f32 %v881, 0.0
        %v1004 = vmax.f32 %v884, 0.0
        %v1005 = vmax.f32 %v889, 0.0
        %v1006 = vmax.f32 %v892, 0.0
        %v1007 = vmax.f32 %v897, 0.0
        %v1008 = vmax.f32 %v900, 0.0
        %v1009 = vmax.f32 %v905, 0.0
        %v1010 = vmax.f32 %v908, 0.0
        %v1011 = vmax.f32 %v913, 0.0
        %v1012 = vmax.f32 %v916, 0.0
        %v1013 = vmax.f32 %v921, 0.0
        %v1014 = vmax.f32 %v924, 0.0
        %v1015 = vmax.f32 %v929, 0.0
        %v1016 = vmax.f32 %v932, 0.0
        %v1017 = vmax.f32 %v937, 0.0
        %v1018 = vmax.f32 %v940, 0.0
        %v1019 = vmax.f32 %v945, 0.0
        %v1020 = vmax.f32 %v948, 0.0
        %v1021 = vmax.f32 %v953, 0.0
        %v1022 = vmax.f32 %v956, 0.0
        %v1023 = vand.u32 2147483647, %v705
        %v1024 = vand.u32 2147483647, %v708
        %v1025 = vand.u32 2147483647, %v713
        %v1026 = vand.u32 2147483647, %v716
        %v1027 = vand.u32 2147483647, %v721
        %v1028 = vand.u32 2147483647, %v724
        %v1029 = vand.u32 2147483647, %v729
        %v1030 = vand.u32 2147483647, %v732
        %v1031 = vand.u32 2147483647, %v737
        %v1032 = vand.u32 2147483647, %v740
        %v1033 = vand.u32 2147483647, %v745
        %v1034 = vand.u32 2147483647, %v748
        %v1035 = vand.u32 2147483647, %v753
        %v1036 = vand.u32 2147483647, %v756
        %v1037 = vand.u32 2147483647, %v761
        %v1038 = vand.u32 2147483647, %v764
        %v1039 = vand.u32 2147483647, %v769
        %v1040 = vand.u32 2147483647, %v772
        %v1041 = vand.u32 2147483647, %v777
        %v1042 = vand.u32 2147483647, %v780
        %v1043 = vand.u32 2147483647, %v785
        %v1044 = vand.u32 2147483647, %v788
        %v1045 = vand.u32 2147483647, %v793
        %v1046 = vand.u32 2147483647, %v796
        %v1047 = vand.u32 2147483647, %v801
        %v1048 = vand.u32 2147483647, %v804
        %v1049 = vand.u32 2147483647, %v809
        %v1050 = vand.u32 2147483647, %v812
        %v1051 = vand.u32 2147483647, %v817
        %v1052 = vand.u32 2147483647, %v820
        %v1053 = vand.u32 2147483647, %v825
        %v1054 = vand.u32 2147483647, %v828
        %v1055 = vand.u32 2147483647, %v833
        %v1056 = vand.u32 2147483647, %v836
        %v1057 = vand.u32 2147483647, %v841
        %v1058 = vand.u32 2147483647, %v844
        %v1059 = vand.u32 2147483647, %v849
        %v1060 = vand.u32 2147483647, %v852
        %v1061 = vand.u32 2147483647, %v857
        %v1062 = vand.u32 2147483647, %v860
        %v1063 = vand.u32 2147483647, %v865
        %v1064 = vand.u32 2147483647, %v868
        %v1065 = vand.u32 2147483647, %v873
        %v1066 = vand.u32 2147483647, %v876
        %v1067 = vand.u32 2147483647, %v881
        %v1068 = vand.u32 2147483647, %v884
        %v1069 = vand.u32 2147483647, %v889
        %v1070 = vand.u32 2147483647, %v892
        %v1071 = vand.u32 2147483647, %v897
        %v1072 = vand.u32 2147483647, %v900
        %v1073 = vand.u32 2147483647, %v905
        %v1074 = vand.u32 2147483647, %v908
        %v1075 = vand.u32 2147483647, %v913
        %v1076 = vand.u32 2147483647, %v916
        %v1077 = vand.u32 2147483647, %v921
        %v1078 = vand.u32 2147483647, %v924
        %v1079 = vand.u32 2147483647, %v929
        %v1080 = vand.u32 2147483647, %v932
        %v1081 = vand.u32 2147483647, %v937
        %v1082 = vand.u32 2147483647, %v940
        %v1083 = vand.u32 2147483647, %v945
        %v1084 = vand.u32 2147483647, %v948
        %v1085 = vand.u32 2147483647, %v953
        %v1086 = vand.u32 2147483647, %v956
        %v1087 = vsub.f32 0.0, %v1023
        %v1088 = vsub.f32 0.0, %v1024
        %v1089 = vsub.f32 0.0, %v1025
        %v1090 = vsub.f32 0.0, %v1026
        %v1091 = vsub.f32 0.0, %v1027
        %v1092 = vsub.f32 0.0, %v1028
        %v1093 = vsub.f32 0.0, %v1029
        %v1094 = vsub.f32 0.0, %v1030
        %v1095 = vsub.f32 0.0, %v1031
        %v1096 = vsub.f32 0.0, %v1032
        %v1097 = vsub.f32 0.0, %v1033
        %v1098 = vsub.f32 0.0, %v1034
        %v1099 = vsub.f32 0.0, %v1035
        %v1100 = vsub.f32 0.0, %v1036
        %v1101 = vsub.f32 0.0, %v1037
        %v1102 = vsub.f32 0.0, %v1038
        %v1103 = vsub.f32 0.0, %v1039
        %v1104 = vsub.f32 0.0, %v1040
        %v1105 = vsub.f32 0.0, %v1041
        %v1106 = vsub.f32 0.0, %v1042
        %v1107 = vsub.f32 0.0, %v1043
        %v1108 = vsub.f32 0.0, %v1044
        %v1109 = vsub.f32 0.0, %v1045
        %v1110 = vsub.f32 0.0, %v1046
        %v1111 = vsub.f32 0.0, %v1047
        %v1112 = vsub.f32 0.0, %v1048
        %v1113 = vsub.f32 0.0, %v1049
        %v1114 = vsub.f32 0.0, %v1050
        %v1115 = vsub.f32 0.0, %v1051
        %v1116 = vsub.f32 0.0, %v1052
        %v1117 = vsub.f32 0.0, %v1053
        %v1118 = vsub.f32 0.0, %v1054
        %v1119 = vsub.f32 0.0, %v1055
        %v1120 = vsub.f32 0.0, %v1056
        %v1121 = vsub.f32 0.0, %v1057
        %v1122 = vsub.f32 0.0, %v1058
        %v1123 = vsub.f32 0.0, %v1059
        %v1124 = vsub.f32 0.0, %v1060
        %v1125 = vsub.f32 0.0, %v1061
        %v1126 = vsub.f32 0.0, %v1062
        %v1127 = vsub.f32 0.0, %v1063
        %v1128 = vsub.f32 0.0, %v1064
        %v1129 = vsub.f32 0.0, %v1065
        %v1130 = vsub.f32 0.0, %v1066
        %v1131 = vsub.f32 0.0, %v1067
        %v1132 = vsub.f32 0.0, %v1068
        %v1133 = vsub.f32 0.0, %v1069
        %v1134 = vsub.f32 0.0, %v1070
        %v1135 = vsub.f32 0.0, %v1071
        %v1136 = vsub.f32 0.0, %v1072
        %v1137 = vsub.f32 0.0, %v1073
        %v1138 = vsub.f32 0.0, %v1074
        %v1139 = vsub.f32 0.0, %v1075
        %v1140 = vsub.f32 0.0, %v1076
        %v1141 = vsub.f32 0.0, %v1077
        %v1142 = vsub.f32 0.0, %v1078
        %v1143 = vsub.f32 0.0, %v1079
        %v1144 = vsub.f32 0.0, %v1080
        %v1145 = vsub.f32 0.0, %v1081
        %v1146 = vsub.f32 0.0, %v1082
        %v1147 = vsub.f32 0.0, %v1083
        %v1148 = vsub.f32 0.0, %v1084
        %v1149 = vsub.f32 0.0, %v1085
        %v1150 = vsub.f32 0.0, %v1086
        %v1151 = vmul.f32 %v1087, 1.442695
        %v1152 = vpow.pop %v1151
        %v1153 = vmul.f32 %v1088, 1.442695
        %v1154 = vpow.pop %v1153
        %v1155 = vmul.f32 %v1089, 1.442695
        %v1156 = vpow.pop %v1155
        %v1157 = vmul.f32 %v1090, 1.442695
        %v1158 = vpow.pop %v1157
        %v1159 = vmul.f32 %v1091, 1.442695
        %v1160 = vpow.pop %v1159
        %v1161 = vmul.f32 %v1092, 1.442695
        %v1162 = vpow.pop %v1161
        %v1163 = vmul.f32 %v1093, 1.442695
        %v1164 = vpow.pop %v1163
        %v1165 = vmul.f32 %v1094, 1.442695
        %v1166 = vpow.pop %v1165
        %v1167 = vmul.f32 %v1095, 1.442695
        %v1168 = vpow.pop %v1167
        %v1169 = vmul.f32 %v1096, 1.442695
        %v1170 = vpow.pop %v1169
        %v1171 = vmul.f32 %v1097, 1.442695
        %v1172 = vpow.pop %v1171
        %v1173 = vmul.f32 %v1098, 1.442695
        %v1174 = vpow.pop %v1173
        %v1175 = vmul.f32 %v1099, 1.442695
        %v1176 = vpow.pop %v1175
        %v1177 = vmul.f32 %v1100, 1.442695
        %v1178 = vpow.pop %v1177
        %v1179 = vmul.f32 %v1101, 1.442695
        %v1180 = vpow.pop %v1179
        %v1181 = vmul.f32 %v1102, 1.442695
        %v1182 = vpow.pop %v1181
        %v1183 = vmul.f32 %v1103, 1.442695
        %v1184 = vpow.pop %v1183
        %v1185 = vmul.f32 %v1104, 1.442695
        %v1186 = vpow.pop %v1185
        %v1187 = vmul.f32 %v1105, 1.442695
        %v1188 = vpow.pop %v1187
        %v1189 = vmul.f32 %v1106, 1.442695
        %v1190 = vpow.pop %v1189
        %v1191 = vmul.f32 %v1107, 1.442695
        %v1192 = vpow.pop %v1191
        %v1193 = vmul.f32 %v1108, 1.442695
        %v1194 = vpow.pop %v1193
        %v1195 = vmul.f32 %v1109, 1.442695
        %v1196 = vpow.pop %v1195
        %v1197 = vmul.f32 %v1110, 1.442695
        %v1198 = vpow.pop %v1197
        %v1199 = vmul.f32 %v1111, 1.442695
        %v1200 = vpow.pop %v1199
        %v1201 = vmul.f32 %v1112, 1.442695
        %v1202 = vpow.pop %v1201
        %v1203 = vmul.f32 %v1113, 1.442695
        %v1204 = vpow.pop %v1203
        %v1205 = vmul.f32 %v1114, 1.442695
        %v1206 = vpow.pop %v1205
        %v1207 = vmul.f32 %v1115, 1.442695
        %v1208 = vpow.pop %v1207
        %v1209 = vmul.f32 %v1116, 1.442695
        %v1210 = vpow.pop %v1209
        %v1211 = vmul.f32 %v1117, 1.442695
        %v1212 = vpow.pop %v1211
        %v1213 = vmul.f32 %v1118, 1.442695
        %v1214 = vpow.pop %v1213
        %v1215 = vmul.f32 %v1119, 1.442695
        %v1216 = vpow.pop %v1215
        %v1217 = vmul.f32 %v1120, 1.442695
        %v1218 = vpow.pop %v1217
        %v1219 = vmul.f32 %v1121, 1.442695
        %v1220 = vpow.pop %v1219
        %v1221 = vmul.f32 %v1122, 1.442695
        %v1222 = vpow.pop %v1221
        %v1223 = vmul.f32 %v1123, 1.442695
        %v1224 = vpow.pop %v1223
        %v1225 = vmul.f32 %v1124, 1.442695
        %v1226 = vpow.pop %v1225
        %v1227 = vmul.f32 %v1125, 1.442695
        %v1228 = vpow.pop %v1227
        %v1229 = vmul.f32 %v1126, 1.442695
        %v1230 = vpow.pop %v1229
        %v1231 = vmul.f32 %v1127, 1.442695
        %v1232 = vpow.pop %v1231
        %v1233 = vmul.f32 %v1128, 1.442695
        %v1234 = vpow.pop %v1233
        %v1235 = vmul.f32 %v1129, 1.442695
        %v1236 = vpow.pop %v1235
        %v1237 = vmul.f32 %v1130, 1.442695
        %v1238 = vpow.pop %v1237
        %v1239 = vmul.f32 %v1131, 1.442695
        %v1240 = vpow.pop %v1239
        %v1241 = vmul.f32 %v1132, 1.442695
        %v1242 = vpow.pop %v1241
        %v1243 = vmul.f32 %v1133, 1.442695
        %v1244 = vpow.pop %v1243
        %v1245 = vmul.f32 %v1134, 1.442695
        %v1246 = vpow.pop %v1245
        %v1247 = vmul.f32 %v1135, 1.442695
        %v1248 = vpow.pop %v1247
        %v1249 = vmul.f32 %v1136, 1.442695
        %v1250 = vpow.pop %v1249
        %v1251 = vmul.f32 %v1137, 1.442695
        %v1252 = vpow.pop %v1251
        %v1253 = vmul.f32 %v1138, 1.442695
        %v1254 = vpow.pop %v1253
        %v1255 = vmul.f32 %v1139, 1.442695
        %v1256 = vpow.pop %v1255
        %v1257 = vmul.f32 %v1140, 1.442695
        %v1258 = vpow.pop %v1257
        %v1259 = vmul.f32 %v1141, 1.442695
        %v1260 = vpow.pop %v1259
        %v1261 = vmul.f32 %v1142, 1.442695
        %v1262 = vpow.pop %v1261
        %v1263 = vmul.f32 %v1143, 1.442695
        %v1264 = vpow.pop %v1263
        %v1265 = vmul.f32 %v1144, 1.442695
        %v1266 = vpow.pop %v1265
        %v1267 = vmul.f32 %v1145, 1.442695
        %v1268 = vpow.pop %v1267
        %v1269 = vmul.f32 %v1146, 1.442695
        %v1270 = vpow.pop %v1269
        %v1271 = vmul.f32 %v1147, 1.442695
        %v1272 = vpow.pop %v1271
        %v1273 = vmul.f32 %v1148, 1.442695
        %v1274 = vpow.pop %v1273
        %v1275 = vmul.f32 %v1149, 1.442695
        %v1276 = vpow.pop %v1275
        %v1277 = vmul.f32 %v1150, 1.442695
        %v1278 = vpow.pop %v1277
        %v1279 = vadd.f32 %v1152, 1.0
        %v1280 = vlog2.pop %v1279
        %v1281 = vmul.f32 %v1280, 0.6931472
        %v1282 = vmul.f32 -0.5, %v1152
        %v1283 = vadd.f32 %v1282, 1.0
        %v1284 = vmul.f32 %v1283, %v1152
        %v1285 = vand.u32 2147483647, %v1152
        %vm1286 = vcmp.lt.f32.partialorder %v1285, 0.0004427343
        %v1287 = vsel %vm1286, %v1284, %v1281
        %v1288 = vadd.f32 %v1154, 1.0
        %v1289 = vlog2.pop %v1288
        %v1290 = vmul.f32 %v1289, 0.6931472
        %v1291 = vmul.f32 -0.5, %v1154
        %v1292 = vadd.f32 %v1291, 1.0
        %v1293 = vmul.f32 %v1292, %v1154
        %v1294 = vand.u32 2147483647, %v1154
        %vm1295 = vcmp.lt.f32.partialorder %v1294, 0.0004427343
        %v1296 = vsel %vm1295, %v1293, %v1290
        %v1297 = vadd.f32 %v1156, 1.0
        %v1298 = vlog2.pop %v1297
        %v1299 = vmul.f32 %v1298, 0.6931472
        %v1300 = vmul.f32 -0.5, %v1156
        %v1301 = vadd.f32 %v1300, 1.0
        %v1302 = vmul.f32 %v1301, %v1156
        %v1303 = vand.u32 2147483647, %v1156
        %vm1304 = vcmp.lt.f32.partialorder %v1303, 0.0004427343
        %v1305 = vsel %vm1304, %v1302, %v1299
        %v1306 = vadd.f32 %v1158, 1.0
        %v1307 = vlog2.pop %v1306
        %v1308 = vmul.f32 %v1307, 0.6931472
        %v1309 = vmul.f32 -0.5, %v1158
        %v1310 = vadd.f32 %v1309, 1.0
        %v1311 = vmul.f32 %v1310, %v1158
        %v1312 = vand.u32 2147483647, %v1158
        %vm1313 = vcmp.lt.f32.partialorder %v1312, 0.0004427343
        %v1314 = vsel %vm1313, %v1311, %v1308
        %v1315 = vadd.f32 %v1160, 1.0
        %v1316 = vlog2.pop %v1315
        %v1317 = vmul.f32 %v1316, 0.6931472
        %v1318 = vmul.f32 -0.5, %v1160
        %v1319 = vadd.f32 %v1318, 1.0
        %v1320 = vmul.f32 %v1319, %v1160
        %v1321 = vand.u32 2147483647, %v1160
        %vm1322 = vcmp.lt.f32.partialorder %v1321, 0.0004427343
        %v1323 = vsel %vm1322, %v1320, %v1317
        %v1324 = vadd.f32 %v1162, 1.0
        %v1325 = vlog2.pop %v1324
        %v1326 = vmul.f32 %v1325, 0.6931472
        %v1327 = vmul.f32 -0.5, %v1162
        %v1328 = vadd.f32 %v1327, 1.0
        %v1329 = vmul.f32 %v1328, %v1162
        %v1330 = vand.u32 2147483647, %v1162
        %vm1331 = vcmp.lt.f32.partialorder %v1330, 0.0004427343
        %v1332 = vsel %vm1331, %v1329, %v1326
        %v1333 = vadd.f32 %v1164, 1.0
        %v1334 = vlog2.pop %v1333
        %v1335 = vmul.f32 %v1334, 0.6931472
        %v1336 = vmul.f32 -0.5, %v1164
        %v1337 = vadd.f32 %v1336, 1.0
        %v1338 = vmul.f32 %v1337, %v1164
        %v1339 = vand.u32 2147483647, %v1164
        %vm1340 = vcmp.lt.f32.partialorder %v1339, 0.0004427343
        %v1341 = vsel %vm1340, %v1338, %v1335
        %v1342 = vadd.f32 %v1166, 1.0
        %v1343 = vlog2.pop %v1342
        %v1344 = vmul.f32 %v1343, 0.6931472
        %v1345 = vmul.f32 -0.5, %v1166
        %v1346 = vadd.f32 %v1345, 1.0
        %v1347 = vmul.f32 %v1346, %v1166
        %v1348 = vand.u32 2147483647, %v1166
        %vm1349 = vcmp.lt.f32.partialorder %v1348, 0.0004427343
        %v1350 = vsel %vm1349, %v1347, %v1344
        %v1351 = vadd.f32 %v1168, 1.0
        %v1352 = vlog2.pop %v1351
        %v1353 = vmul.f32 %v1352, 0.6931472
        %v1354 = vmul.f32 -0.5, %v1168
        %v1355 = vadd.f32 %v1354, 1.0
        %v1356 = vmul.f32 %v1355, %v1168
        %v1357 = vand.u32 2147483647, %v1168
        %vm1358 = vcmp.lt.f32.partialorder %v1357, 0.0004427343
        %v1359 = vsel %vm1358, %v1356, %v1353
        %v1360 = vadd.f32 %v1170, 1.0
        %v1361 = vlog2.pop %v1360
        %v1362 = vmul.f32 %v1361, 0.6931472
        %v1363 = vmul.f32 -0.5, %v1170
        %v1364 = vadd.f32 %v1363, 1.0
        %v1365 = vmul.f32 %v1364, %v1170
        %v1366 = vand.u32 2147483647, %v1170
        %vm1367 = vcmp.lt.f32.partialorder %v1366, 0.0004427343
        %v1368 = vsel %vm1367, %v1365, %v1362
        %v1369 = vadd.f32 %v1172, 1.0
        %v1370 = vlog2.pop %v1369
        %v1371 = vmul.f32 %v1370, 0.6931472
        %v1372 = vmul.f32 -0.5, %v1172
        %v1373 = vadd.f32 %v1372, 1.0
        %v1374 = vmul.f32 %v1373, %v1172
        %v1375 = vand.u32 2147483647, %v1172
        %vm1376 = vcmp.lt.f32.partialorder %v1375, 0.0004427343
        %v1377 = vsel %vm1376, %v1374, %v1371
        %v1378 = vadd.f32 %v1174, 1.0
        %v1379 = vlog2.pop %v1378
        %v1380 = vmul.f32 %v1379, 0.6931472
        %v1381 = vmul.f32 -0.5, %v1174
        %v1382 = vadd.f32 %v1381, 1.0
        %v1383 = vmul.f32 %v1382, %v1174
        %v1384 = vand.u32 2147483647, %v1174
        %vm1385 = vcmp.lt.f32.partialorder %v1384, 0.0004427343
        %v1386 = vsel %vm1385, %v1383, %v1380
        %v1387 = vadd.f32 %v1176, 1.0
        %v1388 = vlog2.pop %v1387
        %v1389 = vmul.f32 %v1388, 0.6931472
        %v1390 = vmul.f32 -0.5, %v1176
        %v1391 = vadd.f32 %v1390, 1.0
        %v1392 = vmul.f32 %v1391, %v1176
        %v1393 = vand.u32 2147483647, %v1176
        %vm1394 = vcmp.lt.f32.partialorder %v1393, 0.0004427343
        %v1395 = vsel %vm1394, %v1392, %v1389
        %v1396 = vadd.f32 %v1178, 1.0
        %v1397 = vlog2.pop %v1396
        %v1398 = vmul.f32 %v1397, 0.6931472
        %v1399 = vmul.f32 -0.5, %v1178
        %v1400 = vadd.f32 %v1399, 1.0
        %v1401 = vmul.f32 %v1400, %v1178
        %v1402 = vand.u32 2147483647, %v1178
        %vm1403 = vcmp.lt.f32.partialorder %v1402, 0.0004427343
        %v1404 = vsel %vm1403, %v1401, %v1398
        %v1405 = vadd.f32 %v1180, 1.0
        %v1406 = vlog2.pop %v1405
        %v1407 = vmul.f32 %v1406, 0.6931472
        %v1408 = vmul.f32 -0.5, %v1180
        %v1409 = vadd.f32 %v1408, 1.0
        %v1410 = vmul.f32 %v1409, %v1180
        %v1411 = vand.u32 2147483647, %v1180
        %vm1412 = vcmp.lt.f32.partialorder %v1411, 0.0004427343
        %v1413 = vsel %vm1412, %v1410, %v1407
        %v1414 = vadd.f32 %v1182, 1.0
        %v1415 = vlog2.pop %v1414
        %v1416 = vmul.f32 %v1415, 0.6931472
        %v1417 = vmul.f32 -0.5, %v1182
        %v1418 = vadd.f32 %v1417, 1.0
        %v1419 = vmul.f32 %v1418, %v1182
        %v1420 = vand.u32 2147483647, %v1182
        %vm1421 = vcmp.lt.f32.partialorder %v1420, 0.0004427343
        %v1422 = vsel %vm1421, %v1419, %v1416
        %v1423 = vadd.f32 %v1184, 1.0
        %v1424 = vlog2.pop %v1423
        %v1425 = vmul.f32 %v1424, 0.6931472
        %v1426 = vmul.f32 -0.5, %v1184
        %v1427 = vadd.f32 %v1426, 1.0
        %v1428 = vmul.f32 %v1427, %v1184
        %v1429 = vand.u32 2147483647, %v1184
        %vm1430 = vcmp.lt.f32.partialorder %v1429, 0.0004427343
        %v1431 = vsel %vm1430, %v1428, %v1425
        %v1432 = vadd.f32 %v1186, 1.0
        %v1433 = vlog2.pop %v1432
        %v1434 = vmul.f32 %v1433, 0.6931472
        %v1435 = vmul.f32 -0.5, %v1186
        %v1436 = vadd.f32 %v1435, 1.0
        %v1437 = vmul.f32 %v1436, %v1186
        %v1438 = vand.u32 2147483647, %v1186
        %vm1439 = vcmp.lt.f32.partialorder %v1438, 0.0004427343
        %v1440 = vsel %vm1439, %v1437, %v1434
        %v1441 = vadd.f32 %v1188, 1.0
        %v1442 = vlog2.pop %v1441
        %v1443 = vmul.f32 %v1442, 0.6931472
        %v1444 = vmul.f32 -0.5, %v1188
        %v1445 = vadd.f32 %v1444, 1.0
        %v1446 = vmul.f32 %v1445, %v1188
        %v1447 = vand.u32 2147483647, %v1188
        %vm1448 = vcmp.lt.f32.partialorder %v1447, 0.0004427343
        %v1449 = vsel %vm1448, %v1446, %v1443
        %v1450 = vadd.f32 %v1190, 1.0
        %v1451 = vlog2.pop %v1450
        %v1452 = vmul.f32 %v1451, 0.6931472
        %v1453 = vmul.f32 -0.5, %v1190
        %v1454 = vadd.f32 %v1453, 1.0
        %v1455 = vmul.f32 %v1454, %v1190
        %v1456 = vand.u32 2147483647, %v1190
        %vm1457 = vcmp.lt.f32.partialorder %v1456, 0.0004427343
        %v1458 = vsel %vm1457, %v1455, %v1452
        %v1459 = vadd.f32 %v1192, 1.0
        %v1460 = vlog2.pop %v1459
        %v1461 = vmul.f32 %v1460, 0.6931472
        %v1462 = vmul.f32 -0.5, %v1192
        %v1463 = vadd.f32 %v1462, 1.0
        %v1464 = vmul.f32 %v1463, %v1192
        %v1465 = vand.u32 2147483647, %v1192
        %vm1466 = vcmp.lt.f32.partialorder %v1465, 0.0004427343
        %v1467 = vsel %vm1466, %v1464, %v1461
        %v1468 = vadd.f32 %v1194, 1.0
        %v1469 = vlog2.pop %v1468
        %v1470 = vmul.f32 %v1469, 0.6931472
        %v1471 = vmul.f32 -0.5, %v1194
        %v1472 = vadd.f32 %v1471, 1.0
        %v1473 = vmul.f32 %v1472, %v1194
        %v1474 = vand.u32 2147483647, %v1194
        %vm1475 = vcmp.lt.f32.partialorder %v1474, 0.0004427343
        %v1476 = vsel %vm1475, %v1473, %v1470
        %v1477 = vadd.f32 %v1196, 1.0
        %v1478 = vlog2.pop %v1477
        %v1479 = vmul.f32 %v1478, 0.6931472
        %v1480 = vmul.f32 -0.5, %v1196
        %v1481 = vadd.f32 %v1480, 1.0
        %v1482 = vmul.f32 %v1481, %v1196
        %v1483 = vand.u32 2147483647, %v1196
        %vm1484 = vcmp.lt.f32.partialorder %v1483, 0.0004427343
        %v1485 = vsel %vm1484, %v1482, %v1479
        %v1486 = vadd.f32 %v1198, 1.0
        %v1487 = vlog2.pop %v1486
        %v1488 = vmul.f32 %v1487, 0.6931472
        %v1489 = vmul.f32 -0.5, %v1198
        %v1490 = vadd.f32 %v1489, 1.0
        %v1491 = vmul.f32 %v1490, %v1198
        %v1492 = vand.u32 2147483647, %v1198
        %vm1493 = vcmp.lt.f32.partialorder %v1492, 0.0004427343
        %v1494 = vsel %vm1493, %v1491, %v1488
        %v1495 = vadd.f32 %v1200, 1.0
        %v1496 = vlog2.pop %v1495
        %v1497 = vmul.f32 %v1496, 0.6931472
        %v1498 = vmul.f32 -0.5, %v1200
        %v1499 = vadd.f32 %v1498, 1.0
        %v1500 = vmul.f32 %v1499, %v1200
        %v1501 = vand.u32 2147483647, %v1200
        %vm1502 = vcmp.lt.f32.partialorder %v1501, 0.0004427343
        %v1503 = vsel %vm1502, %v1500, %v1497
        %v1504 = vadd.f32 %v1202, 1.0
        %v1505 = vlog2.pop %v1504
        %v1506 = vmul.f32 %v1505, 0.6931472
        %v1507 = vmul.f32 -0.5, %v1202
        %v1508 = vadd.f32 %v1507, 1.0
        %v1509 = vmul.f32 %v1508, %v1202
        %v1510 = vand.u32 2147483647, %v1202
        %vm1511 = vcmp.lt.f32.partialorder %v1510, 0.0004427343
        %v1512 = vsel %vm1511, %v1509, %v1506
        %v1513 = vadd.f32 %v1204, 1.0
        %v1514 = vlog2.pop %v1513
        %v1515 = vmul.f32 %v1514, 0.6931472
        %v1516 = vmul.f32 -0.5, %v1204
        %v1517 = vadd.f32 %v1516, 1.0
        %v1518 = vmul.f32 %v1517, %v1204
        %v1519 = vand.u32 2147483647, %v1204
        %vm1520 = vcmp.lt.f32.partialorder %v1519, 0.0004427343
        %v1521 = vsel %vm1520, %v1518, %v1515
        %v1522 = vadd.f32 %v1206, 1.0
        %v1523 = vlog2.pop %v1522
        %v1524 = vmul.f32 %v1523, 0.6931472
        %v1525 = vmul.f32 -0.5, %v1206
        %v1526 = vadd.f32 %v1525, 1.0
        %v1527 = vmul.f32 %v1526, %v1206
        %v1528 = vand.u32 2147483647, %v1206
        %vm1529 = vcmp.lt.f32.partialorder %v1528, 0.0004427343
        %v1530 = vsel %vm1529, %v1527, %v1524
        %v1531 = vadd.f32 %v1208, 1.0
        %v1532 = vlog2.pop %v1531
        %v1533 = vmul.f32 %v1532, 0.6931472
        %v1534 = vmul.f32 -0.5, %v1208
        %v1535 = vadd.f32 %v1534, 1.0
        %v1536 = vmul.f32 %v1535, %v1208
        %v1537 = vand.u32 2147483647, %v1208
        %vm1538 = vcmp.lt.f32.partialorder %v1537, 0.0004427343
        %v1539 = vsel %vm1538, %v1536, %v1533
        %v1540 = vadd.f32 %v1210, 1.0
        %v1541 = vlog2.pop %v1540
        %v1542 = vmul.f32 %v1541, 0.6931472
        %v1543 = vmul.f32 -0.5, %v1210
        %v1544 = vadd.f32 %v1543, 1.0
        %v1545 = vmul.f32 %v1544, %v1210
        %v1546 = vand.u32 2147483647, %v1210
        %vm1547 = vcmp.lt.f32.partialorder %v1546, 0.0004427343
        %v1548 = vsel %vm1547, %v1545, %v1542
        %v1549 = vadd.f32 %v1212, 1.0
        %v1550 = vlog2.pop %v1549
        %v1551 = vmul.f32 %v1550, 0.6931472
        %v1552 = vmul.f32 -0.5, %v1212
        %v1553 = vadd.f32 %v1552, 1.0
        %v1554 = vmul.f32 %v1553, %v1212
        %v1555 = vand.u32 2147483647, %v1212
        %vm1556 = vcmp.lt.f32.partialorder %v1555, 0.0004427343
        %v1557 = vsel %vm1556, %v1554, %v1551
        %v1558 = vadd.f32 %v1214, 1.0
        %v1559 = vlog2.pop %v1558
        %v1560 = vmul.f32 %v1559, 0.6931472
        %v1561 = vmul.f32 -0.5, %v1214
        %v1562 = vadd.f32 %v1561, 1.0
        %v1563 = vmul.f32 %v1562, %v1214
        %v1564 = vand.u32 2147483647, %v1214
        %vm1565 = vcmp.lt.f32.partialorder %v1564, 0.0004427343
        %v1566 = vsel %vm1565, %v1563, %v1560
        %v1567 = vadd.f32 %v1216, 1.0
        %v1568 = vlog2.pop %v1567
        %v1569 = vmul.f32 %v1568, 0.6931472
        %v1570 = vmul.f32 -0.5, %v1216
        %v1571 = vadd.f32 %v1570, 1.0
        %v1572 = vmul.f32 %v1571, %v1216
        %v1573 = vand.u32 2147483647, %v1216
        %vm1574 = vcmp.lt.f32.partialorder %v1573, 0.0004427343
        %v1575 = vsel %vm1574, %v1572, %v1569
        %v1576 = vadd.f32 %v1218, 1.0
        %v1577 = vlog2.pop %v1576
        %v1578 = vmul.f32 %v1577, 0.6931472
        %v1579 = vmul.f32 -0.5, %v1218
        %v1580 = vadd.f32 %v1579, 1.0
        %v1581 = vmul.f32 %v1580, %v1218
        %v1582 = vand.u32 2147483647, %v1218
        %vm1583 = vcmp.lt.f32.partialorder %v1582, 0.0004427343
        %v1584 = vsel %vm1583, %v1581, %v1578
        %v1585 = vadd.f32 %v1220, 1.0
        %v1586 = vlog2.pop %v1585
        %v1587 = vmul.f32 %v1586, 0.6931472
        %v1588 = vmul.f32 -0.5, %v1220
        %v1589 = vadd.f32 %v1588, 1.0
        %v1590 = vmul.f32 %v1589, %v1220
        %v1591 = vand.u32 2147483647, %v1220
        %vm1592 = vcmp.lt.f32.partialorder %v1591, 0.0004427343
        %v1593 = vsel %vm1592, %v1590, %v1587
        %v1594 = vadd.f32 %v1222, 1.0
        %v1595 = vlog2.pop %v1594
        %v1596 = vmul.f32 %v1595, 0.6931472
        %v1597 = vmul.f32 -0.5, %v1222
        %v1598 = vadd.f32 %v1597, 1.0
        %v1599 = vmul.f32 %v1598, %v1222
        %v1600 = vand.u32 2147483647, %v1222
        %vm1601 = vcmp.lt.f32.partialorder %v1600, 0.0004427343
        %v1602 = vsel %vm1601, %v1599, %v1596
        %v1603 = vadd.f32 %v1224, 1.0
        %v1604 = vlog2.pop %v1603
        %v1605 = vmul.f32 %v1604, 0.6931472
        %v1606 = vmul.f32 -0.5, %v1224
        %v1607 = vadd.f32 %v1606, 1.0
        %v1608 = vmul.f32 %v1607, %v1224
        %v1609 = vand.u32 2147483647, %v1224
        %vm1610 = vcmp.lt.f32.partialorder %v1609, 0.0004427343
        %v1611 = vsel %vm1610, %v1608, %v1605
        %v1612 = vadd.f32 %v1226, 1.0
        %v1613 = vlog2.pop %v1612
        %v1614 = vmul.f32 %v1613, 0.6931472
        %v1615 = vmul.f32 -0.5, %v1226
        %v1616 = vadd.f32 %v1615, 1.0
        %v1617 = vmul.f32 %v1616, %v1226
        %v1618 = vand.u32 2147483647, %v1226
        %vm1619 = vcmp.lt.f32.partialorder %v1618, 0.0004427343
        %v1620 = vsel %vm1619, %v1617, %v1614
        %v1621 = vadd.f32 %v1228, 1.0
        %v1622 = vlog2.pop %v1621
        %v1623 = vmul.f32 %v1622, 0.6931472
        %v1624 = vmul.f32 -0.5, %v1228
        %v1625 = vadd.f32 %v1624, 1.0
        %v1626 = vmul.f32 %v1625, %v1228
        %v1627 = vand.u32 2147483647, %v1228
        %vm1628 = vcmp.lt.f32.partialorder %v1627, 0.0004427343
        %v1629 = vsel %vm1628, %v1626, %v1623
        %v1630 = vadd.f32 %v1230, 1.0
        %v1631 = vlog2.pop %v1630
        %v1632 = vmul.f32 %v1631, 0.6931472
        %v1633 = vmul.f32 -0.5, %v1230
        %v1634 = vadd.f32 %v1633, 1.0
        %v1635 = vmul.f32 %v1634, %v1230
        %v1636 = vand.u32 2147483647, %v1230
        %vm1637 = vcmp.lt.f32.partialorder %v1636, 0.0004427343
        %v1638 = vsel %vm1637, %v1635, %v1632
        %v1639 = vadd.f32 %v1232, 1.0
        %v1640 = vlog2.pop %v1639
        %v1641 = vmul.f32 %v1640, 0.6931472
        %v1642 = vmul.f32 -0.5, %v1232
        %v1643 = vadd.f32 %v1642, 1.0
        %v1644 = vmul.f32 %v1643, %v1232
        %v1645 = vand.u32 2147483647, %v1232
        %vm1646 = vcmp.lt.f32.partialorder %v1645, 0.0004427343
        %v1647 = vsel %vm1646, %v1644, %v1641
        %v1648 = vadd.f32 %v1234, 1.0
        %v1649 = vlog2.pop %v1648
        %v1650 = vmul.f32 %v1649, 0.6931472
        %v1651 = vmul.f32 -0.5, %v1234
        %v1652 = vadd.f32 %v1651, 1.0
        %v1653 = vmul.f32 %v1652, %v1234
        %v1654 = vand.u32 2147483647, %v1234
        %vm1655 = vcmp.lt.f32.partialorder %v1654, 0.0004427343
        %v1656 = vsel %vm1655, %v1653, %v1650
        %v1657 = vadd.f32 %v1236, 1.0
        %v1658 = vlog2.pop %v1657
        %v1659 = vmul.f32 %v1658, 0.6931472
        %v1660 = vmul.f32 -0.5, %v1236
        %v1661 = vadd.f32 %v1660, 1.0
        %v1662 = vmul.f32 %v1661, %v1236
        %v1663 = vand.u32 2147483647, %v1236
        %vm1664 = vcmp.lt.f32.partialorder %v1663, 0.0004427343
        %v1665 = vsel %vm1664, %v1662, %v1659
        %v1666 = vadd.f32 %v1238, 1.0
        %v1667 = vlog2.pop %v1666
        %v1668 = vmul.f32 %v1667, 0.6931472
        %v1669 = vmul.f32 -0.5, %v1238
        %v1670 = vadd.f32 %v1669, 1.0
        %v1671 = vmul.f32 %v1670, %v1238
        %v1672 = vand.u32 2147483647, %v1238
        %vm1673 = vcmp.lt.f32.partialorder %v1672, 0.0004427343
        %v1674 = vsel %vm1673, %v1671, %v1668
        %v1675 = vadd.f32 %v1240, 1.0
        %v1676 = vlog2.pop %v1675
        %v1677 = vmul.f32 %v1676, 0.6931472
        %v1678 = vmul.f32 -0.5, %v1240
        %v1679 = vadd.f32 %v1678, 1.0
        %v1680 = vmul.f32 %v1679, %v1240
        %v1681 = vand.u32 2147483647, %v1240
        %vm1682 = vcmp.lt.f32.partialorder %v1681, 0.0004427343
        %v1683 = vsel %vm1682, %v1680, %v1677
        %v1684 = vadd.f32 %v1242, 1.0
        %v1685 = vlog2.pop %v1684
        %v1686 = vmul.f32 %v1685, 0.6931472
        %v1687 = vmul.f32 -0.5, %v1242
        %v1688 = vadd.f32 %v1687, 1.0
        %v1689 = vmul.f32 %v1688, %v1242
        %v1690 = vand.u32 2147483647, %v1242
        %vm1691 = vcmp.lt.f32.partialorder %v1690, 0.0004427343
        %v1692 = vsel %vm1691, %v1689, %v1686
        %v1693 = vadd.f32 %v1244, 1.0
        %v1694 = vlog2.pop %v1693
        %v1695 = vmul.f32 %v1694, 0.6931472
        %v1696 = vmul.f32 -0.5, %v1244
        %v1697 = vadd.f32 %v1696, 1.0
        %v1698 = vmul.f32 %v1697, %v1244
        %v1699 = vand.u32 2147483647, %v1244
        %vm1700 = vcmp.lt.f32.partialorder %v1699, 0.0004427343
        %v1701 = vsel %vm1700, %v1698, %v1695
        %v1702 = vadd.f32 %v1246, 1.0
        %v1703 = vlog2.pop %v1702
        %v1704 = vmul.f32 %v1703, 0.6931472
        %v1705 = vmul.f32 -0.5, %v1246
        %v1706 = vadd.f32 %v1705, 1.0
        %v1707 = vmul.f32 %v1706, %v1246
        %v1708 = vand.u32 2147483647, %v1246
        %vm1709 = vcmp.lt.f32.partialorder %v1708, 0.0004427343
        %v1710 = vsel %vm1709, %v1707, %v1704
        %v1711 = vadd.f32 %v1248, 1.0
        %v1712 = vlog2.pop %v1711
        %v1713 = vmul.f32 %v1712, 0.6931472
        %v1714 = vmul.f32 -0.5, %v1248
        %v1715 = vadd.f32 %v1714, 1.0
        %v1716 = vmul.f32 %v1715, %v1248
        %v1717 = vand.u32 2147483647, %v1248
        %vm1718 = vcmp.lt.f32.partialorder %v1717, 0.0004427343
        %v1719 = vsel %vm1718, %v1716, %v1713
        %v1720 = vadd.f32 %v1250, 1.0
        %v1721 = vlog2.pop %v1720
        %v1722 = vmul.f32 %v1721, 0.6931472
        %v1723 = vmul.f32 -0.5, %v1250
        %v1724 = vadd.f32 %v1723, 1.0
        %v1725 = vmul.f32 %v1724, %v1250
        %v1726 = vand.u32 2147483647, %v1250
        %vm1727 = vcmp.lt.f32.partialorder %v1726, 0.0004427343
        %v1728 = vsel %vm1727, %v1725, %v1722
        %v1729 = vadd.f32 %v1252, 1.0
        %v1730 = vlog2.pop %v1729
        %v1731 = vmul.f32 %v1730, 0.6931472
        %v1732 = vmul.f32 -0.5, %v1252
        %v1733 = vadd.f32 %v1732, 1.0
        %v1734 = vmul.f32 %v1733, %v1252
        %v1735 = vand.u32 2147483647, %v1252
        %vm1736 = vcmp.lt.f32.partialorder %v1735, 0.0004427343
        %v1737 = vsel %vm1736, %v1734, %v1731
        %v1738 = vadd.f32 %v1254, 1.0
        %v1739 = vlog2.pop %v1738
        %v1740 = vmul.f32 %v1739, 0.6931472
        %v1741 = vmul.f32 -0.5, %v1254
        %v1742 = vadd.f32 %v1741, 1.0
        %v1743 = vmul.f32 %v1742, %v1254
        %v1744 = vand.u32 2147483647, %v1254
        %vm1745 = vcmp.lt.f32.partialorder %v1744, 0.0004427343
        %v1746 = vsel %vm1745, %v1743, %v1740
        %v1747 = vadd.f32 %v1256, 1.0
        %v1748 = vlog2.pop %v1747
        %v1749 = vmul.f32 %v1748, 0.6931472
        %v1750 = vmul.f32 -0.5, %v1256
        %v1751 = vadd.f32 %v1750, 1.0
        %v1752 = vmul.f32 %v1751, %v1256
        %v1753 = vand.u32 2147483647, %v1256
        %vm1754 = vcmp.lt.f32.partialorder %v1753, 0.0004427343
        %v1755 = vsel %vm1754, %v1752, %v1749
        %v1756 = vadd.f32 %v1258, 1.0
        %v1757 = vlog2.pop %v1756
        %v1758 = vmul.f32 %v1757, 0.6931472
        %v1759 = vmul.f32 -0.5, %v1258
        %v1760 = vadd.f32 %v1759, 1.0
        %v1761 = vmul.f32 %v1760, %v1258
        %v1762 = vand.u32 2147483647, %v1258
        %vm1763 = vcmp.lt.f32.partialorder %v1762, 0.0004427343
        %v1764 = vsel %vm1763, %v1761, %v1758
        %v1765 = vadd.f32 %v1260, 1.0
        %v1766 = vlog2.pop %v1765
        %v1767 = vmul.f32 %v1766, 0.6931472
        %v1768 = vmul.f32 -0.5, %v1260
        %v1769 = vadd.f32 %v1768, 1.0
        %v1770 = vmul.f32 %v1769, %v1260
        %v1771 = vand.u32 2147483647, %v1260
        %vm1772 = vcmp.lt.f32.partialorder %v1771, 0.0004427343
        %v1773 = vsel %vm1772, %v1770, %v1767
        %v1774 = vadd.f32 %v1262, 1.0
        %v1775 = vlog2.pop %v1774
        %v1776 = vmul.f32 %v1775, 0.6931472
        %v1777 = vmul.f32 -0.5, %v1262
        %v1778 = vadd.f32 %v1777, 1.0
        %v1779 = vmul.f32 %v1778, %v1262
        %v1780 = vand.u32 2147483647, %v1262
        %vm1781 = vcmp.lt.f32.partialorder %v1780, 0.0004427343
        %v1782 = vsel %vm1781, %v1779, %v1776
        %v1783 = vadd.f32 %v1264, 1.0
        %v1784 = vlog2.pop %v1783
        %v1785 = vmul.f32 %v1784, 0.6931472
        %v1786 = vmul.f32 -0.5, %v1264
        %v1787 = vadd.f32 %v1786, 1.0
        %v1788 = vmul.f32 %v1787, %v1264
        %v1789 = vand.u32 2147483647, %v1264
        %vm1790 = vcmp.lt.f32.partialorder %v1789, 0.0004427343
        %v1791 = vsel %vm1790, %v1788, %v1785
        %v1792 = vadd.f32 %v1266, 1.0
        %v1793 = vlog2.pop %v1792
        %v1794 = vmul.f32 %v1793, 0.6931472
        %v1795 = vmul.f32 -0.5, %v1266
        %v1796 = vadd.f32 %v1795, 1.0
        %v1797 = vmul.f32 %v1796, %v1266
        %v1798 = vand.u32 2147483647, %v1266
        %vm1799 = vcmp.lt.f32.partialorder %v1798, 0.0004427343
        %v1800 = vsel %vm1799, %v1797, %v1794
        %v1801 = vadd.f32 %v1268, 1.0
        %v1802 = vlog2.pop %v1801
        %v1803 = vmul.f32 %v1802, 0.6931472
        %v1804 = vmul.f32 -0.5, %v1268
        %v1805 = vadd.f32 %v1804, 1.0
        %v1806 = vmul.f32 %v1805, %v1268
        %v1807 = vand.u32 2147483647, %v1268
        %vm1808 = vcmp.lt.f32.partialorder %v1807, 0.0004427343
        %v1809 = vsel %vm1808, %v1806, %v1803
        %v1810 = vadd.f32 %v1270, 1.0
        %v1811 = vlog2.pop %v1810
        %v1812 = vmul.f32 %v1811, 0.6931472
        %v1813 = vmul.f32 -0.5, %v1270
        %v1814 = vadd.f32 %v1813, 1.0
        %v1815 = vmul.f32 %v1814, %v1270
        %v1816 = vand.u32 2147483647, %v1270
        %vm1817 = vcmp.lt.f32.partialorder %v1816, 0.0004427343
        %v1818 = vsel %vm1817, %v1815, %v1812
        %v1819 = vadd.f32 %v1272, 1.0
        %v1820 = vlog2.pop %v1819
        %v1821 = vmul.f32 %v1820, 0.6931472
        %v1822 = vmul.f32 -0.5, %v1272
        %v1823 = vadd.f32 %v1822, 1.0
        %v1824 = vmul.f32 %v1823, %v1272
        %v1825 = vand.u32 2147483647, %v1272
        %vm1826 = vcmp.lt.f32.partialorder %v1825, 0.0004427343
        %v1827 = vsel %vm1826, %v1824, %v1821
        %v1828 = vadd.f32 %v1274, 1.0
        %v1829 = vlog2.pop %v1828
        %v1830 = vmul.f32 %v1829, 0.6931472
        %v1831 = vmul.f32 -0.5, %v1274
        %v1832 = vadd.f32 %v1831, 1.0
        %v1833 = vmul.f32 %v1832, %v1274
        %v1834 = vand.u32 2147483647, %v1274
        %vm1835 = vcmp.lt.f32.partialorder %v1834, 0.0004427343
        %v1836 = vsel %vm1835, %v1833, %v1830
        %v1837 = vadd.f32 %v1276, 1.0
        %v1838 = vlog2.pop %v1837
        %v1839 = vmul.f32 %v1838, 0.6931472
        %v1840 = vmul.f32 -0.5, %v1276
        %v1841 = vadd.f32 %v1840, 1.0
        %v1842 = vmul.f32 %v1841, %v1276
        %v1843 = vand.u32 2147483647, %v1276
        %vm1844 = vcmp.lt.f32.partialorder %v1843, 0.0004427343
        %v1845 = vsel %vm1844, %v1842, %v1839
        %v1846 = vadd.f32 %v1278, 1.0
        %v1847 = vlog2.pop %v1846
        %v1848 = vmul.f32 %v1847, 0.6931472
        %v1849 = vmul.f32 -0.5, %v1278
        %v1850 = vadd.f32 %v1849, 1.0
        %v1851 = vmul.f32 %v1850, %v1278
        %v1852 = vand.u32 2147483647, %v1278
        %vm1853 = vcmp.lt.f32.partialorder %v1852, 0.0004427343
        %v1854 = vsel %vm1853, %v1851, %v1848
        %v1855 = vadd.f32 %v959, %v1287
        %v1856 = vadd.f32 %v960, %v1296
        %v1857 = vadd.f32 %v961, %v1305
        %v1858 = vadd.f32 %v962, %v1314
        %v1859 = vadd.f32 %v963, %v1323
        %v1860 = vadd.f32 %v964, %v1332
        %v1861 = vadd.f32 %v965, %v1341
        %v1862 = vadd.f32 %v966, %v1350
        %v1863 = vadd.f32 %v967, %v1359
        %v1864 = vadd.f32 %v968, %v1368
        %v1865 = vadd.f32 %v969, %v1377
        %v1866 = vadd.f32 %v970, %v1386
        %v1867 = vadd.f32 %v971, %v1395
        %v1868 = vadd.f32 %v972, %v1404
        %v1869 = vadd.f32 %v973, %v1413
        %v1870 = vadd.f32 %v974, %v1422
        %v1871 = vadd.f32 %v975, %v1431
        %v1872 = vadd.f32 %v976, %v1440
        %v1873 = vadd.f32 %v977, %v1449
        %v1874 = vadd.f32 %v978, %v1458
        %v1875 = vadd.f32 %v979, %v1467
        %v1876 = vadd.f32 %v980, %v1476
        %v1877 = vadd.f32 %v981, %v1485
        %v1878 = vadd.f32 %v982, %v1494
        %v1879 = vadd.f32 %v983, %v1503
        %v1880 = vadd.f32 %v984, %v1512
        %v1881 = vadd.f32 %v985, %v1521
        %v1882 = vadd.f32 %v986, %v1530
        %v1883 = vadd.f32 %v987, %v1539
        %v1884 = vadd.f32 %v988, %v1548
        %v1885 = vadd.f32 %v989, %v1557
        %v1886 = vadd.f32 %v990, %v1566
        %v1887 = vadd.f32 %v991, %v1575
        %v1888 = vadd.f32 %v992, %v1584
        %v1889 = vadd.f32 %v993, %v1593
        %v1890 = vadd.f32 %v994, %v1602
        %v1891 = vadd.f32 %v995, %v1611
        %v1892 = vadd.f32 %v996, %v1620
        %v1893 = vadd.f32 %v997, %v1629
        %v1894 = vadd.f32 %v998, %v1638
        %v1895 = vadd.f32 %v999, %v1647
        %v1896 = vadd.f32 %v1000, %v1656
        %v1897 = vadd.f32 %v1001, %v1665
        %v1898 = vadd.f32 %v1002, %v1674
        %v1899 = vadd.f32 %v1003, %v1683
        %v1900 = vadd.f32 %v1004, %v1692
        %v1901 = vadd.f32 %v1005, %v1701
        %v1902 = vadd.f32 %v1006, %v1710
        %v1903 = vadd.f32 %v1007, %v1719
        %v1904 = vadd.f32 %v1008, %v1728
        %v1905 = vadd.f32 %v1009, %v1737
        %v1906 = vadd.f32 %v1010, %v1746
        %v1907 = vadd.f32 %v1011, %v1755
        %v1908 = vadd.f32 %v1012, %v1764
        %v1909 = vadd.f32 %v1013, %v1773
        %v1910 = vadd.f32 %v1014, %v1782
        %v1911 = vadd.f32 %v1015, %v1791
        %v1912 = vadd.f32 %v1016, %v1800
        %v1913 = vadd.f32 %v1017, %v1809
        %v1914 = vadd.f32 %v1018, %v1818
        %v1915 = vadd.f32 %v1019, %v1827
        %v1916 = vadd.f32 %v1020, %v1836
        %v1917 = vadd.f32 %v1021, %v1845
        %v1918 = vadd.f32 %v1022, %v1854
        %v1919 = vsub.f32 %v1855, 0.6931472
        %v1920 = vsub.f32 %v1856, 0.6931472
        %v1921 = vsub.f32 %v1857, 0.6931472
        %v1922 = vsub.f32 %v1858, 0.6931472
        %v1923 = vsub.f32 %v1859, 0.6931472
        %v1924 = vsub.f32 %v1860, 0.6931472
        %v1925 = vsub.f32 %v1861, 0.6931472
        %v1926 = vsub.f32 %v1862, 0.6931472
        %v1927 = vsub.f32 %v1863, 0.6931472
        %v1928 = vsub.f32 %v1864, 0.6931472
        %v1929 = vsub.f32 %v1865, 0.6931472
        %v1930 = vsub.f32 %v1866, 0.6931472
        %v1931 = vsub.f32 %v1867, 0.6931472
        %v1932 = vsub.f32 %v1868, 0.6931472
        %v1933 = vsub.f32 %v1869, 0.6931472
        %v1934 = vsub.f32 %v1870, 0.6931472
        %v1935 = vsub.f32 %v1871, 0.6931472
        %v1936 = vsub.f32 %v1872, 0.6931472
        %v1937 = vsub.f32 %v1873, 0.6931472
        %v1938 = vsub.f32 %v1874, 0.6931472
        %v1939 = vsub.f32 %v1875, 0.6931472
        %v1940 = vsub.f32 %v1876, 0.6931472
        %v1941 = vsub.f32 %v1877, 0.6931472
        %v1942 = vsub.f32 %v1878, 0.6931472
        %v1943 = vsub.f32 %v1879, 0.6931472
        %v1944 = vsub.f32 %v1880, 0.6931472
        %v1945 = vsub.f32 %v1881, 0.6931472
        %v1946 = vsub.f32 %v1882, 0.6931472
        %v1947 = vsub.f32 %v1883, 0.6931472
        %v1948 = vsub.f32 %v1884, 0.6931472
        %v1949 = vsub.f32 %v1885, 0.6931472
        %v1950 = vsub.f32 %v1886, 0.6931472
        %v1951 = vsub.f32 %v1887, 0.6931472
        %v1952 = vsub.f32 %v1888, 0.6931472
        %v1953 = vsub.f32 %v1889, 0.6931472
        %v1954 = vsub.f32 %v1890, 0.6931472
        %v1955 = vsub.f32 %v1891, 0.6931472
        %v1956 = vsub.f32 %v1892, 0.6931472
        %v1957 = vsub.f32 %v1893, 0.6931472
        %v1958 = vsub.f32 %v1894, 0.6931472
        %v1959 = vsub.f32 %v1895, 0.6931472
        %v1960 = vsub.f32 %v1896, 0.6931472
        %v1961 = vsub.f32 %v1897, 0.6931472
        %v1962 = vsub.f32 %v1898, 0.6931472
        %v1963 = vsub.f32 %v1899, 0.6931472
        %v1964 = vsub.f32 %v1900, 0.6931472
        %v1965 = vsub.f32 %v1901, 0.6931472
        %v1966 = vsub.f32 %v1902, 0.6931472
        %v1967 = vsub.f32 %v1903, 0.6931472
        %v1968 = vsub.f32 %v1904, 0.6931472
        %v1969 = vsub.f32 %v1905, 0.6931472
        %v1970 = vsub.f32 %v1906, 0.6931472
        %v1971 = vsub.f32 %v1907, 0.6931472
        %v1972 = vsub.f32 %v1908, 0.6931472
        %v1973 = vsub.f32 %v1909, 0.6931472
        %v1974 = vsub.f32 %v1910, 0.6931472
        %v1975 = vsub.f32 %v1911, 0.6931472
        %v1976 = vsub.f32 %v1912, 0.6931472
        %v1977 = vsub.f32 %v1913, 0.6931472
        %v1978 = vsub.f32 %v1914, 0.6931472
        %v1979 = vsub.f32 %v1915, 0.6931472
        %v1980 = vsub.f32 %v1916, 0.6931472
        %v1981 = vsub.f32 %v1917, 0.6931472
        %v1982 = vsub.f32 %v1918, 0.6931472
        %v1983 = vpack.c.bf16 %v1920, %v1919
        %v1984 = vpack.c.bf16 %v1922, %v1921
        %v1985 = vpack.c.bf16 %v1924, %v1923
        %v1986 = vpack.c.bf16 %v1926, %v1925
        %v1987 = vpack.c.bf16 %v1928, %v1927
        %v1988 = vpack.c.bf16 %v1930, %v1929
        %v1989 = vpack.c.bf16 %v1932, %v1931
        %v1990 = vpack.c.bf16 %v1934, %v1933
        %v1991 = vpack.c.bf16 %v1936, %v1935
        %v1992 = vpack.c.bf16 %v1938, %v1937
        %v1993 = vpack.c.bf16 %v1940, %v1939
        %v1994 = vpack.c.bf16 %v1942, %v1941
        %v1995 = vpack.c.bf16 %v1944, %v1943
        %v1996 = vpack.c.bf16 %v1946, %v1945
        %v1997 = vpack.c.bf16 %v1948, %v1947
        %v1998 = vpack.c.bf16 %v1950, %v1949
        %v1999 = vpack.c.bf16 %v1952, %v1951
        %v2000 = vpack.c.bf16 %v1954, %v1953
        %v2001 = vpack.c.bf16 %v1956, %v1955
        %v2002 = vpack.c.bf16 %v1958, %v1957
        %v2003 = vpack.c.bf16 %v1960, %v1959
        %v2004 = vpack.c.bf16 %v1962, %v1961
        %v2005 = vpack.c.bf16 %v1964, %v1963
        %v2006 = vpack.c.bf16 %v1966, %v1965
        %v2007 = vpack.c.bf16 %v1968, %v1967
        %v2008 = vpack.c.bf16 %v1970, %v1969
        %v2009 = vpack.c.bf16 %v1972, %v1971
        %v2010 = vpack.c.bf16 %v1974, %v1973
        %v2011 = vpack.c.bf16 %v1976, %v1975
        %v2012 = vpack.c.bf16 %v1978, %v1977
        %v2013 = vpack.c.bf16 %v1980, %v1979
        %v2014 = vpack.c.bf16 %v1982, %v1981
        %v2015 = vld [vmem:[#allocation8] sm:$0xf]
        %v2016 = vld [vmem:[#allocation8 + $0x4] sm:$0xf]
        %v2017 = vld [vmem:[#allocation8 + $0x8] sm:$0xf]
        %v2018 = vld [vmem:[#allocation8 + $0xc] sm:$0xf]
        %v2019 = vld [vmem:[#allocation8 + $0x10] sm:$0xf]
        %v2020 = vld [vmem:[#allocation8 + $0x14] sm:$0xf]
        %v2021 = vld [vmem:[#allocation8 + $0x18] sm:$0xf]
        %v2022 = vld [vmem:[#allocation8 + $0x1c] sm:$0xf]
        %v2023 = vld [vmem:[#allocation8 + $0x20] sm:$0xf]
        %v2024 = vld [vmem:[#allocation8 + $0x24] sm:$0xf]
        %v2025 = vld [vmem:[#allocation8 + $0x28] sm:$0xf]
        %v2026 = vld [vmem:[#allocation8 + $0x2c] sm:$0xf]
        %v2027 = vld [vmem:[#allocation8 + $0x30] sm:$0xf]
        %v2028 = vld [vmem:[#allocation8 + $0x34] sm:$0xf]
        %v2029 = vld [vmem:[#allocation8 + $0x38] sm:$0xf]
        %v2030 = vld [vmem:[#allocation8 + $0x3c] sm:$0xf]
        %v2031 = vld [vmem:[%s5] sm:$0x1]
        %v2033 = vlaneseq
        %v2034 = vshrl.u32 %v2033, 7
        %v2035 = vsub.s32 0, %v2034
        %v2036 = vrot.slane %v2031, %v2035
        %v2054 = vunpack.c.l.b16 %v2015
        %v2055 = vunpack.c.l.b16 %v2016
        %v2056 = vunpack.c.l.b16 %v2017
        %v2057 = vunpack.c.l.b16 %v2018
        %v2058 = vunpack.c.l.b16 %v2019
        %v2059 = vunpack.c.l.b16 %v2020
        %v2060 = vunpack.c.l.b16 %v2021
        %v2061 = vunpack.c.l.b16 %v2022
        %v2062 = vunpack.c.l.b16 %v2023
        %v2063 = vunpack.c.l.b16 %v2024
        %v2064 = vunpack.c.l.b16 %v2025
        %v2065 = vunpack.c.l.b16 %v2026
        %v2066 = vunpack.c.l.b16 %v2027
        %v2067 = vunpack.c.l.b16 %v2028
        %v2068 = vunpack.c.l.b16 %v2029
        %v2069 = vunpack.c.l.b16 %v2030
        %v2070 = vpack.c.b16 %v2055, %v2054
        %v2071 = vpack.c.b16 %v2057, %v2056
        %v2072 = vpack.c.b16 %v2059, %v2058
        %v2073 = vpack.c.b16 %v2061, %v2060
        %v2074 = vpack.c.b16 %v2063, %v2062
        %v2075 = vpack.c.b16 %v2065, %v2064
        %v2076 = vpack.c.b16 %v2067, %v2066
        %v2077 = vpack.c.b16 %v2069, %v2068
        %2086 = vmatprep.subr.bf16.mxu0 0
        %2087 = vmatpush1.bf16.msra.mxu0 %v2077
        %2088 = vmatprep.subr.bf16.mxu0 0
        %2089 = vmatpush1.bf16.msra.mxu0 %v2076
        %2090 = vmatprep.subr.bf16.mxu0 0
        %2091 = vmatpush1.bf16.msra.mxu0 %v2075
        %2092 = vmatprep.subr.bf16.mxu0 0
        %2093 = vmatpush1.bf16.msra.mxu0 %v2074
        %2094 = vmatprep.subr.bf16.mxu0 0
        %2095 = vmatpush1.bf16.msra.mxu0 %v2073
        %2096 = vmatprep.subr.bf16.mxu0 0
        %2097 = vmatpush1.bf16.msra.mxu0 %v2072
        %2098 = vmatprep.subr.bf16.mxu0 0
        %2099 = vmatpush1.bf16.msra.mxu0 %v2071
        %2100 = vmatprep.subr.bf16.mxu0 0
        %2101 = vmatpush1.bf16.msra.mxu0 %v2070
        %2102 = vmatprep.subr.bf16.mxu0 0
        %2103 = vmatpush2.bf16.msra.mxu0 0
        %2104 = vmatprep.subr.bf16.mxu0 0
        %2105 = vmatpush2.bf16.msra.mxu0 0
        %2106 = vmatprep.subr.bf16.mxu0 0
        %2107 = vmatpush2.bf16.msra.mxu0 0
        %2108 = vmatprep.subr.bf16.mxu0 0
        %2109 = vmatpush2.bf16.msra.mxu0 0
        %2110 = vmatprep.subr.bf16.mxu0 0
        %2111 = vmatpush2.bf16.msra.mxu0 0
        %2112 = vmatprep.subr.bf16.mxu0 0
        %2113 = vmatpush2.bf16.msra.mxu0 0
        %2114 = vmatprep.subr.bf16.mxu0 0
        %2115 = vmatpush2.bf16.msra.mxu0 0
        %2116 = vmatprep.subr.bf16.mxu0 0
        %2117 = vmatpush2.bf16.msra.mxu0 0
        %2118 = vmatprep.mubr.bf16.mxu0 0
        %2119 = vmatmul.mubr.bf16.gmra.mxu0 %v1983
        %v2120 = vpop.f32.mrf.mxu0
        %v2121 = vadd.f32 %v2036, %v2120
        %v2122 = vpop.f32.mrf.mxu0
        %v2123 = vpop.f32.mrf.mxu0
        %v2124 = vadd.f32 %v2036, %v2123
        %v2125 = vpop.f32.mrf.mxu0
        %2126 = vmatprep.mubr.bf16.mxu0 0
        %2127 = vmatmul.mubr.bf16.gmra.mxu0 %v1984
        %v2128 = vpop.f32.mrf.mxu0
        %v2129 = vadd.f32 %v2036, %v2128
        %v2130 = vpop.f32.mrf.mxu0
        %v2131 = vpop.f32.mrf.mxu0
        %v2132 = vadd.f32 %v2036, %v2131
        %v2133 = vpop.f32.mrf.mxu0
        %2134 = vmatprep.mubr.bf16.mxu0 0
        %2135 = vmatmul.mubr.bf16.gmra.mxu0 %v1985
        %v2136 = vpop.f32.mrf.mxu0
        %v2137 = vadd.f32 %v2036, %v2136
        %v2138 = vpop.f32.mrf.mxu0
        %v2139 = vpop.f32.mrf.mxu0
        %v2140 = vadd.f32 %v2036, %v2139
        %v2141 = vpop.f32.mrf.mxu0
        %2142 = vmatprep.mubr.bf16.mxu0 0
        %2143 = vmatmul.mubr.bf16.gmra.mxu0 %v1986
        %v2144 = vpop.f32.mrf.mxu0
        %v2145 = vadd.f32 %v2036, %v2144
        %v2146 = vpop.f32.mrf.mxu0
        %v2147 = vpop.f32.mrf.mxu0
        %v2148 = vadd.f32 %v2036, %v2147
        %v2149 = vpop.f32.mrf.mxu0
        %2150 = vmatprep.mubr.bf16.mxu0 0
        %2151 = vmatmul.mubr.bf16.gmra.mxu0 %v1987
        %v2152 = vpop.f32.mrf.mxu0
        %v2153 = vadd.f32 %v2036, %v2152
        %v2154 = vpop.f32.mrf.mxu0
        %v2155 = vpop.f32.mrf.mxu0
        %v2156 = vadd.f32 %v2036, %v2155
        %v2157 = vpop.f32.mrf.mxu0
        %2158 = vmatprep.mubr.bf16.mxu0 0
        %2159 = vmatmul.mubr.bf16.gmra.mxu0 %v1988
        %v2160 = vpop.f32.mrf.mxu0
        %v2161 = vadd.f32 %v2036, %v2160
        %v2162 = vpop.f32.mrf.mxu0
        %v2163 = vpop.f32.mrf.mxu0
        %v2164 = vadd.f32 %v2036, %v2163
        %v2165 = vpop.f32.mrf.mxu0
        %2166 = vmatprep.mubr.bf16.mxu0 0
        %2167 = vmatmul.mubr.bf16.gmra.mxu0 %v1989
        %v2168 = vpop.f32.mrf.mxu0
        %v2169 = vadd.f32 %v2036, %v2168
        %v2170 = vpop.f32.mrf.mxu0
        %v2171 = vpop.f32.mrf.mxu0
        %v2172 = vadd.f32 %v2036, %v2171
        %v2173 = vpop.f32.mrf.mxu0
        %2174 = vmatprep.mubr.bf16.mxu0 0
        %2175 = vmatmul.mubr.bf16.gmra.mxu0 %v1990
        %v2176 = vpop.f32.mrf.mxu0
        %v2177 = vadd.f32 %v2036, %v2176
        %v2178 = vpop.f32.mrf.mxu0
        %v2179 = vpop.f32.mrf.mxu0
        %v2180 = vadd.f32 %v2036, %v2179
        %v2181 = vpop.f32.mrf.mxu0
        %2182 = vmatprep.mubr.bf16.mxu0 0
        %2183 = vmatmul.mubr.bf16.gmra.mxu0 %v1991
        %v2184 = vpop.f32.mrf.mxu0
        %v2185 = vadd.f32 %v2036, %v2184
        %v2186 = vpop.f32.mrf.mxu0
        %v2187 = vpop.f32.mrf.mxu0
        %v2188 = vadd.f32 %v2036, %v2187
        %v2189 = vpop.f32.mrf.mxu0
        %2190 = vmatprep.mubr.bf16.mxu0 0
        %2191 = vmatmul.mubr.bf16.gmra.mxu0 %v1992
        %v2192 = vpop.f32.mrf.mxu0
        %v2193 = vadd.f32 %v2036, %v2192
        %v2194 = vpop.f32.mrf.mxu0
        %v2195 = vpop.f32.mrf.mxu0
        %v2196 = vadd.f32 %v2036, %v2195
        %v2197 = vpop.f32.mrf.mxu0
        %2198 = vmatprep.mubr.bf16.mxu0 0
        %2199 = vmatmul.mubr.bf16.gmra.mxu0 %v1993
        %v2200 = vpop.f32.mrf.mxu0
        %v2201 = vadd.f32 %v2036, %v2200
        %v2202 = vpop.f32.mrf.mxu0
        %v2203 = vpop.f32.mrf.mxu0
        %v2204 = vadd.f32 %v2036, %v2203
        %v2205 = vpop.f32.mrf.mxu0
        %2206 = vmatprep.mubr.bf16.mxu0 0
        %2207 = vmatmul.mubr.bf16.gmra.mxu0 %v1994
        %v2208 = vpop.f32.mrf.mxu0
        %v2209 = vadd.f32 %v2036, %v2208
        %v2210 = vpop.f32.mrf.mxu0
        %v2211 = vpop.f32.mrf.mxu0
        %v2212 = vadd.f32 %v2036, %v2211
        %v2213 = vpop.f32.mrf.mxu0
        %2214 = vmatprep.mubr.bf16.mxu0 0
        %2215 = vmatmul.mubr.bf16.gmra.mxu0 %v1995
        %v2216 = vpop.f32.mrf.mxu0
        %v2217 = vadd.f32 %v2036, %v2216
        %v2218 = vpop.f32.mrf.mxu0
        %v2219 = vpop.f32.mrf.mxu0
        %v2220 = vadd.f32 %v2036, %v2219
        %v2221 = vpop.f32.mrf.mxu0
        %2222 = vmatprep.mubr.bf16.mxu0 0
        %2223 = vmatmul.mubr.bf16.gmra.mxu0 %v1996
        %v2224 = vpop.f32.mrf.mxu0
        %v2225 = vadd.f32 %v2036, %v2224
        %v2226 = vpop.f32.mrf.mxu0
        %v2227 = vpop.f32.mrf.mxu0
        %v2228 = vadd.f32 %v2036, %v2227
        %v2229 = vpop.f32.mrf.mxu0
        %2230 = vmatprep.mubr.bf16.mxu0 0
        %2231 = vmatmul.mubr.bf16.gmra.mxu0 %v1997
        %v2232 = vpop.f32.mrf.mxu0
        %v2233 = vadd.f32 %v2036, %v2232
        %v2234 = vpop.f32.mrf.mxu0
        %v2235 = vpop.f32.mrf.mxu0
        %v2236 = vadd.f32 %v2036, %v2235
        %v2237 = vpop.f32.mrf.mxu0
        %2238 = vmatprep.mubr.bf16.mxu0 0
        %2239 = vmatmul.mubr.bf16.gmra.mxu0 %v1998
        %v2240 = vpop.f32.mrf.mxu0
        %v2241 = vadd.f32 %v2036, %v2240
        %v2242 = vpop.f32.mrf.mxu0
        %v2243 = vpop.f32.mrf.mxu0
        %v2244 = vadd.f32 %v2036, %v2243
        %v2245 = vpop.f32.mrf.mxu0
        %2246 = vmatprep.mubr.bf16.mxu0 0
        %2247 = vmatmul.mubr.bf16.gmra.mxu0 %v1999
        %v2248 = vpop.f32.mrf.mxu0
        %v2249 = vadd.f32 %v2036, %v2248
        %v2250 = vpop.f32.mrf.mxu0
        %v2251 = vpop.f32.mrf.mxu0
        %v2252 = vadd.f32 %v2036, %v2251
        %v2253 = vpop.f32.mrf.mxu0
        %2254 = vmatprep.mubr.bf16.mxu0 0
        %2255 = vmatmul.mubr.bf16.gmra.mxu0 %v2000
        %v2256 = vpop.f32.mrf.mxu0
        %v2257 = vadd.f32 %v2036, %v2256
        %v2258 = vpop.f32.mrf.mxu0
        %v2259 = vpop.f32.mrf.mxu0
        %v2260 = vadd.f32 %v2036, %v2259
        %v2261 = vpop.f32.mrf.mxu0
        %2262 = vmatprep.mubr.bf16.mxu0 0
        %2263 = vmatmul.mubr.bf16.gmra.mxu0 %v2001
        %v2264 = vpop.f32.mrf.mxu0
        %v2265 = vadd.f32 %v2036, %v2264
        %v2266 = vpop.f32.mrf.mxu0
        %v2267 = vpop.f32.mrf.mxu0
        %v2268 = vadd.f32 %v2036, %v2267
        %v2269 = vpop.f32.mrf.mxu0
        %2270 = vmatprep.mubr.bf16.mxu0 0
        %2271 = vmatmul.mubr.bf16.gmra.mxu0 %v2002
        %v2272 = vpop.f32.mrf.mxu0
        %v2273 = vadd.f32 %v2036, %v2272
        %v2274 = vpop.f32.mrf.mxu0
        %v2275 = vpop.f32.mrf.mxu0
        %v2276 = vadd.f32 %v2036, %v2275
        %v2277 = vpop.f32.mrf.mxu0
        %2278 = vmatprep.mubr.bf16.mxu0 0
        %2279 = vmatmul.mubr.bf16.gmra.mxu0 %v2003
        %v2280 = vpop.f32.mrf.mxu0
        %v2281 = vadd.f32 %v2036, %v2280
        %v2282 = vpop.f32.mrf.mxu0
        %v2283 = vpop.f32.mrf.mxu0
        %v2284 = vadd.f32 %v2036, %v2283
        %v2285 = vpop.f32.mrf.mxu0
        %2286 = vmatprep.mubr.bf16.mxu0 0
        %2287 = vmatmul.mubr.bf16.gmra.mxu0 %v2004
        %v2288 = vpop.f32.mrf.mxu0
        %v2289 = vadd.f32 %v2036, %v2288
        %v2290 = vpop.f32.mrf.mxu0
        %v2291 = vpop.f32.mrf.mxu0
        %v2292 = vadd.f32 %v2036, %v2291
        %v2293 = vpop.f32.mrf.mxu0
        %2294 = vmatprep.mubr.bf16.mxu0 0
        %2295 = vmatmul.mubr.bf16.gmra.mxu0 %v2005
        %v2296 = vpop.f32.mrf.mxu0
        %v2297 = vadd.f32 %v2036, %v2296
        %v2298 = vpop.f32.mrf.mxu0
        %v2299 = vpop.f32.mrf.mxu0
        %v2300 = vadd.f32 %v2036, %v2299
        %v2301 = vpop.f32.mrf.mxu0
        %2302 = vmatprep.mubr.bf16.mxu0 0
        %2303 = vmatmul.mubr.bf16.gmra.mxu0 %v2006
        %v2304 = vpop.f32.mrf.mxu0
        %v2305 = vadd.f32 %v2036, %v2304
        %v2306 = vpop.f32.mrf.mxu0
        %v2307 = vpop.f32.mrf.mxu0
        %v2308 = vadd.f32 %v2036, %v2307
        %v2309 = vpop.f32.mrf.mxu0
        %2310 = vmatprep.mubr.bf16.mxu0 0
        %2311 = vmatmul.mubr.bf16.gmra.mxu0 %v2007
        %v2312 = vpop.f32.mrf.mxu0
        %v2313 = vadd.f32 %v2036, %v2312
        %v2314 = vpop.f32.mrf.mxu0
        %v2315 = vpop.f32.mrf.mxu0
        %v2316 = vadd.f32 %v2036, %v2315
        %v2317 = vpop.f32.mrf.mxu0
        %2318 = vmatprep.mubr.bf16.mxu0 0
        %2319 = vmatmul.mubr.bf16.gmra.mxu0 %v2008
        %v2320 = vpop.f32.mrf.mxu0
        %v2321 = vadd.f32 %v2036, %v2320
        %v2322 = vpop.f32.mrf.mxu0
        %v2323 = vpop.f32.mrf.mxu0
        %v2324 = vadd.f32 %v2036, %v2323
        %v2325 = vpop.f32.mrf.mxu0
        %2326 = vmatprep.mubr.bf16.mxu0 0
        %2327 = vmatmul.mubr.bf16.gmra.mxu0 %v2009
        %v2328 = vpop.f32.mrf.mxu0
        %v2329 = vadd.f32 %v2036, %v2328
        %v2330 = vpop.f32.mrf.mxu0
        %v2331 = vpop.f32.mrf.mxu0
        %v2332 = vadd.f32 %v2036, %v2331
        %v2333 = vpop.f32.mrf.mxu0
        %2334 = vmatprep.mubr.bf16.mxu0 0
        %2335 = vmatmul.mubr.bf16.gmra.mxu0 %v2010
        %v2336 = vpop.f32.mrf.mxu0
        %v2337 = vadd.f32 %v2036, %v2336
        %v2338 = vpop.f32.mrf.mxu0
        %v2339 = vpop.f32.mrf.mxu0
        %v2340 = vadd.f32 %v2036, %v2339
        %v2341 = vpop.f32.mrf.mxu0
        %2342 = vmatprep.mubr.bf16.mxu0 0
        %2343 = vmatmul.mubr.bf16.gmra.mxu0 %v2011
        %v2344 = vpop.f32.mrf.mxu0
        %v2345 = vadd.f32 %v2036, %v2344
        %v2346 = vpop.f32.mrf.mxu0
        %v2347 = vpop.f32.mrf.mxu0
        %v2348 = vadd.f32 %v2036, %v2347
        %v2349 = vpop.f32.mrf.mxu0
        %2350 = vmatprep.mubr.bf16.mxu0 0
        %2351 = vmatmul.mubr.bf16.gmra.mxu0 %v2012
        %v2352 = vpop.f32.mrf.mxu0
        %v2353 = vadd.f32 %v2036, %v2352
        %v2354 = vpop.f32.mrf.mxu0
        %v2355 = vpop.f32.mrf.mxu0
        %v2356 = vadd.f32 %v2036, %v2355
        %v2357 = vpop.f32.mrf.mxu0
        %2358 = vmatprep.mubr.bf16.mxu0 0
        %2359 = vmatmul.mubr.bf16.gmra.mxu0 %v2013
        %v2360 = vpop.f32.mrf.mxu0
        %v2361 = vadd.f32 %v2036, %v2360
        %v2362 = vpop.f32.mrf.mxu0
        %v2363 = vpop.f32.mrf.mxu0
        %v2364 = vadd.f32 %v2036, %v2363
        %v2365 = vpop.f32.mrf.mxu0
        %2366 = vmatprep.mubr.bf16.mxu0 0
        %2367 = vmatmul.mubr.bf16.gmra.mxu0 %v2014
        %v2368 = vpop.f32.mrf.mxu0
        %v2369 = vadd.f32 %v2036, %v2368
        %v2370 = vpop.f32.mrf.mxu0
        %v2371 = vpop.f32.mrf.mxu0
        %v2372 = vadd.f32 %v2036, %v2371
        %v2373 = vpop.f32.mrf.mxu0
        %2374 = vdwg.mxu0
        %v2375 = vmax.f32 %v2121, 0.0
        %v2376 = vmax.f32 %v2124, 0.0
        %v2377 = vmax.f32 %v2129, 0.0
        %v2378 = vmax.f32 %v2132, 0.0
        %v2379 = vmax.f32 %v2137, 0.0
        %v2380 = vmax.f32 %v2140, 0.0
        %v2381 = vmax.f32 %v2145, 0.0
        %v2382 = vmax.f32 %v2148, 0.0
        %v2383 = vmax.f32 %v2153, 0.0
        %v2384 = vmax.f32 %v2156, 0.0
        %v2385 = vmax.f32 %v2161, 0.0
        %v2386 = vmax.f32 %v2164, 0.0
        %v2387 = vmax.f32 %v2169, 0.0
        %v2388 = vmax.f32 %v2172, 0.0
        %v2389 = vmax.f32 %v2177, 0.0
        %v2390 = vmax.f32 %v2180, 0.0
        %v2391 = vmax.f32 %v2185, 0.0
        %v2392 = vmax.f32 %v2188, 0.0
        %v2393 = vmax.f32 %v2193, 0.0
        %v2394 = vmax.f32 %v2196, 0.0
        %v2395 = vmax.f32 %v2201, 0.0
        %v2396 = vmax.f32 %v2204, 0.0
        %v2397 = vmax.f32 %v2209, 0.0
        %v2398 = vmax.f32 %v2212, 0.0
        %v2399 = vmax.f32 %v2217, 0.0
        %v2400 = vmax.f32 %v2220, 0.0
        %v2401 = vmax.f32 %v2225, 0.0
        %v2402 = vmax.f32 %v2228, 0.0
        %v2403 = vmax.f32 %v2233, 0.0
        %v2404 = vmax.f32 %v2236, 0.0
        %v2405 = vmax.f32 %v2241, 0.0
        %v2406 = vmax.f32 %v2244, 0.0
        %v2407 = vmax.f32 %v2249, 0.0
        %v2408 = vmax.f32 %v2252, 0.0
        %v2409 = vmax.f32 %v2257, 0.0
        %v2410 = vmax.f32 %v2260, 0.0
        %v2411 = vmax.f32 %v2265, 0.0
        %v2412 = vmax.f32 %v2268, 0.0
        %v2413 = vmax.f32 %v2273, 0.0
        %v2414 = vmax.f32 %v2276, 0.0
        %v2415 = vmax.f32 %v2281, 0.0
        %v2416 = vmax.f32 %v2284, 0.0
        %v2417 = vmax.f32 %v2289, 0.0
        %v2418 = vmax.f32 %v2292, 0.0
        %v2419 = vmax.f32 %v2297, 0.0
        %v2420 = vmax.f32 %v2300, 0.0
        %v2421 = vmax.f32 %v2305, 0.0
        %v2422 = vmax.f32 %v2308, 0.0
        %v2423 = vmax.f32 %v2313, 0.0
        %v2424 = vmax.f32 %v2316, 0.0
        %v2425 = vmax.f32 %v2321, 0.0
        %v2426 = vmax.f32 %v2324, 0.0
        %v2427 = vmax.f32 %v2329, 0.0
        %v2428 = vmax.f32 %v2332, 0.0
        %v2429 = vmax.f32 %v2337, 0.0
        %v2430 = vmax.f32 %v2340, 0.0
        %v2431 = vmax.f32 %v2345, 0.0
        %v2432 = vmax.f32 %v2348, 0.0
        %v2433 = vmax.f32 %v2353, 0.0
        %v2434 = vmax.f32 %v2356, 0.0
        %v2435 = vmax.f32 %v2361, 0.0
        %v2436 = vmax.f32 %v2364, 0.0
        %v2437 = vmax.f32 %v2369, 0.0
        %v2438 = vmax.f32 %v2372, 0.0
        %v2439 = vand.u32 2147483647, %v2121
        %v2440 = vand.u32 2147483647, %v2124
        %v2441 = vand.u32 2147483647, %v2129
        %v2442 = vand.u32 2147483647, %v2132
        %v2443 = vand.u32 2147483647, %v2137
        %v2444 = vand.u32 2147483647, %v2140
        %v2445 = vand.u32 2147483647, %v2145
        %v2446 = vand.u32 2147483647, %v2148
        %v2447 = vand.u32 2147483647, %v2153
        %v2448 = vand.u32 2147483647, %v2156
        %v2449 = vand.u32 2147483647, %v2161
        %v2450 = vand.u32 2147483647, %v2164
        %v2451 = vand.u32 2147483647, %v2169
        %v2452 = vand.u32 2147483647, %v2172
        %v2453 = vand.u32 2147483647, %v2177
        %v2454 = vand.u32 2147483647, %v2180
        %v2455 = vand.u32 2147483647, %v2185
        %v2456 = vand.u32 2147483647, %v2188
        %v2457 = vand.u32 2147483647, %v2193
        %v2458 = vand.u32 2147483647, %v2196
        %v2459 = vand.u32 2147483647, %v2201
        %v2460 = vand.u32 2147483647, %v2204
        %v2461 = vand.u32 2147483647, %v2209
        %v2462 = vand.u32 2147483647, %v2212
        %v2463 = vand.u32 2147483647, %v2217
        %v2464 = vand.u32 2147483647, %v2220
        %v2465 = vand.u32 2147483647, %v2225
        %v2466 = vand.u32 2147483647, %v2228
        %v2467 = vand.u32 2147483647, %v2233
        %v2468 = vand.u32 2147483647, %v2236
        %v2469 = vand.u32 2147483647, %v2241
        %v2470 = vand.u32 2147483647, %v2244
        %v2471 = vand.u32 2147483647, %v2249
        %v2472 = vand.u32 2147483647, %v2252
        %v2473 = vand.u32 2147483647, %v2257
        %v2474 = vand.u32 2147483647, %v2260
        %v2475 = vand.u32 2147483647, %v2265
        %v2476 = vand.u32 2147483647, %v2268
        %v2477 = vand.u32 2147483647, %v2273
        %v2478 = vand.u32 2147483647, %v2276
        %v2479 = vand.u32 2147483647, %v2281
        %v2480 = vand.u32 2147483647, %v2284
        %v2481 = vand.u32 2147483647, %v2289
        %v2482 = vand.u32 2147483647, %v2292
        %v2483 = vand.u32 2147483647, %v2297
        %v2484 = vand.u32 2147483647, %v2300
        %v2485 = vand.u32 2147483647, %v2305
        %v2486 = vand.u32 2147483647, %v2308
        %v2487 = vand.u32 2147483647, %v2313
        %v2488 = vand.u32 2147483647, %v2316
        %v2489 = vand.u32 2147483647, %v2321
        %v2490 = vand.u32 2147483647, %v2324
        %v2491 = vand.u32 2147483647, %v2329
        %v2492 = vand.u32 2147483647, %v2332
        %v2493 = vand.u32 2147483647, %v2337
        %v2494 = vand.u32 2147483647, %v2340
        %v2495 = vand.u32 2147483647, %v2345
        %v2496 = vand.u32 2147483647, %v2348
        %v2497 = vand.u32 2147483647, %v2353
        %v2498 = vand.u32 2147483647, %v2356
        %v2499 = vand.u32 2147483647, %v2361
        %v2500 = vand.u32 2147483647, %v2364
        %v2501 = vand.u32 2147483647, %v2369
        %v2502 = vand.u32 2147483647, %v2372
        %v2503 = vsub.f32 0.0, %v2439
        %v2504 = vsub.f32 0.0, %v2440
        %v2505 = vsub.f32 0.0, %v2441
        %v2506 = vsub.f32 0.0, %v2442
        %v2507 = vsub.f32 0.0, %v2443
        %v2508 = vsub.f32 0.0, %v2444
        %v2509 = vsub.f32 0.0, %v2445
        %v2510 = vsub.f32 0.0, %v2446
        %v2511 = vsub.f32 0.0, %v2447
        %v2512 = vsub.f32 0.0, %v2448
        %v2513 = vsub.f32 0.0, %v2449
        %v2514 = vsub.f32 0.0, %v2450
        %v2515 = vsub.f32 0.0, %v2451
        %v2516 = vsub.f32 0.0, %v2452
        %v2517 = vsub.f32 0.0, %v2453
        %v2518 = vsub.f32 0.0, %v2454
        %v2519 = vsub.f32 0.0, %v2455
        %v2520 = vsub.f32 0.0, %v2456
        %v2521 = vsub.f32 0.0, %v2457
        %v2522 = vsub.f32 0.0, %v2458
        %v2523 = vsub.f32 0.0, %v2459
        %v2524 = vsub.f32 0.0, %v2460
        %v2525 = vsub.f32 0.0, %v2461
        %v2526 = vsub.f32 0.0, %v2462
        %v2527 = vsub.f32 0.0, %v2463
        %v2528 = vsub.f32 0.0, %v2464
        %v2529 = vsub.f32 0.0, %v2465
        %v2530 = vsub.f32 0.0, %v2466
        %v2531 = vsub.f32 0.0, %v2467
        %v2532 = vsub.f32 0.0, %v2468
        %v2533 = vsub.f32 0.0, %v2469
        %v2534 = vsub.f32 0.0, %v2470
        %v2535 = vsub.f32 0.0, %v2471
        %v2536 = vsub.f32 0.0, %v2472
        %v2537 = vsub.f32 0.0, %v2473
        %v2538 = vsub.f32 0.0, %v2474
        %v2539 = vsub.f32 0.0, %v2475
        %v2540 = vsub.f32 0.0, %v2476
        %v2541 = vsub.f32 0.0, %v2477
        %v2542 = vsub.f32 0.0, %v2478
        %v2543 = vsub.f32 0.0, %v2479
        %v2544 = vsub.f32 0.0, %v2480
        %v2545 = vsub.f32 0.0, %v2481
        %v2546 = vsub.f32 0.0, %v2482
        %v2547 = vsub.f32 0.0, %v2483
        %v2548 = vsub.f32 0.0, %v2484
        %v2549 = vsub.f32 0.0, %v2485
        %v2550 = vsub.f32 0.0, %v2486
        %v2551 = vsub.f32 0.0, %v2487
        %v2552 = vsub.f32 0.0, %v2488
        %v2553 = vsub.f32 0.0, %v2489
        %v2554 = vsub.f32 0.0, %v2490
        %v2555 = vsub.f32 0.0, %v2491
        %v2556 = vsub.f32 0.0, %v2492
        %v2557 = vsub.f32 0.0, %v2493
        %v2558 = vsub.f32 0.0, %v2494
        %v2559 = vsub.f32 0.0, %v2495
        %v2560 = vsub.f32 0.0, %v2496
        %v2561 = vsub.f32 0.0, %v2497
        %v2562 = vsub.f32 0.0, %v2498
        %v2563 = vsub.f32 0.0, %v2499
        %v2564 = vsub.f32 0.0, %v2500
        %v2565 = vsub.f32 0.0, %v2501
        %v2566 = vsub.f32 0.0, %v2502
        %v2567 = vmul.f32 %v2503, 1.442695
        %v2568 = vpow.pop %v2567
        %v2569 = vmul.f32 %v2504, 1.442695
        %v2570 = vpow.pop %v2569
        %v2571 = vmul.f32 %v2505, 1.442695
        %v2572 = vpow.pop %v2571
        %v2573 = vmul.f32 %v2506, 1.442695
        %v2574 = vpow.pop %v2573
        %v2575 = vmul.f32 %v2507, 1.442695
        %v2576 = vpow.pop %v2575
        %v2577 = vmul.f32 %v2508, 1.442695
        %v2578 = vpow.pop %v2577
        %v2579 = vmul.f32 %v2509, 1.442695
        %v2580 = vpow.pop %v2579
        %v2581 = vmul.f32 %v2510, 1.442695
        %v2582 = vpow.pop %v2581
        %v2583 = vmul.f32 %v2511, 1.442695
        %v2584 = vpow.pop %v2583
        %v2585 = vmul.f32 %v2512, 1.442695
        %v2586 = vpow.pop %v2585
        %v2587 = vmul.f32 %v2513, 1.442695
        %v2588 = vpow.pop %v2587
        %v2589 = vmul.f32 %v2514, 1.442695
        %v2590 = vpow.pop %v2589
        %v2591 = vmul.f32 %v2515, 1.442695
        %v2592 = vpow.pop %v2591
        %v2593 = vmul.f32 %v2516, 1.442695
        %v2594 = vpow.pop %v2593
        %v2595 = vmul.f32 %v2517, 1.442695
        %v2596 = vpow.pop %v2595
        %v2597 = vmul.f32 %v2518, 1.442695
        %v2598 = vpow.pop %v2597
        %v2599 = vmul.f32 %v2519, 1.442695
        %v2600 = vpow.pop %v2599
        %v2601 = vmul.f32 %v2520, 1.442695
        %v2602 = vpow.pop %v2601
        %v2603 = vmul.f32 %v2521, 1.442695
        %v2604 = vpow.pop %v2603
        %v2605 = vmul.f32 %v2522, 1.442695
        %v2606 = vpow.pop %v2605
        %v2607 = vmul.f32 %v2523, 1.442695
        %v2608 = vpow.pop %v2607
        %v2609 = vmul.f32 %v2524, 1.442695
        %v2610 = vpow.pop %v2609
        %v2611 = vmul.f32 %v2525, 1.442695
        %v2612 = vpow.pop %v2611
        %v2613 = vmul.f32 %v2526, 1.442695
        %v2614 = vpow.pop %v2613
        %v2615 = vmul.f32 %v2527, 1.442695
        %v2616 = vpow.pop %v2615
        %v2617 = vmul.f32 %v2528, 1.442695
        %v2618 = vpow.pop %v2617
        %v2619 = vmul.f32 %v2529, 1.442695
        %v2620 = vpow.pop %v2619
        %v2621 = vmul.f32 %v2530, 1.442695
        %v2622 = vpow.pop %v2621
        %v2623 = vmul.f32 %v2531, 1.442695
        %v2624 = vpow.pop %v2623
        %v2625 = vmul.f32 %v2532, 1.442695
        %v2626 = vpow.pop %v2625
        %v2627 = vmul.f32 %v2533, 1.442695
        %v2628 = vpow.pop %v2627
        %v2629 = vmul.f32 %v2534, 1.442695
        %v2630 = vpow.pop %v2629
        %v2631 = vmul.f32 %v2535, 1.442695
        %v2632 = vpow.pop %v2631
        %v2633 = vmul.f32 %v2536, 1.442695
        %v2634 = vpow.pop %v2633
        %v2635 = vmul.f32 %v2537, 1.442695
        %v2636 = vpow.pop %v2635
        %v2637 = vmul.f32 %v2538, 1.442695
        %v2638 = vpow.pop %v2637
        %v2639 = vmul.f32 %v2539, 1.442695
        %v2640 = vpow.pop %v2639
        %v2641 = vmul.f32 %v2540, 1.442695
        %v2642 = vpow.pop %v2641
        %v2643 = vmul.f32 %v2541, 1.442695
        %v2644 = vpow.pop %v2643
        %v2645 = vmul.f32 %v2542, 1.442695
        %v2646 = vpow.pop %v2645
        %v2647 = vmul.f32 %v2543, 1.442695
        %v2648 = vpow.pop %v2647
        %v2649 = vmul.f32 %v2544, 1.442695
        %v2650 = vpow.pop %v2649
        %v2651 = vmul.f32 %v2545, 1.442695
        %v2652 = vpow.pop %v2651
        %v2653 = vmul.f32 %v2546, 1.442695
        %v2654 = vpow.pop %v2653
        %v2655 = vmul.f32 %v2547, 1.442695
        %v2656 = vpow.pop %v2655
        %v2657 = vmul.f32 %v2548, 1.442695
        %v2658 = vpow.pop %v2657
        %v2659 = vmul.f32 %v2549, 1.442695
        %v2660 = vpow.pop %v2659
        %v2661 = vmul.f32 %v2550, 1.442695
        %v2662 = vpow.pop %v2661
        %v2663 = vmul.f32 %v2551, 1.442695
        %v2664 = vpow.pop %v2663
        %v2665 = vmul.f32 %v2552, 1.442695
        %v2666 = vpow.pop %v2665
        %v2667 = vmul.f32 %v2553, 1.442695
        %v2668 = vpow.pop %v2667
        %v2669 = vmul.f32 %v2554, 1.442695
        %v2670 = vpow.pop %v2669
        %v2671 = vmul.f32 %v2555, 1.442695
        %v2672 = vpow.pop %v2671
        %v2673 = vmul.f32 %v2556, 1.442695
        %v2674 = vpow.pop %v2673
        %v2675 = vmul.f32 %v2557, 1.442695
        %v2676 = vpow.pop %v2675
        %v2677 = vmul.f32 %v2558, 1.442695
        %v2678 = vpow.pop %v2677
        %v2679 = vmul.f32 %v2559, 1.442695
        %v2680 = vpow.pop %v2679
        %v2681 = vmul.f32 %v2560, 1.442695
        %v2682 = vpow.pop %v2681
        %v2683 = vmul.f32 %v2561, 1.442695
        %v2684 = vpow.pop %v2683
        %v2685 = vmul.f32 %v2562, 1.442695
        %v2686 = vpow.pop %v2685
        %v2687 = vmul.f32 %v2563, 1.442695
        %v2688 = vpow.pop %v2687
        %v2689 = vmul.f32 %v2564, 1.442695
        %v2690 = vpow.pop %v2689
        %v2691 = vmul.f32 %v2565, 1.442695
        %v2692 = vpow.pop %v2691
        %v2693 = vmul.f32 %v2566, 1.442695
        %v2694 = vpow.pop %v2693
        %v2695 = vadd.f32 %v2568, 1.0
        %v2696 = vlog2.pop %v2695
        %v2697 = vmul.f32 %v2696, 0.6931472
        %v2698 = vmul.f32 -0.5, %v2568
        %v2699 = vadd.f32 %v2698, 1.0
        %v2700 = vmul.f32 %v2699, %v2568
        %v2701 = vand.u32 2147483647, %v2568
        %vm2702 = vcmp.lt.f32.partialorder %v2701, 0.0004427343
        %v2703 = vsel %vm2702, %v2700, %v2697
        %v2704 = vadd.f32 %v2570, 1.0
        %v2705 = vlog2.pop %v2704
        %v2706 = vmul.f32 %v2705, 0.6931472
        %v2707 = vmul.f32 -0.5, %v2570
        %v2708 = vadd.f32 %v2707, 1.0
        %v2709 = vmul.f32 %v2708, %v2570
        %v2710 = vand.u32 2147483647, %v2570
        %vm2711 = vcmp.lt.f32.partialorder %v2710, 0.0004427343
        %v2712 = vsel %vm2711, %v2709, %v2706
        %v2713 = vadd.f32 %v2572, 1.0
        %v2714 = vlog2.pop %v2713
        %v2715 = vmul.f32 %v2714, 0.6931472
        %v2716 = vmul.f32 -0.5, %v2572
        %v2717 = vadd.f32 %v2716, 1.0
        %v2718 = vmul.f32 %v2717, %v2572
        %v2719 = vand.u32 2147483647, %v2572
        %vm2720 = vcmp.lt.f32.partialorder %v2719, 0.0004427343
        %v2721 = vsel %vm2720, %v2718, %v2715
        %v2722 = vadd.f32 %v2574, 1.0
        %v2723 = vlog2.pop %v2722
        %v2724 = vmul.f32 %v2723, 0.6931472
        %v2725 = vmul.f32 -0.5, %v2574
        %v2726 = vadd.f32 %v2725, 1.0
        %v2727 = vmul.f32 %v2726, %v2574
        %v2728 = vand.u32 2147483647, %v2574
        %vm2729 = vcmp.lt.f32.partialorder %v2728, 0.0004427343
        %v2730 = vsel %vm2729, %v2727, %v2724
        %v2731 = vadd.f32 %v2576, 1.0
        %v2732 = vlog2.pop %v2731
        %v2733 = vmul.f32 %v2732, 0.6931472
        %v2734 = vmul.f32 -0.5, %v2576
        %v2735 = vadd.f32 %v2734, 1.0
        %v2736 = vmul.f32 %v2735, %v2576
        %v2737 = vand.u32 2147483647, %v2576
        %vm2738 = vcmp.lt.f32.partialorder %v2737, 0.0004427343
        %v2739 = vsel %vm2738, %v2736, %v2733
        %v2740 = vadd.f32 %v2578, 1.0
        %v2741 = vlog2.pop %v2740
        %v2742 = vmul.f32 %v2741, 0.6931472
        %v2743 = vmul.f32 -0.5, %v2578
        %v2744 = vadd.f32 %v2743, 1.0
        %v2745 = vmul.f32 %v2744, %v2578
        %v2746 = vand.u32 2147483647, %v2578
        %vm2747 = vcmp.lt.f32.partialorder %v2746, 0.0004427343
        %v2748 = vsel %vm2747, %v2745, %v2742
        %v2749 = vadd.f32 %v2580, 1.0
        %v2750 = vlog2.pop %v2749
        %v2751 = vmul.f32 %v2750, 0.6931472
        %v2752 = vmul.f32 -0.5, %v2580
        %v2753 = vadd.f32 %v2752, 1.0
        %v2754 = vmul.f32 %v2753, %v2580
        %v2755 = vand.u32 2147483647, %v2580
        %vm2756 = vcmp.lt.f32.partialorder %v2755, 0.0004427343
        %v2757 = vsel %vm2756, %v2754, %v2751
        %v2758 = vadd.f32 %v2582, 1.0
        %v2759 = vlog2.pop %v2758
        %v2760 = vmul.f32 %v2759, 0.6931472
        %v2761 = vmul.f32 -0.5, %v2582
        %v2762 = vadd.f32 %v2761, 1.0
        %v2763 = vmul.f32 %v2762, %v2582
        %v2764 = vand.u32 2147483647, %v2582
        %vm2765 = vcmp.lt.f32.partialorder %v2764, 0.0004427343
        %v2766 = vsel %vm2765, %v2763, %v2760
        %v2767 = vadd.f32 %v2584, 1.0
        %v2768 = vlog2.pop %v2767
        %v2769 = vmul.f32 %v2768, 0.6931472
        %v2770 = vmul.f32 -0.5, %v2584
        %v2771 = vadd.f32 %v2770, 1.0
        %v2772 = vmul.f32 %v2771, %v2584
        %v2773 = vand.u32 2147483647, %v2584
        %vm2774 = vcmp.lt.f32.partialorder %v2773, 0.0004427343
        %v2775 = vsel %vm2774, %v2772, %v2769
        %v2776 = vadd.f32 %v2586, 1.0
        %v2777 = vlog2.pop %v2776
        %v2778 = vmul.f32 %v2777, 0.6931472
        %v2779 = vmul.f32 -0.5, %v2586
        %v2780 = vadd.f32 %v2779, 1.0
        %v2781 = vmul.f32 %v2780, %v2586
        %v2782 = vand.u32 2147483647, %v2586
        %vm2783 = vcmp.lt.f32.partialorder %v2782, 0.0004427343
        %v2784 = vsel %vm2783, %v2781, %v2778
        %v2785 = vadd.f32 %v2588, 1.0
        %v2786 = vlog2.pop %v2785
        %v2787 = vmul.f32 %v2786, 0.6931472
        %v2788 = vmul.f32 -0.5, %v2588
        %v2789 = vadd.f32 %v2788, 1.0
        %v2790 = vmul.f32 %v2789, %v2588
        %v2791 = vand.u32 2147483647, %v2588
        %vm2792 = vcmp.lt.f32.partialorder %v2791, 0.0004427343
        %v2793 = vsel %vm2792, %v2790, %v2787
        %v2794 = vadd.f32 %v2590, 1.0
        %v2795 = vlog2.pop %v2794
        %v2796 = vmul.f32 %v2795, 0.6931472
        %v2797 = vmul.f32 -0.5, %v2590
        %v2798 = vadd.f32 %v2797, 1.0
        %v2799 = vmul.f32 %v2798, %v2590
        %v2800 = vand.u32 2147483647, %v2590
        %vm2801 = vcmp.lt.f32.partialorder %v2800, 0.0004427343
        %v2802 = vsel %vm2801, %v2799, %v2796
        %v2803 = vadd.f32 %v2592, 1.0
        %v2804 = vlog2.pop %v2803
        %v2805 = vmul.f32 %v2804, 0.6931472
        %v2806 = vmul.f32 -0.5, %v2592
        %v2807 = vadd.f32 %v2806, 1.0
        %v2808 = vmul.f32 %v2807, %v2592
        %v2809 = vand.u32 2147483647, %v2592
        %vm2810 = vcmp.lt.f32.partialorder %v2809, 0.0004427343
        %v2811 = vsel %vm2810, %v2808, %v2805
        %v2812 = vadd.f32 %v2594, 1.0
        %v2813 = vlog2.pop %v2812
        %v2814 = vmul.f32 %v2813, 0.6931472
        %v2815 = vmul.f32 -0.5, %v2594
        %v2816 = vadd.f32 %v2815, 1.0
        %v2817 = vmul.f32 %v2816, %v2594
        %v2818 = vand.u32 2147483647, %v2594
        %vm2819 = vcmp.lt.f32.partialorder %v2818, 0.0004427343
        %v2820 = vsel %vm2819, %v2817, %v2814
        %v2821 = vadd.f32 %v2596, 1.0
        %v2822 = vlog2.pop %v2821
        %v2823 = vmul.f32 %v2822, 0.6931472
        %v2824 = vmul.f32 -0.5, %v2596
        %v2825 = vadd.f32 %v2824, 1.0
        %v2826 = vmul.f32 %v2825, %v2596
        %v2827 = vand.u32 2147483647, %v2596
        %vm2828 = vcmp.lt.f32.partialorder %v2827, 0.0004427343
        %v2829 = vsel %vm2828, %v2826, %v2823
        %v2830 = vadd.f32 %v2598, 1.0
        %v2831 = vlog2.pop %v2830
        %v2832 = vmul.f32 %v2831, 0.6931472
        %v2833 = vmul.f32 -0.5, %v2598
        %v2834 = vadd.f32 %v2833, 1.0
        %v2835 = vmul.f32 %v2834, %v2598
        %v2836 = vand.u32 2147483647, %v2598
        %vm2837 = vcmp.lt.f32.partialorder %v2836, 0.0004427343
        %v2838 = vsel %vm2837, %v2835, %v2832
        %v2839 = vadd.f32 %v2600, 1.0
        %v2840 = vlog2.pop %v2839
        %v2841 = vmul.f32 %v2840, 0.6931472
        %v2842 = vmul.f32 -0.5, %v2600
        %v2843 = vadd.f32 %v2842, 1.0
        %v2844 = vmul.f32 %v2843, %v2600
        %v2845 = vand.u32 2147483647, %v2600
        %vm2846 = vcmp.lt.f32.partialorder %v2845, 0.0004427343
        %v2847 = vsel %vm2846, %v2844, %v2841
        %v2848 = vadd.f32 %v2602, 1.0
        %v2849 = vlog2.pop %v2848
        %v2850 = vmul.f32 %v2849, 0.6931472
        %v2851 = vmul.f32 -0.5, %v2602
        %v2852 = vadd.f32 %v2851, 1.0
        %v2853 = vmul.f32 %v2852, %v2602
        %v2854 = vand.u32 2147483647, %v2602
        %vm2855 = vcmp.lt.f32.partialorder %v2854, 0.0004427343
        %v2856 = vsel %vm2855, %v2853, %v2850
        %v2857 = vadd.f32 %v2604, 1.0
        %v2858 = vlog2.pop %v2857
        %v2859 = vmul.f32 %v2858, 0.6931472
        %v2860 = vmul.f32 -0.5, %v2604
        %v2861 = vadd.f32 %v2860, 1.0
        %v2862 = vmul.f32 %v2861, %v2604
        %v2863 = vand.u32 2147483647, %v2604
        %vm2864 = vcmp.lt.f32.partialorder %v2863, 0.0004427343
        %v2865 = vsel %vm2864, %v2862, %v2859
        %v2866 = vadd.f32 %v2606, 1.0
        %v2867 = vlog2.pop %v2866
        %v2868 = vmul.f32 %v2867, 0.6931472
        %v2869 = vmul.f32 -0.5, %v2606
        %v2870 = vadd.f32 %v2869, 1.0
        %v2871 = vmul.f32 %v2870, %v2606
        %v2872 = vand.u32 2147483647, %v2606
        %vm2873 = vcmp.lt.f32.partialorder %v2872, 0.0004427343
        %v2874 = vsel %vm2873, %v2871, %v2868
        %v2875 = vadd.f32 %v2608, 1.0
        %v2876 = vlog2.pop %v2875
        %v2877 = vmul.f32 %v2876, 0.6931472
        %v2878 = vmul.f32 -0.5, %v2608
        %v2879 = vadd.f32 %v2878, 1.0
        %v2880 = vmul.f32 %v2879, %v2608
        %v2881 = vand.u32 2147483647, %v2608
        %vm2882 = vcmp.lt.f32.partialorder %v2881, 0.0004427343
        %v2883 = vsel %vm2882, %v2880, %v2877
        %v2884 = vadd.f32 %v2610, 1.0
        %v2885 = vlog2.pop %v2884
        %v2886 = vmul.f32 %v2885, 0.6931472
        %v2887 = vmul.f32 -0.5, %v2610
        %v2888 = vadd.f32 %v2887, 1.0
        %v2889 = vmul.f32 %v2888, %v2610
        %v2890 = vand.u32 2147483647, %v2610
        %vm2891 = vcmp.lt.f32.partialorder %v2890, 0.0004427343
        %v2892 = vsel %vm2891, %v2889, %v2886
        %v2893 = vadd.f32 %v2612, 1.0
        %v2894 = vlog2.pop %v2893
        %v2895 = vmul.f32 %v2894, 0.6931472
        %v2896 = vmul.f32 -0.5, %v2612
        %v2897 = vadd.f32 %v2896, 1.0
        %v2898 = vmul.f32 %v2897, %v2612
        %v2899 = vand.u32 2147483647, %v2612
        %vm2900 = vcmp.lt.f32.partialorder %v2899, 0.0004427343
        %v2901 = vsel %vm2900, %v2898, %v2895
        %v2902 = vadd.f32 %v2614, 1.0
        %v2903 = vlog2.pop %v2902
        %v2904 = vmul.f32 %v2903, 0.6931472
        %v2905 = vmul.f32 -0.5, %v2614
        %v2906 = vadd.f32 %v2905, 1.0
        %v2907 = vmul.f32 %v2906, %v2614
        %v2908 = vand.u32 2147483647, %v2614
        %vm2909 = vcmp.lt.f32.partialorder %v2908, 0.0004427343
        %v2910 = vsel %vm2909, %v2907, %v2904
        %v2911 = vadd.f32 %v2616, 1.0
        %v2912 = vlog2.pop %v2911
        %v2913 = vmul.f32 %v2912, 0.6931472
        %v2914 = vmul.f32 -0.5, %v2616
        %v2915 = vadd.f32 %v2914, 1.0
        %v2916 = vmul.f32 %v2915, %v2616
        %v2917 = vand.u32 2147483647, %v2616
        %vm2918 = vcmp.lt.f32.partialorder %v2917, 0.0004427343
        %v2919 = vsel %vm2918, %v2916, %v2913
        %v2920 = vadd.f32 %v2618, 1.0
        %v2921 = vlog2.pop %v2920
        %v2922 = vmul.f32 %v2921, 0.6931472
        %v2923 = vmul.f32 -0.5, %v2618
        %v2924 = vadd.f32 %v2923, 1.0
        %v2925 = vmul.f32 %v2924, %v2618
        %v2926 = vand.u32 2147483647, %v2618
        %vm2927 = vcmp.lt.f32.partialorder %v2926, 0.0004427343
        %v2928 = vsel %vm2927, %v2925, %v2922
        %v2929 = vadd.f32 %v2620, 1.0
        %v2930 = vlog2.pop %v2929
        %v2931 = vmul.f32 %v2930, 0.6931472
        %v2932 = vmul.f32 -0.5, %v2620
        %v2933 = vadd.f32 %v2932, 1.0
        %v2934 = vmul.f32 %v2933, %v2620
        %v2935 = vand.u32 2147483647, %v2620
        %vm2936 = vcmp.lt.f32.partialorder %v2935, 0.0004427343
        %v2937 = vsel %vm2936, %v2934, %v2931
        %v2938 = vadd.f32 %v2622, 1.0
        %v2939 = vlog2.pop %v2938
        %v2940 = vmul.f32 %v2939, 0.6931472
        %v2941 = vmul.f32 -0.5, %v2622
        %v2942 = vadd.f32 %v2941, 1.0
        %v2943 = vmul.f32 %v2942, %v2622
        %v2944 = vand.u32 2147483647, %v2622
        %vm2945 = vcmp.lt.f32.partialorder %v2944, 0.0004427343
        %v2946 = vsel %vm2945, %v2943, %v2940
        %v2947 = vadd.f32 %v2624, 1.0
        %v2948 = vlog2.pop %v2947
        %v2949 = vmul.f32 %v2948, 0.6931472
        %v2950 = vmul.f32 -0.5, %v2624
        %v2951 = vadd.f32 %v2950, 1.0
        %v2952 = vmul.f32 %v2951, %v2624
        %v2953 = vand.u32 2147483647, %v2624
        %vm2954 = vcmp.lt.f32.partialorder %v2953, 0.0004427343
        %v2955 = vsel %vm2954, %v2952, %v2949
        %v2956 = vadd.f32 %v2626, 1.0
        %v2957 = vlog2.pop %v2956
        %v2958 = vmul.f32 %v2957, 0.6931472
        %v2959 = vmul.f32 -0.5, %v2626
        %v2960 = vadd.f32 %v2959, 1.0
        %v2961 = vmul.f32 %v2960, %v2626
        %v2962 = vand.u32 2147483647, %v2626
        %vm2963 = vcmp.lt.f32.partialorder %v2962, 0.0004427343
        %v2964 = vsel %vm2963, %v2961, %v2958
        %v2965 = vadd.f32 %v2628, 1.0
        %v2966 = vlog2.pop %v2965
        %v2967 = vmul.f32 %v2966, 0.6931472
        %v2968 = vmul.f32 -0.5, %v2628
        %v2969 = vadd.f32 %v2968, 1.0
        %v2970 = vmul.f32 %v2969, %v2628
        %v2971 = vand.u32 2147483647, %v2628
        %vm2972 = vcmp.lt.f32.partialorder %v2971, 0.0004427343
        %v2973 = vsel %vm2972, %v2970, %v2967
        %v2974 = vadd.f32 %v2630, 1.0
        %v2975 = vlog2.pop %v2974
        %v2976 = vmul.f32 %v2975, 0.6931472
        %v2977 = vmul.f32 -0.5, %v2630
        %v2978 = vadd.f32 %v2977, 1.0
        %v2979 = vmul.f32 %v2978, %v2630
        %v2980 = vand.u32 2147483647, %v2630
        %vm2981 = vcmp.lt.f32.partialorder %v2980, 0.0004427343
        %v2982 = vsel %vm2981, %v2979, %v2976
        %v2983 = vadd.f32 %v2632, 1.0
        %v2984 = vlog2.pop %v2983
        %v2985 = vmul.f32 %v2984, 0.6931472
        %v2986 = vmul.f32 -0.5, %v2632
        %v2987 = vadd.f32 %v2986, 1.0
        %v2988 = vmul.f32 %v2987, %v2632
        %v2989 = vand.u32 2147483647, %v2632
        %vm2990 = vcmp.lt.f32.partialorder %v2989, 0.0004427343
        %v2991 = vsel %vm2990, %v2988, %v2985
        %v2992 = vadd.f32 %v2634, 1.0
        %v2993 = vlog2.pop %v2992
        %v2994 = vmul.f32 %v2993, 0.6931472
        %v2995 = vmul.f32 -0.5, %v2634
        %v2996 = vadd.f32 %v2995, 1.0
        %v2997 = vmul.f32 %v2996, %v2634
        %v2998 = vand.u32 2147483647, %v2634
        %vm2999 = vcmp.lt.f32.partialorder %v2998, 0.0004427343
        %v3000 = vsel %vm2999, %v2997, %v2994
        %v3001 = vadd.f32 %v2636, 1.0
        %v3002 = vlog2.pop %v3001
        %v3003 = vmul.f32 %v3002, 0.6931472
        %v3004 = vmul.f32 -0.5, %v2636
        %v3005 = vadd.f32 %v3004, 1.0
        %v3006 = vmul.f32 %v3005, %v2636
        %v3007 = vand.u32 2147483647, %v2636
        %vm3008 = vcmp.lt.f32.partialorder %v3007, 0.0004427343
        %v3009 = vsel %vm3008, %v3006, %v3003
        %v3010 = vadd.f32 %v2638, 1.0
        %v3011 = vlog2.pop %v3010
        %v3012 = vmul.f32 %v3011, 0.6931472
        %v3013 = vmul.f32 -0.5, %v2638
        %v3014 = vadd.f32 %v3013, 1.0
        %v3015 = vmul.f32 %v3014, %v2638
        %v3016 = vand.u32 2147483647, %v2638
        %vm3017 = vcmp.lt.f32.partialorder %v3016, 0.0004427343
        %v3018 = vsel %vm3017, %v3015, %v3012
        %v3019 = vadd.f32 %v2640, 1.0
        %v3020 = vlog2.pop %v3019
        %v3021 = vmul.f32 %v3020, 0.6931472
        %v3022 = vmul.f32 -0.5, %v2640
        %v3023 = vadd.f32 %v3022, 1.0
        %v3024 = vmul.f32 %v3023, %v2640
        %v3025 = vand.u32 2147483647, %v2640
        %vm3026 = vcmp.lt.f32.partialorder %v3025, 0.0004427343
        %v3027 = vsel %vm3026, %v3024, %v3021
        %v3028 = vadd.f32 %v2642, 1.0
        %v3029 = vlog2.pop %v3028
        %v3030 = vmul.f32 %v3029, 0.6931472
        %v3031 = vmul.f32 -0.5, %v2642
        %v3032 = vadd.f32 %v3031, 1.0
        %v3033 = vmul.f32 %v3032, %v2642
        %v3034 = vand.u32 2147483647, %v2642
        %vm3035 = vcmp.lt.f32.partialorder %v3034, 0.0004427343
        %v3036 = vsel %vm3035, %v3033, %v3030
        %v3037 = vadd.f32 %v2644, 1.0
        %v3038 = vlog2.pop %v3037
        %v3039 = vmul.f32 %v3038, 0.6931472
        %v3040 = vmul.f32 -0.5, %v2644
        %v3041 = vadd.f32 %v3040, 1.0
        %v3042 = vmul.f32 %v3041, %v2644
        %v3043 = vand.u32 2147483647, %v2644
        %vm3044 = vcmp.lt.f32.partialorder %v3043, 0.0004427343
        %v3045 = vsel %vm3044, %v3042, %v3039
        %v3046 = vadd.f32 %v2646, 1.0
        %v3047 = vlog2.pop %v3046
        %v3048 = vmul.f32 %v3047, 0.6931472
        %v3049 = vmul.f32 -0.5, %v2646
        %v3050 = vadd.f32 %v3049, 1.0
        %v3051 = vmul.f32 %v3050, %v2646
        %v3052 = vand.u32 2147483647, %v2646
        %vm3053 = vcmp.lt.f32.partialorder %v3052, 0.0004427343
        %v3054 = vsel %vm3053, %v3051, %v3048
        %v3055 = vadd.f32 %v2648, 1.0
        %v3056 = vlog2.pop %v3055
        %v3057 = vmul.f32 %v3056, 0.6931472
        %v3058 = vmul.f32 -0.5, %v2648
        %v3059 = vadd.f32 %v3058, 1.0
        %v3060 = vmul.f32 %v3059, %v2648
        %v3061 = vand.u32 2147483647, %v2648
        %vm3062 = vcmp.lt.f32.partialorder %v3061, 0.0004427343
        %v3063 = vsel %vm3062, %v3060, %v3057
        %v3064 = vadd.f32 %v2650, 1.0
        %v3065 = vlog2.pop %v3064
        %v3066 = vmul.f32 %v3065, 0.6931472
        %v3067 = vmul.f32 -0.5, %v2650
        %v3068 = vadd.f32 %v3067, 1.0
        %v3069 = vmul.f32 %v3068, %v2650
        %v3070 = vand.u32 2147483647, %v2650
        %vm3071 = vcmp.lt.f32.partialorder %v3070, 0.0004427343
        %v3072 = vsel %vm3071, %v3069, %v3066
        %v3073 = vadd.f32 %v2652, 1.0
        %v3074 = vlog2.pop %v3073
        %v3075 = vmul.f32 %v3074, 0.6931472
        %v3076 = vmul.f32 -0.5, %v2652
        %v3077 = vadd.f32 %v3076, 1.0
        %v3078 = vmul.f32 %v3077, %v2652
        %v3079 = vand.u32 2147483647, %v2652
        %vm3080 = vcmp.lt.f32.partialorder %v3079, 0.0004427343
        %v3081 = vsel %vm3080, %v3078, %v3075
        %v3082 = vadd.f32 %v2654, 1.0
        %v3083 = vlog2.pop %v3082
        %v3084 = vmul.f32 %v3083, 0.6931472
        %v3085 = vmul.f32 -0.5, %v2654
        %v3086 = vadd.f32 %v3085, 1.0
        %v3087 = vmul.f32 %v3086, %v2654
        %v3088 = vand.u32 2147483647, %v2654
        %vm3089 = vcmp.lt.f32.partialorder %v3088, 0.0004427343
        %v3090 = vsel %vm3089, %v3087, %v3084
        %v3091 = vadd.f32 %v2656, 1.0
        %v3092 = vlog2.pop %v3091
        %v3093 = vmul.f32 %v3092, 0.6931472
        %v3094 = vmul.f32 -0.5, %v2656
        %v3095 = vadd.f32 %v3094, 1.0
        %v3096 = vmul.f32 %v3095, %v2656
        %v3097 = vand.u32 2147483647, %v2656
        %vm3098 = vcmp.lt.f32.partialorder %v3097, 0.0004427343
        %v3099 = vsel %vm3098, %v3096, %v3093
        %v3100 = vadd.f32 %v2658, 1.0
        %v3101 = vlog2.pop %v3100
        %v3102 = vmul.f32 %v3101, 0.6931472
        %v3103 = vmul.f32 -0.5, %v2658
        %v3104 = vadd.f32 %v3103, 1.0
        %v3105 = vmul.f32 %v3104, %v2658
        %v3106 = vand.u32 2147483647, %v2658
        %vm3107 = vcmp.lt.f32.partialorder %v3106, 0.0004427343
        %v3108 = vsel %vm3107, %v3105, %v3102
        %v3109 = vadd.f32 %v2660, 1.0
        %v3110 = vlog2.pop %v3109
        %v3111 = vmul.f32 %v3110, 0.6931472
        %v3112 = vmul.f32 -0.5, %v2660
        %v3113 = vadd.f32 %v3112, 1.0
        %v3114 = vmul.f32 %v3113, %v2660
        %v3115 = vand.u32 2147483647, %v2660
        %vm3116 = vcmp.lt.f32.partialorder %v3115, 0.0004427343
        %v3117 = vsel %vm3116, %v3114, %v3111
        %v3118 = vadd.f32 %v2662, 1.0
        %v3119 = vlog2.pop %v3118
        %v3120 = vmul.f32 %v3119, 0.6931472
        %v3121 = vmul.f32 -0.5, %v2662
        %v3122 = vadd.f32 %v3121, 1.0
        %v3123 = vmul.f32 %v3122, %v2662
        %v3124 = vand.u32 2147483647, %v2662
        %vm3125 = vcmp.lt.f32.partialorder %v3124, 0.0004427343
        %v3126 = vsel %vm3125, %v3123, %v3120
        %v3127 = vadd.f32 %v2664, 1.0
        %v3128 = vlog2.pop %v3127
        %v3129 = vmul.f32 %v3128, 0.6931472
        %v3130 = vmul.f32 -0.5, %v2664
        %v3131 = vadd.f32 %v3130, 1.0
        %v3132 = vmul.f32 %v3131, %v2664
        %v3133 = vand.u32 2147483647, %v2664
        %vm3134 = vcmp.lt.f32.partialorder %v3133, 0.0004427343
        %v3135 = vsel %vm3134, %v3132, %v3129
        %v3136 = vadd.f32 %v2666, 1.0
        %v3137 = vlog2.pop %v3136
        %v3138 = vmul.f32 %v3137, 0.6931472
        %v3139 = vmul.f32 -0.5, %v2666
        %v3140 = vadd.f32 %v3139, 1.0
        %v3141 = vmul.f32 %v3140, %v2666
        %v3142 = vand.u32 2147483647, %v2666
        %vm3143 = vcmp.lt.f32.partialorder %v3142, 0.0004427343
        %v3144 = vsel %vm3143, %v3141, %v3138
        %v3145 = vadd.f32 %v2668, 1.0
        %v3146 = vlog2.pop %v3145
        %v3147 = vmul.f32 %v3146, 0.6931472
        %v3148 = vmul.f32 -0.5, %v2668
        %v3149 = vadd.f32 %v3148, 1.0
        %v3150 = vmul.f32 %v3149, %v2668
        %v3151 = vand.u32 2147483647, %v2668
        %vm3152 = vcmp.lt.f32.partialorder %v3151, 0.0004427343
        %v3153 = vsel %vm3152, %v3150, %v3147
        %v3154 = vadd.f32 %v2670, 1.0
        %v3155 = vlog2.pop %v3154
        %v3156 = vmul.f32 %v3155, 0.6931472
        %v3157 = vmul.f32 -0.5, %v2670
        %v3158 = vadd.f32 %v3157, 1.0
        %v3159 = vmul.f32 %v3158, %v2670
        %v3160 = vand.u32 2147483647, %v2670
        %vm3161 = vcmp.lt.f32.partialorder %v3160, 0.0004427343
        %v3162 = vsel %vm3161, %v3159, %v3156
        %v3163 = vadd.f32 %v2672, 1.0
        %v3164 = vlog2.pop %v3163
        %v3165 = vmul.f32 %v3164, 0.6931472
        %v3166 = vmul.f32 -0.5, %v2672
        %v3167 = vadd.f32 %v3166, 1.0
        %v3168 = vmul.f32 %v3167, %v2672
        %v3169 = vand.u32 2147483647, %v2672
        %vm3170 = vcmp.lt.f32.partialorder %v3169, 0.0004427343
        %v3171 = vsel %vm3170, %v3168, %v3165
        %v3172 = vadd.f32 %v2674, 1.0
        %v3173 = vlog2.pop %v3172
        %v3174 = vmul.f32 %v3173, 0.6931472
        %v3175 = vmul.f32 -0.5, %v2674
        %v3176 = vadd.f32 %v3175, 1.0
        %v3177 = vmul.f32 %v3176, %v2674
        %v3178 = vand.u32 2147483647, %v2674
        %vm3179 = vcmp.lt.f32.partialorder %v3178, 0.0004427343
        %v3180 = vsel %vm3179, %v3177, %v3174
        %v3181 = vadd.f32 %v2676, 1.0
        %v3182 = vlog2.pop %v3181
        %v3183 = vmul.f32 %v3182, 0.6931472
        %v3184 = vmul.f32 -0.5, %v2676
        %v3185 = vadd.f32 %v3184, 1.0
        %v3186 = vmul.f32 %v3185, %v2676
        %v3187 = vand.u32 2147483647, %v2676
        %vm3188 = vcmp.lt.f32.partialorder %v3187, 0.0004427343
        %v3189 = vsel %vm3188, %v3186, %v3183
        %v3190 = vadd.f32 %v2678, 1.0
        %v3191 = vlog2.pop %v3190
        %v3192 = vmul.f32 %v3191, 0.6931472
        %v3193 = vmul.f32 -0.5, %v2678
        %v3194 = vadd.f32 %v3193, 1.0
        %v3195 = vmul.f32 %v3194, %v2678
        %v3196 = vand.u32 2147483647, %v2678
        %vm3197 = vcmp.lt.f32.partialorder %v3196, 0.0004427343
        %v3198 = vsel %vm3197, %v3195, %v3192
        %v3199 = vadd.f32 %v2680, 1.0
        %v3200 = vlog2.pop %v3199
        %v3201 = vmul.f32 %v3200, 0.6931472
        %v3202 = vmul.f32 -0.5, %v2680
        %v3203 = vadd.f32 %v3202, 1.0
        %v3204 = vmul.f32 %v3203, %v2680
        %v3205 = vand.u32 2147483647, %v2680
        %vm3206 = vcmp.lt.f32.partialorder %v3205, 0.0004427343
        %v3207 = vsel %vm3206, %v3204, %v3201
        %v3208 = vadd.f32 %v2682, 1.0
        %v3209 = vlog2.pop %v3208
        %v3210 = vmul.f32 %v3209, 0.6931472
        %v3211 = vmul.f32 -0.5, %v2682
        %v3212 = vadd.f32 %v3211, 1.0
        %v3213 = vmul.f32 %v3212, %v2682
        %v3214 = vand.u32 2147483647, %v2682
        %vm3215 = vcmp.lt.f32.partialorder %v3214, 0.0004427343
        %v3216 = vsel %vm3215, %v3213, %v3210
        %v3217 = vadd.f32 %v2684, 1.0
        %v3218 = vlog2.pop %v3217
        %v3219 = vmul.f32 %v3218, 0.6931472
        %v3220 = vmul.f32 -0.5, %v2684
        %v3221 = vadd.f32 %v3220, 1.0
        %v3222 = vmul.f32 %v3221, %v2684
        %v3223 = vand.u32 2147483647, %v2684
        %vm3224 = vcmp.lt.f32.partialorder %v3223, 0.0004427343
        %v3225 = vsel %vm3224, %v3222, %v3219
        %v3226 = vadd.f32 %v2686, 1.0
        %v3227 = vlog2.pop %v3226
        %v3228 = vmul.f32 %v3227, 0.6931472
        %v3229 = vmul.f32 -0.5, %v2686
        %v3230 = vadd.f32 %v3229, 1.0
        %v3231 = vmul.f32 %v3230, %v2686
        %v3232 = vand.u32 2147483647, %v2686
        %vm3233 = vcmp.lt.f32.partialorder %v3232, 0.0004427343
        %v3234 = vsel %vm3233, %v3231, %v3228
        %v3235 = vadd.f32 %v2688, 1.0
        %v3236 = vlog2.pop %v3235
        %v3237 = vmul.f32 %v3236, 0.6931472
        %v3238 = vmul.f32 -0.5, %v2688
        %v3239 = vadd.f32 %v3238, 1.0
        %v3240 = vmul.f32 %v3239, %v2688
        %v3241 = vand.u32 2147483647, %v2688
        %vm3242 = vcmp.lt.f32.partialorder %v3241, 0.0004427343
        %v3243 = vsel %vm3242, %v3240, %v3237
        %v3244 = vadd.f32 %v2690, 1.0
        %v3245 = vlog2.pop %v3244
        %v3246 = vmul.f32 %v3245, 0.6931472
        %v3247 = vmul.f32 -0.5, %v2690
        %v3248 = vadd.f32 %v3247, 1.0
        %v3249 = vmul.f32 %v3248, %v2690
        %v3250 = vand.u32 2147483647, %v2690
        %vm3251 = vcmp.lt.f32.partialorder %v3250, 0.0004427343
        %v3252 = vsel %vm3251, %v3249, %v3246
        %v3253 = vadd.f32 %v2692, 1.0
        %v3254 = vlog2.pop %v3253
        %v3255 = vmul.f32 %v3254, 0.6931472
        %v3256 = vmul.f32 -0.5, %v2692
        %v3257 = vadd.f32 %v3256, 1.0
        %v3258 = vmul.f32 %v3257, %v2692
        %v3259 = vand.u32 2147483647, %v2692
        %vm3260 = vcmp.lt.f32.partialorder %v3259, 0.0004427343
        %v3261 = vsel %vm3260, %v3258, %v3255
        %v3262 = vadd.f32 %v2694, 1.0
        %v3263 = vlog2.pop %v3262
        %v3264 = vmul.f32 %v3263, 0.6931472
        %v3265 = vmul.f32 -0.5, %v2694
        %v3266 = vadd.f32 %v3265, 1.0
        %v3267 = vmul.f32 %v3266, %v2694
        %v3268 = vand.u32 2147483647, %v2694
        %vm3269 = vcmp.lt.f32.partialorder %v3268, 0.0004427343
        %v3270 = vsel %vm3269, %v3267, %v3264
        %v3271 = vadd.f32 %v2375, %v2703
        %v3272 = vadd.f32 %v2376, %v2712
        %v3273 = vadd.f32 %v2377, %v2721
        %v3274 = vadd.f32 %v2378, %v2730
        %v3275 = vadd.f32 %v2379, %v2739
        %v3276 = vadd.f32 %v2380, %v2748
        %v3277 = vadd.f32 %v2381, %v2757
        %v3278 = vadd.f32 %v2382, %v2766
        %v3279 = vadd.f32 %v2383, %v2775
        %v3280 = vadd.f32 %v2384, %v2784
        %v3281 = vadd.f32 %v2385, %v2793
        %v3282 = vadd.f32 %v2386, %v2802
        %v3283 = vadd.f32 %v2387, %v2811
        %v3284 = vadd.f32 %v2388, %v2820
        %v3285 = vadd.f32 %v2389, %v2829
        %v3286 = vadd.f32 %v2390, %v2838
        %v3287 = vadd.f32 %v2391, %v2847
        %v3288 = vadd.f32 %v2392, %v2856
        %v3289 = vadd.f32 %v2393, %v2865
        %v3290 = vadd.f32 %v2394, %v2874
        %v3291 = vadd.f32 %v2395, %v2883
        %v3292 = vadd.f32 %v2396, %v2892
        %v3293 = vadd.f32 %v2397, %v2901
        %v3294 = vadd.f32 %v2398, %v2910
        %v3295 = vadd.f32 %v2399, %v2919
        %v3296 = vadd.f32 %v2400, %v2928
        %v3297 = vadd.f32 %v2401, %v2937
        %v3298 = vadd.f32 %v2402, %v2946
        %v3299 = vadd.f32 %v2403, %v2955
        %v3300 = vadd.f32 %v2404, %v2964
        %v3301 = vadd.f32 %v2405, %v2973
        %v3302 = vadd.f32 %v2406, %v2982
        %v3303 = vadd.f32 %v2407, %v2991
        %v3304 = vadd.f32 %v2408, %v3000
        %v3305 = vadd.f32 %v2409, %v3009
        %v3306 = vadd.f32 %v2410, %v3018
        %v3307 = vadd.f32 %v2411, %v3027
        %v3308 = vadd.f32 %v2412, %v3036
        %v3309 = vadd.f32 %v2413, %v3045
        %v3310 = vadd.f32 %v2414, %v3054
        %v3311 = vadd.f32 %v2415, %v3063
        %v3312 = vadd.f32 %v2416, %v3072
        %v3313 = vadd.f32 %v2417, %v3081
        %v3314 = vadd.f32 %v2418, %v3090
        %v3315 = vadd.f32 %v2419, %v3099
        %v3316 = vadd.f32 %v2420, %v3108
        %v3317 = vadd.f32 %v2421, %v3117
        %v3318 = vadd.f32 %v2422, %v3126
        %v3319 = vadd.f32 %v2423, %v3135
        %v3320 = vadd.f32 %v2424, %v3144
        %v3321 = vadd.f32 %v2425, %v3153
        %v3322 = vadd.f32 %v2426, %v3162
        %v3323 = vadd.f32 %v2427, %v3171
        %v3324 = vadd.f32 %v2428, %v3180
        %v3325 = vadd.f32 %v2429, %v3189
        %v3326 = vadd.f32 %v2430, %v3198
        %v3327 = vadd.f32 %v2431, %v3207
        %v3328 = vadd.f32 %v2432, %v3216
        %v3329 = vadd.f32 %v2433, %v3225
        %v3330 = vadd.f32 %v2434, %v3234
        %v3331 = vadd.f32 %v2435, %v3243
        %v3332 = vadd.f32 %v2436, %v3252
        %v3333 = vadd.f32 %v2437, %v3261
        %v3334 = vadd.f32 %v2438, %v3270
        %v3335 = vsub.f32 %v3271, 0.6931472
        %v3336 = vsub.f32 %v3272, 0.6931472
        %v3337 = vsub.f32 %v3273, 0.6931472
        %v3338 = vsub.f32 %v3274, 0.6931472
        %v3339 = vsub.f32 %v3275, 0.6931472
        %v3340 = vsub.f32 %v3276, 0.6931472
        %v3341 = vsub.f32 %v3277, 0.6931472
        %v3342 = vsub.f32 %v3278, 0.6931472
        %v3343 = vsub.f32 %v3279, 0.6931472
        %v3344 = vsub.f32 %v3280, 0.6931472
        %v3345 = vsub.f32 %v3281, 0.6931472
        %v3346 = vsub.f32 %v3282, 0.6931472
        %v3347 = vsub.f32 %v3283, 0.6931472
        %v3348 = vsub.f32 %v3284, 0.6931472
        %v3349 = vsub.f32 %v3285, 0.6931472
        %v3350 = vsub.f32 %v3286, 0.6931472
        %v3351 = vsub.f32 %v3287, 0.6931472
        %v3352 = vsub.f32 %v3288, 0.6931472
        %v3353 = vsub.f32 %v3289, 0.6931472
        %v3354 = vsub.f32 %v3290, 0.6931472
        %v3355 = vsub.f32 %v3291, 0.6931472
        %v3356 = vsub.f32 %v3292, 0.6931472
        %v3357 = vsub.f32 %v3293, 0.6931472
        %v3358 = vsub.f32 %v3294, 0.6931472
        %v3359 = vsub.f32 %v3295, 0.6931472
        %v3360 = vsub.f32 %v3296, 0.6931472
        %v3361 = vsub.f32 %v3297, 0.6931472
        %v3362 = vsub.f32 %v3298, 0.6931472
        %v3363 = vsub.f32 %v3299, 0.6931472
        %v3364 = vsub.f32 %v3300, 0.6931472
        %v3365 = vsub.f32 %v3301, 0.6931472
        %v3366 = vsub.f32 %v3302, 0.6931472
        %v3367 = vsub.f32 %v3303, 0.6931472
        %v3368 = vsub.f32 %v3304, 0.6931472
        %v3369 = vsub.f32 %v3305, 0.6931472
        %v3370 = vsub.f32 %v3306, 0.6931472
        %v3371 = vsub.f32 %v3307, 0.6931472
        %v3372 = vsub.f32 %v3308, 0.6931472
        %v3373 = vsub.f32 %v3309, 0.6931472
        %v3374 = vsub.f32 %v3310, 0.6931472
        %v3375 = vsub.f32 %v3311, 0.6931472
        %v3376 = vsub.f32 %v3312, 0.6931472
        %v3377 = vsub.f32 %v3313, 0.6931472
        %v3378 = vsub.f32 %v3314, 0.6931472
        %v3379 = vsub.f32 %v3315, 0.6931472
        %v3380 = vsub.f32 %v3316, 0.6931472
        %v3381 = vsub.f32 %v3317, 0.6931472
        %v3382 = vsub.f32 %v3318, 0.6931472
        %v3383 = vsub.f32 %v3319, 0.6931472
        %v3384 = vsub.f32 %v3320, 0.6931472
        %v3385 = vsub.f32 %v3321, 0.6931472
        %v3386 = vsub.f32 %v3322, 0.6931472
        %v3387 = vsub.f32 %v3323, 0.6931472
        %v3388 = vsub.f32 %v3324, 0.6931472
        %v3389 = vsub.f32 %v3325, 0.6931472
        %v3390 = vsub.f32 %v3326, 0.6931472
        %v3391 = vsub.f32 %v3327, 0.6931472
        %v3392 = vsub.f32 %v3328, 0.6931472
        %v3393 = vsub.f32 %v3329, 0.6931472
        %v3394 = vsub.f32 %v3330, 0.6931472
        %v3395 = vsub.f32 %v3331, 0.6931472
        %v3396 = vsub.f32 %v3332, 0.6931472
        %v3397 = vsub.f32 %v3333, 0.6931472
        %v3398 = vsub.f32 %v3334, 0.6931472
        %v3399 = vld [vmem:[%s297] sm:$0xff]
        %v3400 = vld [vmem:[%s297 + $0x8] sm:$0xff]
        %v3401 = vld [vmem:[%s297 + $0x10] sm:$0xff]
        %v3402 = vld [vmem:[%s297 + $0x18] sm:$0xff]
        %v3403 = vld [vmem:[%s297 + $0x20] sm:$0xff]
        %v3404 = vld [vmem:[%s297 + $0x28] sm:$0xff]
        %v3405 = vld [vmem:[%s297 + $0x30] sm:$0xff]
        %v3406 = vld [vmem:[%s297 + $0x38] sm:$0xff]
        %v3407 = vld [vmem:[%s297 + $0x40] sm:$0xff]
        %v3408 = vld [vmem:[%s297 + $0x48] sm:$0xff]
        %v3409 = vld [vmem:[%s297 + $0x50] sm:$0xff]
        %v3410 = vld [vmem:[%s297 + $0x58] sm:$0xff]
        %v3411 = vld [vmem:[%s297 + $0x60] sm:$0xff]
        %v3412 = vld [vmem:[%s297 + $0x68] sm:$0xff]
        %v3413 = vld [vmem:[%s297 + $0x70] sm:$0xff]
        %v3414 = vld [vmem:[%s297 + $0x78] sm:$0xff]
        %v3415 = vld [vmem:[%s297 + $0x80] sm:$0xff]
        %v3416 = vld [vmem:[%s297 + $0x88] sm:$0xff]
        %v3417 = vld [vmem:[%s297 + $0x90] sm:$0xff]
        %v3418 = vld [vmem:[%s297 + $0x98] sm:$0xff]
        %v3419 = vld [vmem:[%s297 + $0xa0] sm:$0xff]
        %v3420 = vld [vmem:[%s297 + $0xa8] sm:$0xff]
        %v3421 = vld [vmem:[%s297 + $0xb0] sm:$0xff]
        %v3422 = vld [vmem:[%s297 + $0xb8] sm:$0xff]
        %v3423 = vld [vmem:[%s297 + $0xc0] sm:$0xff]
        %v3424 = vld [vmem:[%s297 + $0xc8] sm:$0xff]
        %v3425 = vld [vmem:[%s297 + $0xd0] sm:$0xff]
        %v3426 = vld [vmem:[%s297 + $0xd8] sm:$0xff]
        %v3427 = vld [vmem:[%s297 + $0xe0] sm:$0xff]
        %v3428 = vld [vmem:[%s297 + $0xe8] sm:$0xff]
        %v3429 = vld [vmem:[%s297 + $0xf0] sm:$0xff]
        %v3430 = vld [vmem:[%s297 + $0xf8] sm:$0xff]
        %v3431 = vld [vmem:[%s297 + $0x100] sm:$0xff]
        %v3432 = vld [vmem:[%s297 + $0x108] sm:$0xff]
        %v3433 = vld [vmem:[%s297 + $0x110] sm:$0xff]
        %v3434 = vld [vmem:[%s297 + $0x118] sm:$0xff]
        %v3435 = vld [vmem:[%s297 + $0x120] sm:$0xff]
        %v3436 = vld [vmem:[%s297 + $0x128] sm:$0xff]
        %v3437 = vld [vmem:[%s297 + $0x130] sm:$0xff]
        %v3438 = vld [vmem:[%s297 + $0x138] sm:$0xff]
        %v3439 = vld [vmem:[%s297 + $0x140] sm:$0xff]
        %v3440 = vld [vmem:[%s297 + $0x148] sm:$0xff]
        %v3441 = vld [vmem:[%s297 + $0x150] sm:$0xff]
        %v3442 = vld [vmem:[%s297 + $0x158] sm:$0xff]
        %v3443 = vld [vmem:[%s297 + $0x160] sm:$0xff]
        %v3444 = vld [vmem:[%s297 + $0x168] sm:$0xff]
        %v3445 = vld [vmem:[%s297 + $0x170] sm:$0xff]
        %v3446 = vld [vmem:[%s297 + $0x178] sm:$0xff]
        %v3447 = vld [vmem:[%s297 + $0x180] sm:$0xff]
        %v3448 = vld [vmem:[%s297 + $0x188] sm:$0xff]
        %v3449 = vld [vmem:[%s297 + $0x190] sm:$0xff]
        %v3450 = vld [vmem:[%s297 + $0x198] sm:$0xff]
        %v3451 = vld [vmem:[%s297 + $0x1a0] sm:$0xff]
        %v3452 = vld [vmem:[%s297 + $0x1a8] sm:$0xff]
        %v3453 = vld [vmem:[%s297 + $0x1b0] sm:$0xff]
        %v3454 = vld [vmem:[%s297 + $0x1b8] sm:$0xff]
        %v3455 = vld [vmem:[%s297 + $0x1c0] sm:$0xff]
        %v3456 = vld [vmem:[%s297 + $0x1c8] sm:$0xff]
        %v3457 = vld [vmem:[%s297 + $0x1d0] sm:$0xff]
        %v3458 = vld [vmem:[%s297 + $0x1d8] sm:$0xff]
        %v3459 = vld [vmem:[%s297 + $0x1e0] sm:$0xff]
        %v3460 = vld [vmem:[%s297 + $0x1e8] sm:$0xff]
        %v3461 = vld [vmem:[%s297 + $0x1f0] sm:$0xff]
        %v3462 = vld [vmem:[%s297 + $0x1f8] sm:$0xff]
        %v3463 = vmul.f32 %v3399, %v3335
        %v3464 = vmul.f32 %v3400, %v3336
        %v3465 = vmul.f32 %v3401, %v3337
        %v3466 = vmul.f32 %v3402, %v3338
        %v3467 = vmul.f32 %v3403, %v3339
        %v3468 = vmul.f32 %v3404, %v3340
        %v3469 = vmul.f32 %v3405, %v3341
        %v3470 = vmul.f32 %v3406, %v3342
        %v3471 = vmul.f32 %v3407, %v3343
        %v3472 = vmul.f32 %v3408, %v3344
        %v3473 = vmul.f32 %v3409, %v3345
        %v3474 = vmul.f32 %v3410, %v3346
        %v3475 = vmul.f32 %v3411, %v3347
        %v3476 = vmul.f32 %v3412, %v3348
        %v3477 = vmul.f32 %v3413, %v3349
        %v3478 = vmul.f32 %v3414, %v3350
        %v3479 = vmul.f32 %v3415, %v3351
        %v3480 = vmul.f32 %v3416, %v3352
        %v3481 = vmul.f32 %v3417, %v3353
        %v3482 = vmul.f32 %v3418, %v3354
        %v3483 = vmul.f32 %v3419, %v3355
        %v3484 = vmul.f32 %v3420, %v3356
        %v3485 = vmul.f32 %v3421, %v3357
        %v3486 = vmul.f32 %v3422, %v3358
        %v3487 = vmul.f32 %v3423, %v3359
        %v3488 = vmul.f32 %v3424, %v3360
        %v3489 = vmul.f32 %v3425, %v3361
        %v3490 = vmul.f32 %v3426, %v3362
        %v3491 = vmul.f32 %v3427, %v3363
        %v3492 = vmul.f32 %v3428, %v3364
        %v3493 = vmul.f32 %v3429, %v3365
        %v3494 = vmul.f32 %v3430, %v3366
        %v3495 = vmul.f32 %v3431, %v3367
        %v3496 = vmul.f32 %v3432, %v3368
        %v3497 = vmul.f32 %v3433, %v3369
        %v3498 = vmul.f32 %v3434, %v3370
        %v3499 = vmul.f32 %v3435, %v3371
        %v3500 = vmul.f32 %v3436, %v3372
        %v3501 = vmul.f32 %v3437, %v3373
        %v3502 = vmul.f32 %v3438, %v3374
        %v3503 = vmul.f32 %v3439, %v3375
        %v3504 = vmul.f32 %v3440, %v3376
        %v3505 = vmul.f32 %v3441, %v3377
        %v3506 = vmul.f32 %v3442, %v3378
        %v3507 = vmul.f32 %v3443, %v3379
        %v3508 = vmul.f32 %v3444, %v3380
        %v3509 = vmul.f32 %v3445, %v3381
        %v3510 = vmul.f32 %v3446, %v3382
        %v3511 = vmul.f32 %v3447, %v3383
        %v3512 = vmul.f32 %v3448, %v3384
        %v3513 = vmul.f32 %v3449, %v3385
        %v3514 = vmul.f32 %v3450, %v3386
        %v3515 = vmul.f32 %v3451, %v3387
        %v3516 = vmul.f32 %v3452, %v3388
        %v3517 = vmul.f32 %v3453, %v3389
        %v3518 = vmul.f32 %v3454, %v3390
        %v3519 = vmul.f32 %v3455, %v3391
        %v3520 = vmul.f32 %v3456, %v3392
        %v3521 = vmul.f32 %v3457, %v3393
        %v3522 = vmul.f32 %v3458, %v3394
        %v3523 = vmul.f32 %v3459, %v3395
        %v3524 = vmul.f32 %v3460, %v3396
        %v3525 = vmul.f32 %v3461, %v3397
        %v3526 = vmul.f32 %v3462, %v3398
        %v3527 = vpack.c.bf16 %v3464, %v3463
        %v3528 = vpack.c.bf16 %v3466, %v3465
        %v3529 = vpack.c.bf16 %v3468, %v3467
        %v3530 = vpack.c.bf16 %v3470, %v3469
        %v3531 = vpack.c.bf16 %v3472, %v3471
        %v3532 = vpack.c.bf16 %v3474, %v3473
        %v3533 = vpack.c.bf16 %v3476, %v3475
        %v3534 = vpack.c.bf16 %v3478, %v3477
        %v3535 = vpack.c.bf16 %v3480, %v3479
        %v3536 = vpack.c.bf16 %v3482, %v3481
        %v3537 = vpack.c.bf16 %v3484, %v3483
        %v3538 = vpack.c.bf16 %v3486, %v3485
        %v3539 = vpack.c.bf16 %v3488, %v3487
        %v3540 = vpack.c.bf16 %v3490, %v3489
        %v3541 = vpack.c.bf16 %v3492, %v3491
        %v3542 = vpack.c.bf16 %v3494, %v3493
        %v3543 = vpack.c.bf16 %v3496, %v3495
        %v3544 = vpack.c.bf16 %v3498, %v3497
        %v3545 = vpack.c.bf16 %v3500, %v3499
        %v3546 = vpack.c.bf16 %v3502, %v3501
        %v3547 = vpack.c.bf16 %v3504, %v3503
        %v3548 = vpack.c.bf16 %v3506, %v3505
        %v3549 = vpack.c.bf16 %v3508, %v3507
        %v3550 = vpack.c.bf16 %v3510, %v3509
        %v3551 = vpack.c.bf16 %v3512, %v3511
        %v3552 = vpack.c.bf16 %v3514, %v3513
        %v3553 = vpack.c.bf16 %v3516, %v3515
        %v3554 = vpack.c.bf16 %v3518, %v3517
        %v3555 = vpack.c.bf16 %v3520, %v3519
        %v3556 = vpack.c.bf16 %v3522, %v3521
        %v3557 = vpack.c.bf16 %v3524, %v3523
        %v3558 = vpack.c.bf16 %v3526, %v3525
        %v3591 = vunpack.c.l.b16 %v3527
        %v3592 = vunpack.c.h.b16 %v3527
        %v3593 = vunpack.c.l.b16 %v3528
        %v3594 = vunpack.c.h.b16 %v3528
        %v3595 = vunpack.c.l.b16 %v3529
        %v3596 = vunpack.c.h.b16 %v3529
        %v3597 = vunpack.c.l.b16 %v3530
        %v3598 = vunpack.c.h.b16 %v3530
        %v3599 = vunpack.c.l.b16 %v3531
        %v3600 = vunpack.c.h.b16 %v3531
        %v3601 = vunpack.c.l.b16 %v3532
        %v3602 = vunpack.c.h.b16 %v3532
        %v3603 = vunpack.c.l.b16 %v3533
        %v3604 = vunpack.c.h.b16 %v3533
        %v3605 = vunpack.c.l.b16 %v3534
        %v3606 = vunpack.c.h.b16 %v3534
        %v3607 = vunpack.c.l.b16 %v3535
        %v3608 = vunpack.c.h.b16 %v3535
        %v3609 = vunpack.c.l.b16 %v3536
        %v3610 = vunpack.c.h.b16 %v3536
        %v3611 = vunpack.c.l.b16 %v3537
        %v3612 = vunpack.c.h.b16 %v3537
        %v3613 = vunpack.c.l.b16 %v3538
        %v3614 = vunpack.c.h.b16 %v3538
        %v3615 = vunpack.c.l.b16 %v3539
        %v3616 = vunpack.c.h.b16 %v3539
        %v3617 = vunpack.c.l.b16 %v3540
        %v3618 = vunpack.c.h.b16 %v3540
        %v3619 = vunpack.c.l.b16 %v3541
        %v3620 = vunpack.c.h.b16 %v3541
        %v3621 = vunpack.c.l.b16 %v3542
        %v3622 = vunpack.c.h.b16 %v3542
        %v3623 = vunpack.c.l.b16 %v3543
        %v3624 = vunpack.c.h.b16 %v3543
        %v3625 = vunpack.c.l.b16 %v3544
        %v3626 = vunpack.c.h.b16 %v3544
        %v3627 = vunpack.c.l.b16 %v3545
        %v3628 = vunpack.c.h.b16 %v3545
        %v3629 = vunpack.c.l.b16 %v3546
        %v3630 = vunpack.c.h.b16 %v3546
        %v3631 = vunpack.c.l.b16 %v3547
        %v3632 = vunpack.c.h.b16 %v3547
        %v3633 = vunpack.c.l.b16 %v3548
        %v3634 = vunpack.c.h.b16 %v3548
        %v3635 = vunpack.c.l.b16 %v3549
        %v3636 = vunpack.c.h.b16 %v3549
        %v3637 = vunpack.c.l.b16 %v3550
        %v3638 = vunpack.c.h.b16 %v3550
        %v3639 = vunpack.c.l.b16 %v3551
        %v3640 = vunpack.c.h.b16 %v3551
        %v3641 = vunpack.c.l.b16 %v3552
        %v3642 = vunpack.c.h.b16 %v3552
        %v3643 = vunpack.c.l.b16 %v3553
        %v3644 = vunpack.c.h.b16 %v3553
        %v3645 = vunpack.c.l.b16 %v3554
        %v3646 = vunpack.c.h.b16 %v3554
        %v3647 = vunpack.c.l.b16 %v3555
        %v3648 = vunpack.c.h.b16 %v3555
        %v3649 = vunpack.c.l.b16 %v3556
        %v3650 = vunpack.c.h.b16 %v3556
        %v3651 = vunpack.c.l.b16 %v3557
        %v3652 = vunpack.c.h.b16 %v3557
        %v3653 = vunpack.c.l.b16 %v3558
        %v3654 = vunpack.c.h.b16 %v3558
        %v3655 = vpack.c.b16 %v3591, %v3591
        %v3656 = vpack.c.b16 %v3592, %v3592
        %v3657 = vpack.c.b16 %v3593, %v3593
        %v3658 = vpack.c.b16 %v3594, %v3594
        %v3659 = vpack.c.b16 %v3595, %v3595
        %v3660 = vpack.c.b16 %v3596, %v3596
        %v3661 = vpack.c.b16 %v3597, %v3597
        %v3662 = vpack.c.b16 %v3598, %v3598
        %v3663 = vpack.c.b16 %v3599, %v3599
        %v3664 = vpack.c.b16 %v3600, %v3600
        %v3665 = vpack.c.b16 %v3601, %v3601
        %v3666 = vpack.c.b16 %v3602, %v3602
        %v3667 = vpack.c.b16 %v3603, %v3603
        %v3668 = vpack.c.b16 %v3604, %v3604
        %v3669 = vpack.c.b16 %v3605, %v3605
        %v3670 = vpack.c.b16 %v3606, %v3606
        %v3671 = vpack.c.b16 %v3607, %v3607
        %v3672 = vpack.c.b16 %v3608, %v3608
        %v3673 = vpack.c.b16 %v3609, %v3609
        %v3674 = vpack.c.b16 %v3610, %v3610
        %v3675 = vpack.c.b16 %v3611, %v3611
        %v3676 = vpack.c.b16 %v3612, %v3612
        %v3677 = vpack.c.b16 %v3613, %v3613
        %v3678 = vpack.c.b16 %v3614, %v3614
        %v3679 = vpack.c.b16 %v3615, %v3615
        %v3680 = vpack.c.b16 %v3616, %v3616
        %v3681 = vpack.c.b16 %v3617, %v3617
        %v3682 = vpack.c.b16 %v3618, %v3618
        %v3683 = vpack.c.b16 %v3619, %v3619
        %v3684 = vpack.c.b16 %v3620, %v3620
        %v3685 = vpack.c.b16 %v3621, %v3621
        %v3686 = vpack.c.b16 %v3622, %v3622
        %v3687 = vpack.c.b16 %v3623, %v3623
        %v3688 = vpack.c.b16 %v3624, %v3624
        %v3689 = vpack.c.b16 %v3625, %v3625
        %v3690 = vpack.c.b16 %v3626, %v3626
        %v3691 = vpack.c.b16 %v3627, %v3627
        %v3692 = vpack.c.b16 %v3628, %v3628
        %v3693 = vpack.c.b16 %v3629, %v3629
        %v3694 = vpack.c.b16 %v3630, %v3630
        %v3695 = vpack.c.b16 %v3631, %v3631
        %v3696 = vpack.c.b16 %v3632, %v3632
        %v3697 = vpack.c.b16 %v3633, %v3633
        %v3698 = vpack.c.b16 %v3634, %v3634
        %v3699 = vpack.c.b16 %v3635, %v3635
        %v3700 = vpack.c.b16 %v3636, %v3636
        %v3701 = vpack.c.b16 %v3637, %v3637
        %v3702 = vpack.c.b16 %v3638, %v3638
        %v3703 = vpack.c.b16 %v3639, %v3639
        %v3704 = vpack.c.b16 %v3640, %v3640
        %v3705 = vpack.c.b16 %v3641, %v3641
        %v3706 = vpack.c.b16 %v3642, %v3642
        %v3707 = vpack.c.b16 %v3643, %v3643
        %v3708 = vpack.c.b16 %v3644, %v3644
        %v3709 = vpack.c.b16 %v3645, %v3645
        %v3710 = vpack.c.b16 %v3646, %v3646
        %v3711 = vpack.c.b16 %v3647, %v3647
        %v3712 = vpack.c.b16 %v3648, %v3648
        %v3713 = vpack.c.b16 %v3649, %v3649
        %v3714 = vpack.c.b16 %v3650, %v3650
        %v3715 = vpack.c.b16 %v3651, %v3651
        %v3716 = vpack.c.b16 %v3652, %v3652
        %v3717 = vpack.c.b16 %v3653, %v3653
        %v3718 = vpack.c.b16 %v3654, %v3654
        %3783 = vst [vmem:[%s338] sm:$0xf] %v3655
        %3784 = vst [vmem:[%s338 + $0x4] sm:$0xf] %v3656
        %3785 = vst [vmem:[%s338 + $0x8] sm:$0xf] %v3657
        %3786 = vst [vmem:[%s338 + $0xc] sm:$0xf] %v3658
        %3787 = vst [vmem:[%s338 + $0x10] sm:$0xf] %v3659
        %3788 = vst [vmem:[%s338 + $0x14] sm:$0xf] %v3660
        %3789 = vst [vmem:[%s338 + $0x18] sm:$0xf] %v3661
        %3790 = vst [vmem:[%s338 + $0x1c] sm:$0xf] %v3662
        %3791 = vst [vmem:[%s338 + $0x20] sm:$0xf] %v3663
        %3792 = vst [vmem:[%s338 + $0x24] sm:$0xf] %v3664
        %3793 = vst [vmem:[%s338 + $0x28] sm:$0xf] %v3665
        %3794 = vst [vmem:[%s338 + $0x2c] sm:$0xf] %v3666
        %3795 = vst [vmem:[%s338 + $0x30] sm:$0xf] %v3667
        %3796 = vst [vmem:[%s338 + $0x34] sm:$0xf] %v3668
        %3797 = vst [vmem:[%s338 + $0x38] sm:$0xf] %v3669
        %3798 = vst [vmem:[%s338 + $0x3c] sm:$0xf] %v3670
        %3799 = vst [vmem:[%s338 + $0x40] sm:$0xf] %v3671
        %3800 = vst [vmem:[%s338 + $0x44] sm:$0xf] %v3672
        %3801 = vst [vmem:[%s338 + $0x48] sm:$0xf] %v3673
        %3802 = vst [vmem:[%s338 + $0x4c] sm:$0xf] %v3674
        %3803 = vst [vmem:[%s338 + $0x50] sm:$0xf] %v3675
        %3804 = vst [vmem:[%s338 + $0x54] sm:$0xf] %v3676
        %3805 = vst [vmem:[%s338 + $0x58] sm:$0xf] %v3677
        %3806 = vst [vmem:[%s338 + $0x5c] sm:$0xf] %v3678
        %3807 = vst [vmem:[%s338 + $0x60] sm:$0xf] %v3679
        %3808 = vst [vmem:[%s338 + $0x64] sm:$0xf] %v3680
        %3809 = vst [vmem:[%s338 + $0x68] sm:$0xf] %v3681
        %3810 = vst [vmem:[%s338 + $0x6c] sm:$0xf] %v3682
        %3811 = vst [vmem:[%s338 + $0x70] sm:$0xf] %v3683
        %3812 = vst [vmem:[%s338 + $0x74] sm:$0xf] %v3684
        %3813 = vst [vmem:[%s338 + $0x78] sm:$0xf] %v3685
        %3814 = vst [vmem:[%s338 + $0x7c] sm:$0xf] %v3686
        %3815 = vst [vmem:[%s338 + $0x80] sm:$0xf] %v3687
        %3816 = vst [vmem:[%s338 + $0x84] sm:$0xf] %v3688
        %3817 = vst [vmem:[%s338 + $0x88] sm:$0xf] %v3689
        %3818 = vst [vmem:[%s338 + $0x8c] sm:$0xf] %v3690
        %3819 = vst [vmem:[%s338 + $0x90] sm:$0xf] %v3691
        %3820 = vst [vmem:[%s338 + $0x94] sm:$0xf] %v3692
        %3821 = vst [vmem:[%s338 + $0x98] sm:$0xf] %v3693
        %3822 = vst [vmem:[%s338 + $0x9c] sm:$0xf] %v3694
        %3823 = vst [vmem:[%s338 + $0xa0] sm:$0xf] %v3695
        %3824 = vst [vmem:[%s338 + $0xa4] sm:$0xf] %v3696
        %3825 = vst [vmem:[%s338 + $0xa8] sm:$0xf] %v3697
        %3826 = vst [vmem:[%s338 + $0xac] sm:$0xf] %v3698
        %3827 = vst [vmem:[%s338 + $0xb0] sm:$0xf] %v3699
        %3828 = vst [vmem:[%s338 + $0xb4] sm:$0xf] %v3700
        %3829 = vst [vmem:[%s338 + $0xb8] sm:$0xf] %v3701
        %3830 = vst [vmem:[%s338 + $0xbc] sm:$0xf] %v3702
        %3831 = vst [vmem:[%s338 + $0xc0] sm:$0xf] %v3703
        %3832 = vst [vmem:[%s338 + $0xc4] sm:$0xf] %v3704
        %3833 = vst [vmem:[%s338 + $0xc8] sm:$0xf] %v3705
        %3834 = vst [vmem:[%s338 + $0xcc] sm:$0xf] %v3706
        %3835 = vst [vmem:[%s338 + $0xd0] sm:$0xf] %v3707
        %3836 = vst [vmem:[%s338 + $0xd4] sm:$0xf] %v3708
        %3837 = vst [vmem:[%s338 + $0xd8] sm:$0xf] %v3709
        %3838 = vst [vmem:[%s338 + $0xdc] sm:$0xf] %v3710
        %3839 = vst [vmem:[%s338 + $0xe0] sm:$0xf] %v3711
        %3840 = vst [vmem:[%s338 + $0xe4] sm:$0xf] %v3712
        %3841 = vst [vmem:[%s338 + $0xe8] sm:$0xf] %v3713
        %3842 = vst [vmem:[%s338 + $0xec] sm:$0xf] %v3714
        %3843 = vst [vmem:[%s338 + $0xf0] sm:$0xf] %v3715
        %3844 = vst [vmem:[%s338 + $0xf4] sm:$0xf] %v3716
        %3845 = vst [vmem:[%s338 + $0xf8] sm:$0xf] %v3717
        %3846 = vst [vmem:[%s338 + $0xfc] sm:$0xf] %v3718
        %s3847 = sand.u32 %s171, 1
        %s3848 = scalar_lea.sflag [#allocation4], %s3847
        %s3849 = sand.u32 %s171, 1
        %s3850 = smul.addr %s3849, 256
        %s3851 = scalar_lea.vmem [#allocation10], %s3850
        // Predicated region
        $region61: #{tpu_custom_call.1} parent=43 // pred_check
          %p3852 = pneg %p181
        $region62: #{tpu_custom_call.1} parent=43 // pred_check_branch
          %3854 = sbr.rel (%p3852) target = $region64
        $region63: #{tpu_custom_call.1} parent=43 // pred_region
          %s3855 = smul.u32 64, %s27
          %s3857 = ssub.s32 4096, 4096
          %3858 = vsyncadd %s3848, %s3857
          %s3859 = smul.addr %s3855, 64
          %s3860 = scalar_lea.hbm %s6, %s3859
          %s3861 = sshll.u32 %s3851, 4
          %s3862 = int_to_ptr.vmem [resolvable:$true] %s3861
          %3867 = dma.vmem_to_hbm [thread:$0]  %s3862, 4096, %s3860, %s3848, 64, 64, 4
        $region64: #{tpu_custom_call.1} parent=43 // pred_fallthru
          _
      $region44: #{tpu_custom_call.1} parent=5 // pred_fallthru
        _
      %p3868 = scmp.le.s32.totalorder 2, %s22
      // Predicated region
      $region65: #{tpu_custom_call.1} parent=5 // pred_check
        %p3869 = pneg %p3868
      $region66: #{tpu_custom_call.1} parent=5 // pred_check_branch
        %3871 = sbr.rel (%p3869) target = $region68
      $region67: #{tpu_custom_call.1} parent=5 // pred_region
        %s3872 = ssub.s32 %s22, 2
        // Predicated region
        $region69: #{tpu_custom_call.1} parent=67 // pred_check
          %p3873 = pneg %p187
        $region70: #{tpu_custom_call.1} parent=67 // pred_check_branch
          %3875 = sbr.rel (%p3873) target = $region72
        $region71: #{tpu_custom_call.1} parent=67 // pred_region
          %s3876 = sand.u32 %s172, 1
          %s3877 = scalar_lea.sflag [#allocation4], %s3876
          %s3878 = sand.u32 %s172, 1
          %s3879 = smul.addr %s3878, 256
          %s3880 = scalar_lea.vmem [#allocation10], %s3879
          %3881 = dma.done %s3877, 4096
        $region72: #{tpu_custom_call.1} parent=67 // pred_fallthru
          _
      $region68: #{tpu_custom_call.1} parent=5 // pred_fallthru
        _
    $region6: #{tpu_custom_call.1} parent=1 // loop_footer
      %s26 = sadd.s32 1, %s22
    $region7: #{tpu_custom_call.1} parent=1 // loop_footer_branch
      %21 = sbr.rel target = $region3
    $region8: #{tpu_custom_call.1} parent=1 // loop_exit
      _
    %3882 = vsyncpa [#allocation3], 1
    %s3883 = scalar_lea.sflag [#allocation3], 1
    %3884 = vsyncpa %s3883, 1
    %3885 = vsyncpa [#allocation6], 1
    %s3886 = scalar_lea.sflag [#allocation6], 1
    %3887 = vsyncpa %s3886, 1
    %3888 = vsyncpa [#allocation9], 1
    %3889 = vsyncpa [#allocation4], 1
    %s3890 = scalar_lea.sflag [#allocation4], 1
    %3891 = vsyncpa %s3890, 1

</llo_original>
